<compile_context>
chip_gen: v7x
topology: tpu7x:2x2x1
jax: 0.10.0
libtpu: 0.0.40
codegen_flags: <defaults>
</compile_context>

<pallas_src>
import functools

import jax
import jax.numpy as jnp
import numpy as np
from jax.experimental import pallas as pl
from jax.experimental.pallas import tpu as pltpu


def _layernorm(x, gamma, beta, eps=1e-5):
    mu = jnp.mean(x, axis=-1, keepdims=True)
    var = jnp.mean((x - mu) ** 2, axis=-1, keepdims=True)
    return (x - mu) * jax.lax.rsqrt(var + eps) * gamma + beta


def mha_residual_kernel(x_ref, kv_ref,
                        wq_ref, bq_ref, wk_ref, bk_ref, wv_ref, bv_ref,
                        wff_ref, bff_ref, g1_ref, be1_ref,
                        w2a_ref, b2a_ref, w2b_ref, b2b_ref,
                        g2_ref, be2_ref,
                        out_ref, sm_ref,
                        *, nheads, batch, seq, inv_dim_per_head):
    B, L = batch, seq
    X = x_ref[...]                      # (B*L, D)  flattened activations
    D = X.shape[-1]

    # Broadcast keyval rows (B, D) -> per-batch (L, D); never materialized in HBM.
    kv_rows = [jnp.broadcast_to(kv_ref[b:b + 1, :], (L, D)) for b in range(B)]

    ff_parts = []
    for b in range(B):                  # static loop: B=2
        xb = X[b * L:(b + 1) * L, :]    # sublane-aligned slice, no lane shuffles
        kvb = kv_rows[b]
        acc = None
        for h in range(nheads):         # static loop over heads, per-head weights
            Qh = jnp.dot(xb, wq_ref[h], preferred_element_type=jnp.float32) + bq_ref[h]
            Kh = jnp.dot(kvb, wk_ref[h], preferred_element_type=jnp.float32) + bk_ref[h]
            Vh = jnp.dot(kvb, wv_ref[h], preferred_element_type=jnp.float32) + bv_ref[h]
            # (L, L) logits: contract last dims (no explicit transpose),
            # scale by precomputed 1/dim_per_head (multiply, not divide).
            logits = jax.lax.dot_general(
                Qh, Kh, (((1,), (1,)), ((), ())),
                preferred_element_type=jnp.float32) * inv_dim_per_head
            m = jnp.max(logits, axis=-1, keepdims=True)
            e = jnp.exp(logits - m)
            p = e * pl.reciprocal(jnp.sum(e, axis=-1, keepdims=True), approx=False)
            sm_ref[b, h] = p
            pv = jnp.dot(p, Vh, preferred_element_type=jnp.float32)          # (L, dh)
            # Fold head output straight through its slice of wff: no concatenate.
            contrib = jnp.dot(pv, wff_ref[h], preferred_element_type=jnp.float32)  # (L, D)
            acc = contrib if acc is None else acc + contrib
        ff_parts.append(acc)

    ff_out = (jnp.concatenate(ff_parts, axis=0) if B > 1 else ff_parts[0]) + bff_ref[...]

    # dropout (eval) = identity
    out1 = _layernorm(ff_out + X, g1_ref[...], be1_ref[...])

    # ff2: D -> 4D -> (LeakyReLU slope 1.0 == identity, removed) -> D
    h1 = jnp.dot(out1, w2a_ref[...], preferred_element_type=jnp.float32) + b2a_ref[...]
    out2 = jnp.dot(h1, w2b_ref[...], preferred_element_type=jnp.float32) + b2b_ref[...]

    out3 = _layernorm(out1 + out2, g2_ref[...], be2_ref[...])

    kv_exp = jnp.concatenate(kv_rows, axis=0) if B > 1 else kv_rows[0]        # (B*L, D)
    out_ref[...] = out3 + kv_exp


@functools.partial(jax.jit, static_argnames=("nheads", "mha_dim"))
def mha_residual(query, keyval, params, *, nheads, mha_dim):
    """query: (B, L, D); keyval: (B, 1, D) (expanded inside the kernel)."""
    B, L, D = query.shape
    dh = mha_dim // nheads
    inv_dim_per_head = float(nheads) / float(mha_dim)

    (wq, bq, wkv, bkv, wff, bff, g1, be1, w2a, b2a, w2b, b2b, g2, be2) = params

    # Wrapper-side weight plumbing: split wkv -> wk/wv and arrange per-head so the
    # kernel only ever indexes the leading (head) axis — no lane slicing in-kernel.
    wq_h = wq.reshape(D, nheads, dh).transpose(1, 0, 2)        # (H, D, dh)
    bq_h = bq.reshape(nheads, 1, dh)                            # (H, 1, dh)
    wk_h = wkv[:, :mha_dim].reshape(D, nheads, dh).transpose(1, 0, 2)
    wv_h = wkv[:, mha_dim:].reshape(D, nheads, dh).transpose(1, 0, 2)
    bk_h = bkv[:, :mha_dim].reshape(nheads, 1, dh)
    bv_h = bkv[:, mha_dim:].reshape(nheads, 1, dh)
    wff_h = wff.reshape(nheads, dh, D)                          # (H, dh, D)

    x2d = query.reshape(B * L, D)
    kv2d = keyval.reshape(B, D)

    operands = (x2d, kv2d, wq_h, bq_h, wk_h, bk_h, wv_h, bv_h, wff_h, bff,
                g1, be1, w2a, b2a, w2b, b2b, g2, be2)

    def full_spec(a):
        nd = a.ndim
        return pl.BlockSpec(a.shape, lambda i, nd=nd: (0,) * nd)

    # Advisory cost estimate (tiny kernel; helps XLA scheduling around the call).
    flops = (2 * B * L * D * mha_dim            # Q
             + 2 * 2 * B * L * D * mha_dim      # K, V
             + 2 * 2 * B * L * L * mha_dim      # logits + PV
             + 2 * B * L * mha_dim * D          # ff
             + 2 * B * L * D * (4 * D)          # ff2a
             + 2 * B * L * (4 * D) * D)         # ff2b
    transcendentals = B * nheads * L * L + 2 * B * L
    bytes_accessed = (sum(int(a.size) * a.dtype.itemsize for a in operands)
                      + (B * L * D + B * nheads * L * L) * 4)

    kernel = functools.partial(mha_residual_kernel, nheads=nheads, batch=B, seq=L,
                               inv_dim_per_head=inv_dim_per_head)

    out2d, sm = pl.pallas_call(
        kernel,
        out_shape=(jax.ShapeDtypeStruct((B * L, D), jnp.float32),
                   jax.ShapeDtypeStruct((B, nheads, L, L), jnp.float32)),
        grid=(1,),
        in_specs=[full_spec(a) for a in operands],
        out_specs=(pl.BlockSpec((B * L, D), lambda i: (0, 0)),
                   pl.BlockSpec((B, nheads, L, L), lambda i: (0, 0, 0, 0))),
        compiler_params=pltpu.CompilerParams(dimension_semantics=("arbitrary",)),
        cost_estimate=pl.CostEstimate(flops=int(flops),
                                      transcendentals=int(transcendentals),
                                      bytes_accessed=int(bytes_accessed)),
    )(*operands)

    return out2d.reshape(B, L, D), sm


def reference(query, keyval, params, *, nheads, mha_dim):
    """Pure-JAX replica of the PyTorch forward, for verification."""
    (wq, bq, wkv, bkv, wff, bff, g1, be1, w2a, b2a, w2b, b2b, g2, be2) = params
    B, L, D = query.shape
    keyval = jnp.broadcast_to(keyval, query.shape)
    Q = query @ wq + bq
    KV = keyval @ wkv + bkv
    K, V = jnp.split(KV, 2, axis=-1)
    dh = mha_dim // nheads
    heads = lambda x: x.reshape(B, L, nheads, dh).transpose(0, 2, 1, 3)
    Qh, Kh, Vh = heads(Q), heads(K), heads(V)
    logits = jnp.einsum('bhid,bhjd->bhij', Qh, Kh) / (mha_dim / nheads)
    sm = jax.nn.softmax(logits, axis=-1)
    mha = jnp.einsum('bhij,bhjd->bhid', sm, Vh)
    mha_ = mha.transpose(0, 2, 1, 3).reshape(B, L, mha_dim)
    output = mha_ @ wff + bff
    output_ = _layernorm(output + query, g1, be1)
    h1 = output_ @ w2a + b2a
    h1 = jnp.where(h1 >= 0, h1, 1.0 * h1)   # LeakyReLU(True) -> slope 1.0 (identity)
    output2 = h1 @ w2b + b2b
    output3 = _layernorm(output_ + output2, g2, be2)
    return output3 + keyval, sm


def init_params(key, rolled_dim, mha_dim):
    def linear(k, fan_in, fan_out):
        k1, k2 = jax.random.split(k)
        bound = 1.0 / np.sqrt(fan_in)
        w = jax.random.uniform(k1, (fan_in, fan_out), jnp.float32, -bound, bound)
        b = jax.random.uniform(k2, (1, fan_out), jnp.float32, -bound, bound)
        return w, b

    ks = jax.random.split(key, 5)
    wq, bq = linear(ks[0], rolled_dim, mha_dim)
    wkv, bkv = linear(ks[1], rolled_dim, 2 * mha_dim)
    wff, bff = linear(ks[2], mha_dim, rolled_dim)
    w2a, b2a = linear(ks[3], rolled_dim, 4 * rolled_dim)
    w2b, b2b = linear(ks[4], 4 * rolled_dim, rolled_dim)
    g1 = jnp.ones((1, rolled_dim), jnp.float32)
    be1 = jnp.zeros((1, rolled_dim), jnp.float32)
    g2 = jnp.ones((1, rolled_dim), jnp.float32)
    be2 = jnp.zeros((1, rolled_dim), jnp.float32)
    return (wq, bq, wkv, bkv, wff, bff, g1, be1, w2a, b2a, w2b, b2b, g2, be2)


if __name__ == "__main__":
    B, L = 2, 8
    ROLLED_DIM = 32
    MHA_DIM = 64
    NHEADS = 4

    key = jax.random.PRNGKey(0)
    kq, kk, kp = jax.random.split(key, 3)
    query = jax.random.normal(kq, (B, L, ROLLED_DIM), jnp.float32)   # Trajectory
    keyval = jax.random.normal(kk, (B, 1, ROLLED_DIM), jnp.float32)  # Reference (expanded in fwd)
    params = init_params(kp, ROLLED_DIM, MHA_DIM)

    out, sm = mha_residual(query, keyval, params, nheads=NHEADS, mha_dim=MHA_DIM)
    out = jax.block_until_ready(out)
    sm = jax.block_until_ready(sm)

    out_ref, sm_ref = reference(query, keyval, params, nheads=NHEADS, mha_dim=MHA_DIM)
    assert out.shape == (B, L, ROLLED_DIM)
    assert sm.shape == (B, NHEADS, L, L)
    np.testing.assert_allclose(np.asarray(out), np.asarray(out_ref), rtol=1e-4, atol=1e-4)
    np.testing.assert_allclose(np.asarray(sm), np.asarray(sm_ref), rtol=1e-4, atol=1e-5)
    print("KERNEL_OK")
</pallas_src>

<mosaic_0001>
module attributes {stable_mosaic.version = 11 : i64} {
  func.func @mha_residual_kernel(%arg0: i32, %arg1: memref<16x32xf32, #tpu.memory_space<vmem>>, %arg2: memref<2x32xf32, #tpu.memory_space<vmem>>, %arg3: memref<4x32x16xf32, #tpu.memory_space<vmem>>, %arg4: memref<4x1x16xf32, #tpu.memory_space<vmem>>, %arg5: memref<4x32x16xf32, #tpu.memory_space<vmem>>, %arg6: memref<4x1x16xf32, #tpu.memory_space<vmem>>, %arg7: memref<4x32x16xf32, #tpu.memory_space<vmem>>, %arg8: memref<4x1x16xf32, #tpu.memory_space<vmem>>, %arg9: memref<4x16x32xf32, #tpu.memory_space<vmem>>, %arg10: memref<1x32xf32, #tpu.memory_space<vmem>>, %arg11: memref<1x32xf32, #tpu.memory_space<vmem>>, %arg12: memref<1x32xf32, #tpu.memory_space<vmem>>, %arg13: memref<32x128xf32, #tpu.memory_space<vmem>>, %arg14: memref<1x128xf32, #tpu.memory_space<vmem>>, %arg15: memref<128x32xf32, #tpu.memory_space<vmem>>, %arg16: memref<1x32xf32, #tpu.memory_space<vmem>>, %arg17: memref<1x32xf32, #tpu.memory_space<vmem>>, %arg18: memref<1x32xf32, #tpu.memory_space<vmem>>, %arg19: memref<16x32xf32, #tpu.memory_space<vmem>>, %arg20: memref<2x4x8x8xf32, #tpu.memory_space<vmem>>) attributes {dimension_semantics = [#tpu.dimension_semantics<arbitrary>], iteration_bounds = array<i64: 1>, scalar_prefetch = 0 : i64, scratch_operands = 0 : i64, tpu.core_type = #tpu.core_type<tc>, window_params = [{pipeline_mode = #tpu.pipeline_mode<synchronous>, transform_indices = @transform_0, window_bounds = array<i64: 16, 32>}, {pipeline_mode = #tpu.pipeline_mode<synchronous>, transform_indices = @transform_1, window_bounds = array<i64: 2, 32>}, {pipeline_mode = #tpu.pipeline_mode<synchronous>, transform_indices = @transform_2, window_bounds = array<i64: 4, 32, 16>}, {pipeline_mode = #tpu.pipeline_mode<synchronous>, transform_indices = @transform_3, window_bounds = array<i64: 4, 1, 16>}, {pipeline_mode = #tpu.pipeline_mode<synchronous>, transform_indices = @transform_4, window_bounds = array<i64: 4, 32, 16>}, {pipeline_mode = #tpu.pipeline_mode<synchronous>, transform_indices = @transform_5, window_bounds = array<i64: 4, 1, 16>}, {pipeline_mode = #tpu.pipeline_mode<synchronous>, transform_indices = @transform_6, window_bounds = array<i64: 4, 32, 16>}, {pipeline_mode = #tpu.pipeline_mode<synchronous>, transform_indices = @transform_7, window_bounds = array<i64: 4, 1, 16>}, {pipeline_mode = #tpu.pipeline_mode<synchronous>, transform_indices = @transform_8, window_bounds = array<i64: 4, 16, 32>}, {pipeline_mode = #tpu.pipeline_mode<synchronous>, transform_indices = @transform_9, window_bounds = array<i64: 1, 32>}, {pipeline_mode = #tpu.pipeline_mode<synchronous>, transform_indices = @transform_10, window_bounds = array<i64: 1, 32>}, {pipeline_mode = #tpu.pipeline_mode<synchronous>, transform_indices = @transform_11, window_bounds = array<i64: 1, 32>}, {pipeline_mode = #tpu.pipeline_mode<synchronous>, transform_indices = @transform_12, window_bounds = array<i64: 32, 128>}, {pipeline_mode = #tpu.pipeline_mode<synchronous>, transform_indices = @transform_13, window_bounds = array<i64: 1, 128>}, {pipeline_mode = #tpu.pipeline_mode<synchronous>, transform_indices = @transform_14, window_bounds = array<i64: 128, 32>}, {pipeline_mode = #tpu.pipeline_mode<synchronous>, transform_indices = @transform_15, window_bounds = array<i64: 1, 32>}, {pipeline_mode = #tpu.pipeline_mode<synchronous>, transform_indices = @transform_16, window_bounds = array<i64: 1, 32>}, {pipeline_mode = #tpu.pipeline_mode<synchronous>, transform_indices = @transform_17, window_bounds = array<i64: 1, 32>}, {pipeline_mode = #tpu.pipeline_mode<synchronous>, transform_indices = @transform_18, window_bounds = array<i64: 16, 32>}, {pipeline_mode = #tpu.pipeline_mode<synchronous>, transform_indices = @transform_19, window_bounds = array<i64: 2, 4, 8, 8>}]} {
    %c0 = arith.constant 0 : index
    %c0_0 = arith.constant 0 : index
    %0 = vector.load %arg1[%c0, %c0_0] : memref<16x32xf32, #tpu.memory_space<vmem>>, vector<16x32xf32>
    %c0_1 = arith.constant 0 : index
    %c0_2 = arith.constant 0 : index
    %1 = vector.load %arg2[%c0_1, %c0_2] : memref<2x32xf32, #tpu.memory_space<vmem>>, vector<1x32xf32>
    %2 = vector.shape_cast %1 : vector<1x32xf32> to vector<1x32xf32>
    %3 = vector.broadcast %2 : vector<1x32xf32> to vector<8x32xf32>
    %c1 = arith.constant 1 : index
    %c0_3 = arith.constant 0 : index
    %4 = vector.load %arg2[%c1, %c0_3] : memref<2x32xf32, #tpu.memory_space<vmem>>, vector<1x32xf32>
    %5 = vector.shape_cast %4 : vector<1x32xf32> to vector<1x32xf32>
    %6 = vector.broadcast %5 : vector<1x32xf32> to vector<8x32xf32>
    %7 = vector.extract_strided_slice %0 {offsets = [0, 0], sizes = [8, 32], strides = [1, 1]} : vector<16x32xf32> to vector<8x32xf32>
    %c0_4 = arith.constant 0 : index
    %c0_5 = arith.constant 0 : index
    %c0_6 = arith.constant 0 : index
    %8 = vector.load %arg3[%c0_4, %c0_5, %c0_6] : memref<4x32x16xf32, #tpu.memory_space<vmem>>, vector<1x32x16xf32>
    %9 = vector.shape_cast %8 : vector<1x32x16xf32> to vector<32x16xf32>
    %cst = arith.constant dense<0.000000e+00> : vector<8x16xf32>
    %10 = tpu.matmul %7, %9, %cst {dimension_numbers = #tpu.dot_dimension_numbers<[1], [0], [0], [1], [0, 0, 1, 1], [], []>} : vector<8x32xf32>, vector<32x16xf32>, vector<8x16xf32> -> vector<8x16xf32>
    %c0_7 = arith.constant 0 : index
    %c0_8 = arith.constant 0 : index
    %c0_9 = arith.constant 0 : index
    %11 = vector.load %arg4[%c0_7, %c0_8, %c0_9] : memref<4x1x16xf32, #tpu.memory_space<vmem>>, vector<1x1x16xf32>
    %12 = vector.shape_cast %11 : vector<1x1x16xf32> to vector<1x16xf32>
    %13 = vector.broadcast %12 : vector<1x16xf32> to vector<8x16xf32>
    %14 = arith.addf %10, %13 : vector<8x16xf32>
    %c0_10 = arith.constant 0 : index
    %c0_11 = arith.constant 0 : index
    %c0_12 = arith.constant 0 : index
    %15 = vector.load %arg5[%c0_10, %c0_11, %c0_12] : memref<4x32x16xf32, #tpu.memory_space<vmem>>, vector<1x32x16xf32>
    %16 = vector.shape_cast %15 : vector<1x32x16xf32> to vector<32x16xf32>
    %cst_13 = arith.constant dense<0.000000e+00> : vector<8x16xf32>
    %17 = tpu.matmul %3, %16, %cst_13 {dimension_numbers = #tpu.dot_dimension_numbers<[1], [0], [0], [1], [0, 0, 1, 1], [], []>} : vector<8x32xf32>, vector<32x16xf32>, vector<8x16xf32> -> vector<8x16xf32>
    %c0_14 = arith.constant 0 : index
    %c0_15 = arith.constant 0 : index
    %c0_16 = arith.constant 0 : index
    %18 = vector.load %arg6[%c0_14, %c0_15, %c0_16] : memref<4x1x16xf32, #tpu.memory_space<vmem>>, vector<1x1x16xf32>
    %19 = vector.shape_cast %18 : vector<1x1x16xf32> to vector<1x16xf32>
    %20 = vector.broadcast %19 : vector<1x16xf32> to vector<8x16xf32>
    %21 = arith.addf %17, %20 : vector<8x16xf32>
    %c0_17 = arith.constant 0 : index
    %c0_18 = arith.constant 0 : index
    %c0_19 = arith.constant 0 : index
    %22 = vector.load %arg7[%c0_17, %c0_18, %c0_19] : memref<4x32x16xf32, #tpu.memory_space<vmem>>, vector<1x32x16xf32>
    %23 = vector.shape_cast %22 : vector<1x32x16xf32> to vector<32x16xf32>
    %cst_20 = arith.constant dense<0.000000e+00> : vector<8x16xf32>
    %24 = tpu.matmul %3, %23, %cst_20 {dimension_numbers = #tpu.dot_dimension_numbers<[1], [0], [0], [1], [0, 0, 1, 1], [], []>} : vector<8x32xf32>, vector<32x16xf32>, vector<8x16xf32> -> vector<8x16xf32>
    %c0_21 = arith.constant 0 : index
    %c0_22 = arith.constant 0 : index
    %c0_23 = arith.constant 0 : index
    %25 = vector.load %arg8[%c0_21, %c0_22, %c0_23] : memref<4x1x16xf32, #tpu.memory_space<vmem>>, vector<1x1x16xf32>
    %26 = vector.shape_cast %25 : vector<1x1x16xf32> to vector<1x16xf32>
    %27 = vector.broadcast %26 : vector<1x16xf32> to vector<8x16xf32>
    %28 = arith.addf %24, %27 : vector<8x16xf32>
    %cst_24 = arith.constant dense<0.000000e+00> : vector<8x8xf32>
    %29 = tpu.matmul %14, %21, %cst_24 {dimension_numbers = #tpu.dot_dimension_numbers<[1], [1], [0], [0], [0, 0, 1, 0], [], []>} : vector<8x16xf32>, vector<8x16xf32>, vector<8x8xf32> -> vector<8x8xf32>
    %cst_25 = arith.constant 6.250000e-02 : f32
    %30 = vector.broadcast %cst_25 : f32 to vector<8x8xf32>
    %31 = arith.mulf %29, %30 : vector<8x8xf32>
    %cst_26 = arith.constant dense<0xFF800000> : vector<8xf32>
    %32 = vector.multi_reduction <maximumf>, %31, %cst_26 [1] : vector<8x8xf32> to vector<8xf32>
    %33 = vector.shape_cast %32 : vector<8xf32> to vector<8x1xf32>
    %34 = vector.broadcast %33 : vector<8x1xf32> to vector<8x8xf32>
    %35 = arith.subf %31, %34 : vector<8x8xf32>
    %36 = math.exp %35 : vector<8x8xf32>
    %cst_27 = arith.constant dense<0.000000e+00> : vector<8xf32>
    %37 = vector.multi_reduction <add>, %36, %cst_27 [1] : vector<8x8xf32> to vector<8xf32>
    %38 = vector.shape_cast %37 : vector<8xf32> to vector<8x1xf32>
    %39 = tpu.reciprocal %38 : vector<8x1xf32> -> vector<8x1xf32>
    %40 = vector.broadcast %39 : vector<8x1xf32> to vector<8x8xf32>
    %41 = arith.mulf %36, %40 : vector<8x8xf32>
    %c0_28 = arith.constant 0 : index
    %c0_29 = arith.constant 0 : index
    %c0_30 = arith.constant 0 : index
    %c0_31 = arith.constant 0 : index
    %42 = vector.load %arg20[%c0_28, %c0_29, %c0_30, %c0_31] : memref<2x4x8x8xf32, #tpu.memory_space<vmem>>, vector<1x1x8x8xf32>
    %43 = vector.shape_cast %42 : vector<1x1x8x8xf32> to vector<8x8xf32>
    %44 = vector.shape_cast %41 : vector<8x8xf32> to vector<1x1x8x8xf32>
    tpu.vector_store %arg20[%c0_28, %c0_29, %c0_30, %c0_31], %44 {strides = array<i32>} : memref<2x4x8x8xf32, #tpu.memory_space<vmem>>, vector<1x1x8x8xf32>,
    %cst_32 = arith.constant dense<0.000000e+00> : vector<8x16xf32>
    %45 = tpu.matmul %41, %28, %cst_32 {dimension_numbers = #tpu.dot_dimension_numbers<[1], [0], [0], [1], [0, 0, 1, 1], [], []>} : vector<8x8xf32>, vector<8x16xf32>, vector<8x16xf32> -> vector<8x16xf32>
    %c0_33 = arith.constant 0 : index
    %c0_34 = arith.constant 0 : index
    %c0_35 = arith.constant 0 : index
    %46 = vector.load %arg9[%c0_33, %c0_34, %c0_35] : memref<4x16x32xf32, #tpu.memory_space<vmem>>, vector<1x16x32xf32>
    %47 = vector.shape_cast %46 : vector<1x16x32xf32> to vector<16x32xf32>
    %cst_36 = arith.constant dense<0.000000e+00> : vector<8x32xf32>
    %48 = tpu.matmul %45, %47, %cst_36 {dimension_numbers = #tpu.dot_dimension_numbers<[1], [0], [0], [1], [0, 0, 1, 1], [], []>} : vector<8x16xf32>, vector<16x32xf32>, vector<8x32xf32> -> vector<8x32xf32>
    %c1_37 = arith.constant 1 : index
    %c0_38 = arith.constant 0 : index
    %c0_39 = arith.constant 0 : index
    %49 = vector.load %arg3[%c1_37, %c0_38, %c0_39] : memref<4x32x16xf32, #tpu.memory_space<vmem>>, vector<1x32x16xf32>
    %50 = vector.shape_cast %49 : vector<1x32x16xf32> to vector<32x16xf32>
    %cst_40 = arith.constant dense<0.000000e+00> : vector<8x16xf32>
    %51 = tpu.matmul %7, %50, %cst_40 {dimension_numbers = #tpu.dot_dimension_numbers<[1], [0], [0], [1], [0, 0, 1, 1], [], []>} : vector<8x32xf32>, vector<32x16xf32>, vector<8x16xf32> -> vector<8x16xf32>
    %c1_41 = arith.constant 1 : index
    %c0_42 = arith.constant 0 : index
    %c0_43 = arith.constant 0 : index
    %52 = vector.load %arg4[%c1_41, %c0_42, %c0_43] : memref<4x1x16xf32, #tpu.memory_space<vmem>>, vector<1x1x16xf32>
    %53 = vector.shape_cast %52 : vector<1x1x16xf32> to vector<1x16xf32>
    %54 = vector.broadcast %53 : vector<1x16xf32> to vector<8x16xf32>
    %55 = arith.addf %51, %54 : vector<8x16xf32>
    %c1_44 = arith.constant 1 : index
    %c0_45 = arith.constant 0 : index
    %c0_46 = arith.constant 0 : index
    %56 = vector.load %arg5[%c1_44, %c0_45, %c0_46] : memref<4x32x16xf32, #tpu.memory_space<vmem>>, vector<1x32x16xf32>
    %57 = vector.shape_cast %56 : vector<1x32x16xf32> to vector<32x16xf32>
    %cst_47 = arith.constant dense<0.000000e+00> : vector<8x16xf32>
    %58 = tpu.matmul %3, %57, %cst_47 {dimension_numbers = #tpu.dot_dimension_numbers<[1], [0], [0], [1], [0, 0, 1, 1], [], []>} : vector<8x32xf32>, vector<32x16xf32>, vector<8x16xf32> -> vector<8x16xf32>
    %c1_48 = arith.constant 1 : index
    %c0_49 = arith.constant 0 : index
    %c0_50 = arith.constant 0 : index
    %59 = vector.load %arg6[%c1_48, %c0_49, %c0_50] : memref<4x1x16xf32, #tpu.memory_space<vmem>>, vector<1x1x16xf32>
    %60 = vector.shape_cast %59 : vector<1x1x16xf32> to vector<1x16xf32>
    %61 = vector.broadcast %60 : vector<1x16xf32> to vector<8x16xf32>
    %62 = arith.addf %58, %61 : vector<8x16xf32>
    %c1_51 = arith.constant 1 : index
    %c0_52 = arith.constant 0 : index
    %c0_53 = arith.constant 0 : index
    %63 = vector.load %arg7[%c1_51, %c0_52, %c0_53] : memref<4x32x16xf32, #tpu.memory_space<vmem>>, vector<1x32x16xf32>
    %64 = vector.shape_cast %63 : vector<1x32x16xf32> to vector<32x16xf32>
    %cst_54 = arith.constant dense<0.000000e+00> : vector<8x16xf32>
    %65 = tpu.matmul %3, %64, %cst_54 {dimension_numbers = #tpu.dot_dimension_numbers<[1], [0], [0], [1], [0, 0, 1, 1], [], []>} : vector<8x32xf32>, vector<32x16xf32>, vector<8x16xf32> -> vector<8x16xf32>
    %c1_55 = arith.constant 1 : index
    %c0_56 = arith.constant 0 : index
    %c0_57 = arith.constant 0 : index
    %66 = vector.load %arg8[%c1_55, %c0_56, %c0_57] : memref<4x1x16xf32, #tpu.memory_space<vmem>>, vector<1x1x16xf32>
    %67 = vector.shape_cast %66 : vector<1x1x16xf32> to vector<1x16xf32>
    %68 = vector.broadcast %67 : vector<1x16xf32> to vector<8x16xf32>
    %69 = arith.addf %65, %68 : vector<8x16xf32>
    %cst_58 = arith.constant dense<0.000000e+00> : vector<8x8xf32>
    %70 = tpu.matmul %55, %62, %cst_58 {dimension_numbers = #tpu.dot_dimension_numbers<[1], [1], [0], [0], [0, 0, 1, 0], [], []>} : vector<8x16xf32>, vector<8x16xf32>, vector<8x8xf32> -> vector<8x8xf32>
    %cst_59 = arith.constant 6.250000e-02 : f32
    %71 = vector.broadcast %cst_59 : f32 to vector<8x8xf32>
    %72 = arith.mulf %70, %71 : vector<8x8xf32>
    %cst_60 = arith.constant dense<0xFF800000> : vector<8xf32>
    %73 = vector.multi_reduction <maximumf>, %72, %cst_60 [1] : vector<8x8xf32> to vector<8xf32>
    %74 = vector.shape_cast %73 : vector<8xf32> to vector<8x1xf32>
    %75 = vector.broadcast %74 : vector<8x1xf32> to vector<8x8xf32>
    %76 = arith.subf %72, %75 : vector<8x8xf32>
    %77 = math.exp %76 : vector<8x8xf32>
    %cst_61 = arith.constant dense<0.000000e+00> : vector<8xf32>
    %78 = vector.multi_reduction <add>, %77, %cst_61 [1] : vector<8x8xf32> to vector<8xf32>
    %79 = vector.shape_cast %78 : vector<8xf32> to vector<8x1xf32>
    %80 = tpu.reciprocal %79 : vector<8x1xf32> -> vector<8x1xf32>
    %81 = vector.broadcast %80 : vector<8x1xf32> to vector<8x8xf32>
    %82 = arith.mulf %77, %81 : vector<8x8xf32>
    %c0_62 = arith.constant 0 : index
    %c1_63 = arith.constant 1 : index
    %c0_64 = arith.constant 0 : index
    %c0_65 = arith.constant 0 : index
    %83 = vector.load %arg20[%c0_62, %c1_63, %c0_64, %c0_65] : memref<2x4x8x8xf32, #tpu.memory_space<vmem>>, vector<1x1x8x8xf32>
    %84 = vector.shape_cast %83 : vector<1x1x8x8xf32> to vector<8x8xf32>
    %85 = vector.shape_cast %82 : vector<8x8xf32> to vector<1x1x8x8xf32>
    tpu.vector_store %arg20[%c0_62, %c1_63, %c0_64, %c0_65], %85 {strides = array<i32>} : memref<2x4x8x8xf32, #tpu.memory_space<vmem>>, vector<1x1x8x8xf32>,
    %cst_66 = arith.constant dense<0.000000e+00> : vector<8x16xf32>
    %86 = tpu.matmul %82, %69, %cst_66 {dimension_numbers = #tpu.dot_dimension_numbers<[1], [0], [0], [1], [0, 0, 1, 1], [], []>} : vector<8x8xf32>, vector<8x16xf32>, vector<8x16xf32> -> vector<8x16xf32>
    %c1_67 = arith.constant 1 : index
    %c0_68 = arith.constant 0 : index
    %c0_69 = arith.constant 0 : index
    %87 = vector.load %arg9[%c1_67, %c0_68, %c0_69] : memref<4x16x32xf32, #tpu.memory_space<vmem>>, vector<1x16x32xf32>
    %88 = vector.shape_cast %87 : vector<1x16x32xf32> to vector<16x32xf32>
    %cst_70 = arith.constant dense<0.000000e+00> : vector<8x32xf32>
    %89 = tpu.matmul %86, %88, %cst_70 {dimension_numbers = #tpu.dot_dimension_numbers<[1], [0], [0], [1], [0, 0, 1, 1], [], []>} : vector<8x16xf32>, vector<16x32xf32>, vector<8x32xf32> -> vector<8x32xf32>
    %90 = arith.addf %48, %89 : vector<8x32xf32>
    %c2 = arith.constant 2 : index
    %c0_71 = arith.constant 0 : index
    %c0_72 = arith.constant 0 : index
    %91 = vector.load %arg3[%c2, %c0_71, %c0_72] : memref<4x32x16xf32, #tpu.memory_space<vmem>>, vector<1x32x16xf32>
    %92 = vector.shape_cast %91 : vector<1x32x16xf32> to vector<32x16xf32>
    %cst_73 = arith.constant dense<0.000000e+00> : vector<8x16xf32>
    %93 = tpu.matmul %7, %92, %cst_73 {dimension_numbers = #tpu.dot_dimension_numbers<[1], [0], [0], [1], [0, 0, 1, 1], [], []>} : vector<8x32xf32>, vector<32x16xf32>, vector<8x16xf32> -> vector<8x16xf32>
    %c2_74 = arith.constant 2 : index
    %c0_75 = arith.constant 0 : index
    %c0_76 = arith.constant 0 : index
    %94 = vector.load %arg4[%c2_74, %c0_75, %c0_76] : memref<4x1x16xf32, #tpu.memory_space<vmem>>, vector<1x1x16xf32>
    %95 = vector.shape_cast %94 : vector<1x1x16xf32> to vector<1x16xf32>
    %96 = vector.broadcast %95 : vector<1x16xf32> to vector<8x16xf32>
    %97 = arith.addf %93, %96 : vector<8x16xf32>
    %c2_77 = arith.constant 2 : index
    %c0_78 = arith.constant 0 : index
    %c0_79 = arith.constant 0 : index
    %98 = vector.load %arg5[%c2_77, %c0_78, %c0_79] : memref<4x32x16xf32, #tpu.memory_space<vmem>>, vector<1x32x16xf32>
    %99 = vector.shape_cast %98 : vector<1x32x16xf32> to vector<32x16xf32>
    %cst_80 = arith.constant dense<0.000000e+00> : vector<8x16xf32>
    %100 = tpu.matmul %3, %99, %cst_80 {dimension_numbers = #tpu.dot_dimension_numbers<[1], [0], [0], [1], [0, 0, 1, 1], [], []>} : vector<8x32xf32>, vector<32x16xf32>, vector<8x16xf32> -> vector<8x16xf32>
    %c2_81 = arith.constant 2 : index
    %c0_82 = arith.constant 0 : index
    %c0_83 = arith.constant 0 : index
    %101 = vector.load %arg6[%c2_81, %c0_82, %c0_83] : memref<4x1x16xf32, #tpu.memory_space<vmem>>, vector<1x1x16xf32>
    %102 = vector.shape_cast %101 : vector<1x1x16xf32> to vector<1x16xf32>
    %103 = vector.broadcast %102 : vector<1x16xf32> to vector<8x16xf32>
    %104 = arith.addf %100, %103 : vector<8x16xf32>
    %c2_84 = arith.constant 2 : index
    %c0_85 = arith.constant 0 : index
    %c0_86 = arith.constant 0 : index
    %105 = vector.load %arg7[%c2_84, %c0_85, %c0_86] : memref<4x32x16xf32, #tpu.memory_space<vmem>>, vector<1x32x16xf32>
    %106 = vector.shape_cast %105 : vector<1x32x16xf32> to vector<32x16xf32>
    %cst_87 = arith.constant dense<0.000000e+00> : vector<8x16xf32>
    %107 = tpu.matmul %3, %106, %cst_87 {dimension_numbers = #tpu.dot_dimension_numbers<[1], [0], [0], [1], [0, 0, 1, 1], [], []>} : vector<8x32xf32>, vector<32x16xf32>, vector<8x16xf32> -> vector<8x16xf32>
    %c2_88 = arith.constant 2 : index
    %c0_89 = arith.constant 0 : index
    %c0_90 = arith.constant 0 : index
    %108 = vector.load %arg8[%c2_88, %c0_89, %c0_90] : memref<4x1x16xf32, #tpu.memory_space<vmem>>, vector<1x1x16xf32>
    %109 = vector.shape_cast %108 : vector<1x1x16xf32> to vector<1x16xf32>
    %110 = vector.broadcast %109 : vector<1x16xf32> to vector<8x16xf32>
    %111 = arith.addf %107, %110 : vector<8x16xf32>
    %cst_91 = arith.constant dense<0.000000e+00> : vector<8x8xf32>
    %112 = tpu.matmul %97, %104, %cst_91 {dimension_numbers = #tpu.dot_dimension_numbers<[1], [1], [0], [0], [0, 0, 1, 0], [], []>} : vector<8x16xf32>, vector<8x16xf32>, vector<8x8xf32> -> vector<8x8xf32>
    %cst_92 = arith.constant 6.250000e-02 : f32
    %113 = vector.broadcast %cst_92 : f32 to vector<8x8xf32>
    %114 = arith.mulf %112, %113 : vector<8x8xf32>
    %cst_93 = arith.constant dense<0xFF800000> : vector<8xf32>
    %115 = vector.multi_reduction <maximumf>, %114, %cst_93 [1] : vector<8x8xf32> to vector<8xf32>
    %116 = vector.shape_cast %115 : vector<8xf32> to vector<8x1xf32>
    %117 = vector.broadcast %116 : vector<8x1xf32> to vector<8x8xf32>
    %118 = arith.subf %114, %117 : vector<8x8xf32>
    %119 = math.exp %118 : vector<8x8xf32>
    %cst_94 = arith.constant dense<0.000000e+00> : vector<8xf32>
    %120 = vector.multi_reduction <add>, %119, %cst_94 [1] : vector<8x8xf32> to vector<8xf32>
    %121 = vector.shape_cast %120 : vector<8xf32> to vector<8x1xf32>
    %122 = tpu.reciprocal %121 : vector<8x1xf32> -> vector<8x1xf32>
    %123 = vector.broadcast %122 : vector<8x1xf32> to vector<8x8xf32>
    %124 = arith.mulf %119, %123 : vector<8x8xf32>
    %c0_95 = arith.constant 0 : index
    %c2_96 = arith.constant 2 : index
    %c0_97 = arith.constant 0 : index
    %c0_98 = arith.constant 0 : index
    %125 = vector.load %arg20[%c0_95, %c2_96, %c0_97, %c0_98] : memref<2x4x8x8xf32, #tpu.memory_space<vmem>>, vector<1x1x8x8xf32>
    %126 = vector.shape_cast %125 : vector<1x1x8x8xf32> to vector<8x8xf32>
    %127 = vector.shape_cast %124 : vector<8x8xf32> to vector<1x1x8x8xf32>
    tpu.vector_store %arg20[%c0_95, %c2_96, %c0_97, %c0_98], %127 {strides = array<i32>} : memref<2x4x8x8xf32, #tpu.memory_space<vmem>>, vector<1x1x8x8xf32>,
    %cst_99 = arith.constant dense<0.000000e+00> : vector<8x16xf32>
    %128 = tpu.matmul %124, %111, %cst_99 {dimension_numbers = #tpu.dot_dimension_numbers<[1], [0], [0], [1], [0, 0, 1, 1], [], []>} : vector<8x8xf32>, vector<8x16xf32>, vector<8x16xf32> -> vector<8x16xf32>
    %c2_100 = arith.constant 2 : index
    %c0_101 = arith.constant 0 : index
    %c0_102 = arith.constant 0 : index
    %129 = vector.load %arg9[%c2_100, %c0_101, %c0_102] : memref<4x16x32xf32, #tpu.memory_space<vmem>>, vector<1x16x32xf32>
    %130 = vector.shape_cast %129 : vector<1x16x32xf32> to vector<16x32xf32>
    %cst_103 = arith.constant dense<0.000000e+00> : vector<8x32xf32>
    %131 = tpu.matmul %128, %130, %cst_103 {dimension_numbers = #tpu.dot_dimension_numbers<[1], [0], [0], [1], [0, 0, 1, 1], [], []>} : vector<8x16xf32>, vector<16x32xf32>, vector<8x32xf32> -> vector<8x32xf32>
    %132 = arith.addf %90, %131 : vector<8x32xf32>
    %c3 = arith.constant 3 : index
    %c0_104 = arith.constant 0 : index
    %c0_105 = arith.constant 0 : index
    %133 = vector.load %arg3[%c3, %c0_104, %c0_105] : memref<4x32x16xf32, #tpu.memory_space<vmem>>, vector<1x32x16xf32>
    %134 = vector.shape_cast %133 : vector<1x32x16xf32> to vector<32x16xf32>
    %cst_106 = arith.constant dense<0.000000e+00> : vector<8x16xf32>
    %135 = tpu.matmul %7, %134, %cst_106 {dimension_numbers = #tpu.dot_dimension_numbers<[1], [0], [0], [1], [0, 0, 1, 1], [], []>} : vector<8x32xf32>, vector<32x16xf32>, vector<8x16xf32> -> vector<8x16xf32>
    %c3_107 = arith.constant 3 : index
    %c0_108 = arith.constant 0 : index
    %c0_109 = arith.constant 0 : index
    %136 = vector.load %arg4[%c3_107, %c0_108, %c0_109] : memref<4x1x16xf32, #tpu.memory_space<vmem>>, vector<1x1x16xf32>
    %137 = vector.shape_cast %136 : vector<1x1x16xf32> to vector<1x16xf32>
    %138 = vector.broadcast %137 : vector<1x16xf32> to vector<8x16xf32>
    %139 = arith.addf %135, %138 : vector<8x16xf32>
    %c3_110 = arith.constant 3 : index
    %c0_111 = arith.constant 0 : index
    %c0_112 = arith.constant 0 : index
    %140 = vector.load %arg5[%c3_110, %c0_111, %c0_112] : memref<4x32x16xf32, #tpu.memory_space<vmem>>, vector<1x32x16xf32>
    %141 = vector.shape_cast %140 : vector<1x32x16xf32> to vector<32x16xf32>
    %cst_113 = arith.constant dense<0.000000e+00> : vector<8x16xf32>
    %142 = tpu.matmul %3, %141, %cst_113 {dimension_numbers = #tpu.dot_dimension_numbers<[1], [0], [0], [1], [0, 0, 1, 1], [], []>} : vector<8x32xf32>, vector<32x16xf32>, vector<8x16xf32> -> vector<8x16xf32>
    %c3_114 = arith.constant 3 : index
    %c0_115 = arith.constant 0 : index
    %c0_116 = arith.constant 0 : index
    %143 = vector.load %arg6[%c3_114, %c0_115, %c0_116] : memref<4x1x16xf32, #tpu.memory_space<vmem>>, vector<1x1x16xf32>
    %144 = vector.shape_cast %143 : vector<1x1x16xf32> to vector<1x16xf32>
    %145 = vector.broadcast %144 : vector<1x16xf32> to vector<8x16xf32>
    %146 = arith.addf %142, %145 : vector<8x16xf32>
    %c3_117 = arith.constant 3 : index
    %c0_118 = arith.constant 0 : index
    %c0_119 = arith.constant 0 : index
    %147 = vector.load %arg7[%c3_117, %c0_118, %c0_119] : memref<4x32x16xf32, #tpu.memory_space<vmem>>, vector<1x32x16xf32>
    %148 = vector.shape_cast %147 : vector<1x32x16xf32> to vector<32x16xf32>
    %cst_120 = arith.constant dense<0.000000e+00> : vector<8x16xf32>
    %149 = tpu.matmul %3, %148, %cst_120 {dimension_numbers = #tpu.dot_dimension_numbers<[1], [0], [0], [1], [0, 0, 1, 1], [], []>} : vector<8x32xf32>, vector<32x16xf32>, vector<8x16xf32> -> vector<8x16xf32>
    %c3_121 = arith.constant 3 : index
    %c0_122 = arith.constant 0 : index
    %c0_123 = arith.constant 0 : index
    %150 = vector.load %arg8[%c3_121, %c0_122, %c0_123] : memref<4x1x16xf32, #tpu.memory_space<vmem>>, vector<1x1x16xf32>
    %151 = vector.shape_cast %150 : vector<1x1x16xf32> to vector<1x16xf32>
    %152 = vector.broadcast %151 : vector<1x16xf32> to vector<8x16xf32>
    %153 = arith.addf %149, %152 : vector<8x16xf32>
    %cst_124 = arith.constant dense<0.000000e+00> : vector<8x8xf32>
    %154 = tpu.matmul %139, %146, %cst_124 {dimension_numbers = #tpu.dot_dimension_numbers<[1], [1], [0], [0], [0, 0, 1, 0], [], []>} : vector<8x16xf32>, vector<8x16xf32>, vector<8x8xf32> -> vector<8x8xf32>
    %cst_125 = arith.constant 6.250000e-02 : f32
    %155 = vector.broadcast %cst_125 : f32 to vector<8x8xf32>
    %156 = arith.mulf %154, %155 : vector<8x8xf32>
    %cst_126 = arith.constant dense<0xFF800000> : vector<8xf32>
    %157 = vector.multi_reduction <maximumf>, %156, %cst_126 [1] : vector<8x8xf32> to vector<8xf32>
    %158 = vector.shape_cast %157 : vector<8xf32> to vector<8x1xf32>
    %159 = vector.broadcast %158 : vector<8x1xf32> to vector<8x8xf32>
    %160 = arith.subf %156, %159 : vector<8x8xf32>
    %161 = math.exp %160 : vector<8x8xf32>
    %cst_127 = arith.constant dense<0.000000e+00> : vector<8xf32>
    %162 = vector.multi_reduction <add>, %161, %cst_127 [1] : vector<8x8xf32> to vector<8xf32>
    %163 = vector.shape_cast %162 : vector<8xf32> to vector<8x1xf32>
    %164 = tpu.reciprocal %163 : vector<8x1xf32> -> vector<8x1xf32>
    %165 = vector.broadcast %164 : vector<8x1xf32> to vector<8x8xf32>
    %166 = arith.mulf %161, %165 : vector<8x8xf32>
    %c0_128 = arith.constant 0 : index
    %c3_129 = arith.constant 3 : index
    %c0_130 = arith.constant 0 : index
    %c0_131 = arith.constant 0 : index
    %167 = vector.load %arg20[%c0_128, %c3_129, %c0_130, %c0_131] : memref<2x4x8x8xf32, #tpu.memory_space<vmem>>, vector<1x1x8x8xf32>
    %168 = vector.shape_cast %167 : vector<1x1x8x8xf32> to vector<8x8xf32>
    %169 = vector.shape_cast %166 : vector<8x8xf32> to vector<1x1x8x8xf32>
    tpu.vector_store %arg20[%c0_128, %c3_129, %c0_130, %c0_131], %169 {strides = array<i32>} : memref<2x4x8x8xf32, #tpu.memory_space<vmem>>, vector<1x1x8x8xf32>,
    %cst_132 = arith.constant dense<0.000000e+00> : vector<8x16xf32>
    %170 = tpu.matmul %166, %153, %cst_132 {dimension_numbers = #tpu.dot_dimension_numbers<[1], [0], [0], [1], [0, 0, 1, 1], [], []>} : vector<8x8xf32>, vector<8x16xf32>, vector<8x16xf32> -> vector<8x16xf32>
    %c3_133 = arith.constant 3 : index
    %c0_134 = arith.constant 0 : index
    %c0_135 = arith.constant 0 : index
    %171 = vector.load %arg9[%c3_133, %c0_134, %c0_135] : memref<4x16x32xf32, #tpu.memory_space<vmem>>, vector<1x16x32xf32>
    %172 = vector.shape_cast %171 : vector<1x16x32xf32> to vector<16x32xf32>
    %cst_136 = arith.constant dense<0.000000e+00> : vector<8x32xf32>
    %173 = tpu.matmul %170, %172, %cst_136 {dimension_numbers = #tpu.dot_dimension_numbers<[1], [0], [0], [1], [0, 0, 1, 1], [], []>} : vector<8x16xf32>, vector<16x32xf32>, vector<8x32xf32> -> vector<8x32xf32>
    %174 = arith.addf %132, %173 : vector<8x32xf32>
    %175 = vector.extract_strided_slice %0 {offsets = [8, 0], sizes = [8, 32], strides = [1, 1]} : vector<16x32xf32> to vector<8x32xf32>
    %c0_137 = arith.constant 0 : index
    %c0_138 = arith.constant 0 : index
    %c0_139 = arith.constant 0 : index
    %176 = vector.load %arg3[%c0_137, %c0_138, %c0_139] : memref<4x32x16xf32, #tpu.memory_space<vmem>>, vector<1x32x16xf32>
    %177 = vector.shape_cast %176 : vector<1x32x16xf32> to vector<32x16xf32>
    %cst_140 = arith.constant dense<0.000000e+00> : vector<8x16xf32>
    %178 = tpu.matmul %175, %177, %cst_140 {dimension_numbers = #tpu.dot_dimension_numbers<[1], [0], [0], [1], [0, 0, 1, 1], [], []>} : vector<8x32xf32>, vector<32x16xf32>, vector<8x16xf32> -> vector<8x16xf32>
    %c0_141 = arith.constant 0 : index
    %c0_142 = arith.constant 0 : index
    %c0_143 = arith.constant 0 : index
    %179 = vector.load %arg4[%c0_141, %c0_142, %c0_143] : memref<4x1x16xf32, #tpu.memory_space<vmem>>, vector<1x1x16xf32>
    %180 = vector.shape_cast %179 : vector<1x1x16xf32> to vector<1x16xf32>
    %181 = vector.broadcast %180 : vector<1x16xf32> to vector<8x16xf32>
    %182 = arith.addf %178, %181 : vector<8x16xf32>
    %c0_144 = arith.constant 0 : index
    %c0_145 = arith.constant 0 : index
    %c0_146 = arith.constant 0 : index
    %183 = vector.load %arg5[%c0_144, %c0_145, %c0_146] : memref<4x32x16xf32, #tpu.memory_space<vmem>>, vector<1x32x16xf32>
    %184 = vector.shape_cast %183 : vector<1x32x16xf32> to vector<32x16xf32>
    %cst_147 = arith.constant dense<0.000000e+00> : vector<8x16xf32>
    %185 = tpu.matmul %6, %184, %cst_147 {dimension_numbers = #tpu.dot_dimension_numbers<[1], [0], [0], [1], [0, 0, 1, 1], [], []>} : vector<8x32xf32>, vector<32x16xf32>, vector<8x16xf32> -> vector<8x16xf32>
    %c0_148 = arith.constant 0 : index
    %c0_149 = arith.constant 0 : index
    %c0_150 = arith.constant 0 : index
    %186 = vector.load %arg6[%c0_148, %c0_149, %c0_150] : memref<4x1x16xf32, #tpu.memory_space<vmem>>, vector<1x1x16xf32>
    %187 = vector.shape_cast %186 : vector<1x1x16xf32> to vector<1x16xf32>
    %188 = vector.broadcast %187 : vector<1x16xf32> to vector<8x16xf32>
    %189 = arith.addf %185, %188 : vector<8x16xf32>
    %c0_151 = arith.constant 0 : index
    %c0_152 = arith.constant 0 : index
    %c0_153 = arith.constant 0 : index
    %190 = vector.load %arg7[%c0_151, %c0_152, %c0_153] : memref<4x32x16xf32, #tpu.memory_space<vmem>>, vector<1x32x16xf32>
    %191 = vector.shape_cast %190 : vector<1x32x16xf32> to vector<32x16xf32>
    %cst_154 = arith.constant dense<0.000000e+00> : vector<8x16xf32>
    %192 = tpu.matmul %6, %191, %cst_154 {dimension_numbers = #tpu.dot_dimension_numbers<[1], [0], [0], [1], [0, 0, 1, 1], [], []>} : vector<8x32xf32>, vector<32x16xf32>, vector<8x16xf32> -> vector<8x16xf32>
    %c0_155 = arith.constant 0 : index
    %c0_156 = arith.constant 0 : index
    %c0_157 = arith.constant 0 : index
    %193 = vector.load %arg8[%c0_155, %c0_156, %c0_157] : memref<4x1x16xf32, #tpu.memory_space<vmem>>, vector<1x1x16xf32>
    %194 = vector.shape_cast %193 : vector<1x1x16xf32> to vector<1x16xf32>
    %195 = vector.broadcast %194 : vector<1x16xf32> to vector<8x16xf32>
    %196 = arith.addf %192, %195 : vector<8x16xf32>
    %cst_158 = arith.constant dense<0.000000e+00> : vector<8x8xf32>
    %197 = tpu.matmul %182, %189, %cst_158 {dimension_numbers = #tpu.dot_dimension_numbers<[1], [1], [0], [0], [0, 0, 1, 0], [], []>} : vector<8x16xf32>, vector<8x16xf32>, vector<8x8xf32> -> vector<8x8xf32>
    %cst_159 = arith.constant 6.250000e-02 : f32
    %198 = vector.broadcast %cst_159 : f32 to vector<8x8xf32>
    %199 = arith.mulf %197, %198 : vector<8x8xf32>
    %cst_160 = arith.constant dense<0xFF800000> : vector<8xf32>
    %200 = vector.multi_reduction <maximumf>, %199, %cst_160 [1] : vector<8x8xf32> to vector<8xf32>
    %201 = vector.shape_cast %200 : vector<8xf32> to vector<8x1xf32>
    %202 = vector.broadcast %201 : vector<8x1xf32> to vector<8x8xf32>
    %203 = arith.subf %199, %202 : vector<8x8xf32>
    %204 = math.exp %203 : vector<8x8xf32>
    %cst_161 = arith.constant dense<0.000000e+00> : vector<8xf32>
    %205 = vector.multi_reduction <add>, %204, %cst_161 [1] : vector<8x8xf32> to vector<8xf32>
    %206 = vector.shape_cast %205 : vector<8xf32> to vector<8x1xf32>
    %207 = tpu.reciprocal %206 : vector<8x1xf32> -> vector<8x1xf32>
    %208 = vector.broadcast %207 : vector<8x1xf32> to vector<8x8xf32>
    %209 = arith.mulf %204, %208 : vector<8x8xf32>
    %c1_162 = arith.constant 1 : index
    %c0_163 = arith.constant 0 : index
    %c0_164 = arith.constant 0 : index
    %c0_165 = arith.constant 0 : index
    %210 = vector.load %arg20[%c1_162, %c0_163, %c0_164, %c0_165] : memref<2x4x8x8xf32, #tpu.memory_space<vmem>>, vector<1x1x8x8xf32>
    %211 = vector.shape_cast %210 : vector<1x1x8x8xf32> to vector<8x8xf32>
    %212 = vector.shape_cast %209 : vector<8x8xf32> to vector<1x1x8x8xf32>
    tpu.vector_store %arg20[%c1_162, %c0_163, %c0_164, %c0_165], %212 {strides = array<i32>} : memref<2x4x8x8xf32, #tpu.memory_space<vmem>>, vector<1x1x8x8xf32>,
    %cst_166 = arith.constant dense<0.000000e+00> : vector<8x16xf32>
    %213 = tpu.matmul %209, %196, %cst_166 {dimension_numbers = #tpu.dot_dimension_numbers<[1], [0], [0], [1], [0, 0, 1, 1], [], []>} : vector<8x8xf32>, vector<8x16xf32>, vector<8x16xf32> -> vector<8x16xf32>
    %c0_167 = arith.constant 0 : index
    %c0_168 = arith.constant 0 : index
    %c0_169 = arith.constant 0 : index
    %214 = vector.load %arg9[%c0_167, %c0_168, %c0_169] : memref<4x16x32xf32, #tpu.memory_space<vmem>>, vector<1x16x32xf32>
    %215 = vector.shape_cast %214 : vector<1x16x32xf32> to vector<16x32xf32>
    %cst_170 = arith.constant dense<0.000000e+00> : vector<8x32xf32>
    %216 = tpu.matmul %213, %215, %cst_170 {dimension_numbers = #tpu.dot_dimension_numbers<[1], [0], [0], [1], [0, 0, 1, 1], [], []>} : vector<8x16xf32>, vector<16x32xf32>, vector<8x32xf32> -> vector<8x32xf32>
    %c1_171 = arith.constant 1 : index
    %c0_172 = arith.constant 0 : index
    %c0_173 = arith.constant 0 : index
    %217 = vector.load %arg3[%c1_171, %c0_172, %c0_173] : memref<4x32x16xf32, #tpu.memory_space<vmem>>, vector<1x32x16xf32>
    %218 = vector.shape_cast %217 : vector<1x32x16xf32> to vector<32x16xf32>
    %cst_174 = arith.constant dense<0.000000e+00> : vector<8x16xf32>
    %219 = tpu.matmul %175, %218, %cst_174 {dimension_numbers = #tpu.dot_dimension_numbers<[1], [0], [0], [1], [0, 0, 1, 1], [], []>} : vector<8x32xf32>, vector<32x16xf32>, vector<8x16xf32> -> vector<8x16xf32>
    %c1_175 = arith.constant 1 : index
    %c0_176 = arith.constant 0 : index
    %c0_177 = arith.constant 0 : index
    %220 = vector.load %arg4[%c1_175, %c0_176, %c0_177] : memref<4x1x16xf32, #tpu.memory_space<vmem>>, vector<1x1x16xf32>
    %221 = vector.shape_cast %220 : vector<1x1x16xf32> to vector<1x16xf32>
    %222 = vector.broadcast %221 : vector<1x16xf32> to vector<8x16xf32>
    %223 = arith.addf %219, %222 : vector<8x16xf32>
    %c1_178 = arith.constant 1 : index
    %c0_179 = arith.constant 0 : index
    %c0_180 = arith.constant 0 : index
    %224 = vector.load %arg5[%c1_178, %c0_179, %c0_180] : memref<4x32x16xf32, #tpu.memory_space<vmem>>, vector<1x32x16xf32>
    %225 = vector.shape_cast %224 : vector<1x32x16xf32> to vector<32x16xf32>
    %cst_181 = arith.constant dense<0.000000e+00> : vector<8x16xf32>
    %226 = tpu.matmul %6, %225, %cst_181 {dimension_numbers = #tpu.dot_dimension_numbers<[1], [0], [0], [1], [0, 0, 1, 1], [], []>} : vector<8x32xf32>, vector<32x16xf32>, vector<8x16xf32> -> vector<8x16xf32>
    %c1_182 = arith.constant 1 : index
    %c0_183 = arith.constant 0 : index
    %c0_184 = arith.constant 0 : index
    %227 = vector.load %arg6[%c1_182, %c0_183, %c0_184] : memref<4x1x16xf32, #tpu.memory_space<vmem>>, vector<1x1x16xf32>
    %228 = vector.shape_cast %227 : vector<1x1x16xf32> to vector<1x16xf32>
    %229 = vector.broadcast %228 : vector<1x16xf32> to vector<8x16xf32>
    %230 = arith.addf %226, %229 : vector<8x16xf32>
    %c1_185 = arith.constant 1 : index
    %c0_186 = arith.constant 0 : index
    %c0_187 = arith.constant 0 : index
    %231 = vector.load %arg7[%c1_185, %c0_186, %c0_187] : memref<4x32x16xf32, #tpu.memory_space<vmem>>, vector<1x32x16xf32>
    %232 = vector.shape_cast %231 : vector<1x32x16xf32> to vector<32x16xf32>
    %cst_188 = arith.constant dense<0.000000e+00> : vector<8x16xf32>
    %233 = tpu.matmul %6, %232, %cst_188 {dimension_numbers = #tpu.dot_dimension_numbers<[1], [0], [0], [1], [0, 0, 1, 1], [], []>} : vector<8x32xf32>, vector<32x16xf32>, vector<8x16xf32> -> vector<8x16xf32>
    %c1_189 = arith.constant 1 : index
    %c0_190 = arith.constant 0 : index
    %c0_191 = arith.constant 0 : index
    %234 = vector.load %arg8[%c1_189, %c0_190, %c0_191] : memref<4x1x16xf32, #tpu.memory_space<vmem>>, vector<1x1x16xf32>
    %235 = vector.shape_cast %234 : vector<1x1x16xf32> to vector<1x16xf32>
    %236 = vector.broadcast %235 : vector<1x16xf32> to vector<8x16xf32>
    %237 = arith.addf %233, %236 : vector<8x16xf32>
    %cst_192 = arith.constant dense<0.000000e+00> : vector<8x8xf32>
    %238 = tpu.matmul %223, %230, %cst_192 {dimension_numbers = #tpu.dot_dimension_numbers<[1], [1], [0], [0], [0, 0, 1, 0], [], []>} : vector<8x16xf32>, vector<8x16xf32>, vector<8x8xf32> -> vector<8x8xf32>
    %cst_193 = arith.constant 6.250000e-02 : f32
    %239 = vector.broadcast %cst_193 : f32 to vector<8x8xf32>
    %240 = arith.mulf %238, %239 : vector<8x8xf32>
    %cst_194 = arith.constant dense<0xFF800000> : vector<8xf32>
    %241 = vector.multi_reduction <maximumf>, %240, %cst_194 [1] : vector<8x8xf32> to vector<8xf32>
    %242 = vector.shape_cast %241 : vector<8xf32> to vector<8x1xf32>
    %243 = vector.broadcast %242 : vector<8x1xf32> to vector<8x8xf32>
    %244 = arith.subf %240, %243 : vector<8x8xf32>
    %245 = math.exp %244 : vector<8x8xf32>
    %cst_195 = arith.constant dense<0.000000e+00> : vector<8xf32>
    %246 = vector.multi_reduction <add>, %245, %cst_195 [1] : vector<8x8xf32> to vector<8xf32>
    %247 = vector.shape_cast %246 : vector<8xf32> to vector<8x1xf32>
    %248 = tpu.reciprocal %247 : vector<8x1xf32> -> vector<8x1xf32>
    %249 = vector.broadcast %248 : vector<8x1xf32> to vector<8x8xf32>
    %250 = arith.mulf %245, %249 : vector<8x8xf32>
    %c1_196 = arith.constant 1 : index
    %c1_197 = arith.constant 1 : index
    %c0_198 = arith.constant 0 : index
    %c0_199 = arith.constant 0 : index
    %251 = vector.load %arg20[%c1_196, %c1_197, %c0_198, %c0_199] : memref<2x4x8x8xf32, #tpu.memory_space<vmem>>, vector<1x1x8x8xf32>
    %252 = vector.shape_cast %251 : vector<1x1x8x8xf32> to vector<8x8xf32>
    %253 = vector.shape_cast %250 : vector<8x8xf32> to vector<1x1x8x8xf32>
    tpu.vector_store %arg20[%c1_196, %c1_197, %c0_198, %c0_199], %253 {strides = array<i32>} : memref<2x4x8x8xf32, #tpu.memory_space<vmem>>, vector<1x1x8x8xf32>,
    %cst_200 = arith.constant dense<0.000000e+00> : vector<8x16xf32>
    %254 = tpu.matmul %250, %237, %cst_200 {dimension_numbers = #tpu.dot_dimension_numbers<[1], [0], [0], [1], [0, 0, 1, 1], [], []>} : vector<8x8xf32>, vector<8x16xf32>, vector<8x16xf32> -> vector<8x16xf32>
    %c1_201 = arith.constant 1 : index
    %c0_202 = arith.constant 0 : index
    %c0_203 = arith.constant 0 : index
    %255 = vector.load %arg9[%c1_201, %c0_202, %c0_203] : memref<4x16x32xf32, #tpu.memory_space<vmem>>, vector<1x16x32xf32>
    %256 = vector.shape_cast %255 : vector<1x16x32xf32> to vector<16x32xf32>
    %cst_204 = arith.constant dense<0.000000e+00> : vector<8x32xf32>
    %257 = tpu.matmul %254, %256, %cst_204 {dimension_numbers = #tpu.dot_dimension_numbers<[1], [0], [0], [1], [0, 0, 1, 1], [], []>} : vector<8x16xf32>, vector<16x32xf32>, vector<8x32xf32> -> vector<8x32xf32>
    %258 = arith.addf %216, %257 : vector<8x32xf32>
    %c2_205 = arith.constant 2 : index
    %c0_206 = arith.constant 0 : index
    %c0_207 = arith.constant 0 : index
    %259 = vector.load %arg3[%c2_205, %c0_206, %c0_207] : memref<4x32x16xf32, #tpu.memory_space<vmem>>, vector<1x32x16xf32>
    %260 = vector.shape_cast %259 : vector<1x32x16xf32> to vector<32x16xf32>
    %cst_208 = arith.constant dense<0.000000e+00> : vector<8x16xf32>
    %261 = tpu.matmul %175, %260, %cst_208 {dimension_numbers = #tpu.dot_dimension_numbers<[1], [0], [0], [1], [0, 0, 1, 1], [], []>} : vector<8x32xf32>, vector<32x16xf32>, vector<8x16xf32> -> vector<8x16xf32>
    %c2_209 = arith.constant 2 : index
    %c0_210 = arith.constant 0 : index
    %c0_211 = arith.constant 0 : index
    %262 = vector.load %arg4[%c2_209, %c0_210, %c0_211] : memref<4x1x16xf32, #tpu.memory_space<vmem>>, vector<1x1x16xf32>
    %263 = vector.shape_cast %262 : vector<1x1x16xf32> to vector<1x16xf32>
    %264 = vector.broadcast %263 : vector<1x16xf32> to vector<8x16xf32>
    %265 = arith.addf %261, %264 : vector<8x16xf32>
    %c2_212 = arith.constant 2 : index
    %c0_213 = arith.constant 0 : index
    %c0_214 = arith.constant 0 : index
    %266 = vector.load %arg5[%c2_212, %c0_213, %c0_214] : memref<4x32x16xf32, #tpu.memory_space<vmem>>, vector<1x32x16xf32>
    %267 = vector.shape_cast %266 : vector<1x32x16xf32> to vector<32x16xf32>
    %cst_215 = arith.constant dense<0.000000e+00> : vector<8x16xf32>
    %268 = tpu.matmul %6, %267, %cst_215 {dimension_numbers = #tpu.dot_dimension_numbers<[1], [0], [0], [1], [0, 0, 1, 1], [], []>} : vector<8x32xf32>, vector<32x16xf32>, vector<8x16xf32> -> vector<8x16xf32>
    %c2_216 = arith.constant 2 : index
    %c0_217 = arith.constant 0 : index
    %c0_218 = arith.constant 0 : index
    %269 = vector.load %arg6[%c2_216, %c0_217, %c0_218] : memref<4x1x16xf32, #tpu.memory_space<vmem>>, vector<1x1x16xf32>
    %270 = vector.shape_cast %269 : vector<1x1x16xf32> to vector<1x16xf32>
    %271 = vector.broadcast %270 : vector<1x16xf32> to vector<8x16xf32>
    %272 = arith.addf %268, %271 : vector<8x16xf32>
    %c2_219 = arith.constant 2 : index
    %c0_220 = arith.constant 0 : index
    %c0_221 = arith.constant 0 : index
    %273 = vector.load %arg7[%c2_219, %c0_220, %c0_221] : memref<4x32x16xf32, #tpu.memory_space<vmem>>, vector<1x32x16xf32>
    %274 = vector.shape_cast %273 : vector<1x32x16xf32> to vector<32x16xf32>
    %cst_222 = arith.constant dense<0.000000e+00> : vector<8x16xf32>
    %275 = tpu.matmul %6, %274, %cst_222 {dimension_numbers = #tpu.dot_dimension_numbers<[1], [0], [0], [1], [0, 0, 1, 1], [], []>} : vector<8x32xf32>, vector<32x16xf32>, vector<8x16xf32> -> vector<8x16xf32>
    %c2_223 = arith.constant 2 : index
    %c0_224 = arith.constant 0 : index
    %c0_225 = arith.constant 0 : index
    %276 = vector.load %arg8[%c2_223, %c0_224, %c0_225] : memref<4x1x16xf32, #tpu.memory_space<vmem>>, vector<1x1x16xf32>
    %277 = vector.shape_cast %276 : vector<1x1x16xf32> to vector<1x16xf32>
    %278 = vector.broadcast %277 : vector<1x16xf32> to vector<8x16xf32>
    %279 = arith.addf %275, %278 : vector<8x16xf32>
    %cst_226 = arith.constant dense<0.000000e+00> : vector<8x8xf32>
    %280 = tpu.matmul %265, %272, %cst_226 {dimension_numbers = #tpu.dot_dimension_numbers<[1], [1], [0], [0], [0, 0, 1, 0], [], []>} : vector<8x16xf32>, vector<8x16xf32>, vector<8x8xf32> -> vector<8x8xf32>
    %cst_227 = arith.constant 6.250000e-02 : f32
    %281 = vector.broadcast %cst_227 : f32 to vector<8x8xf32>
    %282 = arith.mulf %280, %281 : vector<8x8xf32>
    %cst_228 = arith.constant dense<0xFF800000> : vector<8xf32>
    %283 = vector.multi_reduction <maximumf>, %282, %cst_228 [1] : vector<8x8xf32> to vector<8xf32>
    %284 = vector.shape_cast %283 : vector<8xf32> to vector<8x1xf32>
    %285 = vector.broadcast %284 : vector<8x1xf32> to vector<8x8xf32>
    %286 = arith.subf %282, %285 : vector<8x8xf32>
    %287 = math.exp %286 : vector<8x8xf32>
    %cst_229 = arith.constant dense<0.000000e+00> : vector<8xf32>
    %288 = vector.multi_reduction <add>, %287, %cst_229 [1] : vector<8x8xf32> to vector<8xf32>
    %289 = vector.shape_cast %288 : vector<8xf32> to vector<8x1xf32>
    %290 = tpu.reciprocal %289 : vector<8x1xf32> -> vector<8x1xf32>
    %291 = vector.broadcast %290 : vector<8x1xf32> to vector<8x8xf32>
    %292 = arith.mulf %287, %291 : vector<8x8xf32>
    %c1_230 = arith.constant 1 : index
    %c2_231 = arith.constant 2 : index
    %c0_232 = arith.constant 0 : index
    %c0_233 = arith.constant 0 : index
    %293 = vector.load %arg20[%c1_230, %c2_231, %c0_232, %c0_233] : memref<2x4x8x8xf32, #tpu.memory_space<vmem>>, vector<1x1x8x8xf32>
    %294 = vector.shape_cast %293 : vector<1x1x8x8xf32> to vector<8x8xf32>
    %295 = vector.shape_cast %292 : vector<8x8xf32> to vector<1x1x8x8xf32>
    tpu.vector_store %arg20[%c1_230, %c2_231, %c0_232, %c0_233], %295 {strides = array<i32>} : memref<2x4x8x8xf32, #tpu.memory_space<vmem>>, vector<1x1x8x8xf32>,
    %cst_234 = arith.constant dense<0.000000e+00> : vector<8x16xf32>
    %296 = tpu.matmul %292, %279, %cst_234 {dimension_numbers = #tpu.dot_dimension_numbers<[1], [0], [0], [1], [0, 0, 1, 1], [], []>} : vector<8x8xf32>, vector<8x16xf32>, vector<8x16xf32> -> vector<8x16xf32>
    %c2_235 = arith.constant 2 : index
    %c0_236 = arith.constant 0 : index
    %c0_237 = arith.constant 0 : index
    %297 = vector.load %arg9[%c2_235, %c0_236, %c0_237] : memref<4x16x32xf32, #tpu.memory_space<vmem>>, vector<1x16x32xf32>
    %298 = vector.shape_cast %297 : vector<1x16x32xf32> to vector<16x32xf32>
    %cst_238 = arith.constant dense<0.000000e+00> : vector<8x32xf32>
    %299 = tpu.matmul %296, %298, %cst_238 {dimension_numbers = #tpu.dot_dimension_numbers<[1], [0], [0], [1], [0, 0, 1, 1], [], []>} : vector<8x16xf32>, vector<16x32xf32>, vector<8x32xf32> -> vector<8x32xf32>
    %300 = arith.addf %258, %299 : vector<8x32xf32>
    %c3_239 = arith.constant 3 : index
    %c0_240 = arith.constant 0 : index
    %c0_241 = arith.constant 0 : index
    %301 = vector.load %arg3[%c3_239, %c0_240, %c0_241] : memref<4x32x16xf32, #tpu.memory_space<vmem>>, vector<1x32x16xf32>
    %302 = vector.shape_cast %301 : vector<1x32x16xf32> to vector<32x16xf32>
    %cst_242 = arith.constant dense<0.000000e+00> : vector<8x16xf32>
    %303 = tpu.matmul %175, %302, %cst_242 {dimension_numbers = #tpu.dot_dimension_numbers<[1], [0], [0], [1], [0, 0, 1, 1], [], []>} : vector<8x32xf32>, vector<32x16xf32>, vector<8x16xf32> -> vector<8x16xf32>
    %c3_243 = arith.constant 3 : index
    %c0_244 = arith.constant 0 : index
    %c0_245 = arith.constant 0 : index
    %304 = vector.load %arg4[%c3_243, %c0_244, %c0_245] : memref<4x1x16xf32, #tpu.memory_space<vmem>>, vector<1x1x16xf32>
    %305 = vector.shape_cast %304 : vector<1x1x16xf32> to vector<1x16xf32>
    %306 = vector.broadcast %305 : vector<1x16xf32> to vector<8x16xf32>
    %307 = arith.addf %303, %306 : vector<8x16xf32>
    %c3_246 = arith.constant 3 : index
    %c0_247 = arith.constant 0 : index
    %c0_248 = arith.constant 0 : index
    %308 = vector.load %arg5[%c3_246, %c0_247, %c0_248] : memref<4x32x16xf32, #tpu.memory_space<vmem>>, vector<1x32x16xf32>
    %309 = vector.shape_cast %308 : vector<1x32x16xf32> to vector<32x16xf32>
    %cst_249 = arith.constant dense<0.000000e+00> : vector<8x16xf32>
    %310 = tpu.matmul %6, %309, %cst_249 {dimension_numbers = #tpu.dot_dimension_numbers<[1], [0], [0], [1], [0, 0, 1, 1], [], []>} : vector<8x32xf32>, vector<32x16xf32>, vector<8x16xf32> -> vector<8x16xf32>
    %c3_250 = arith.constant 3 : index
    %c0_251 = arith.constant 0 : index
    %c0_252 = arith.constant 0 : index
    %311 = vector.load %arg6[%c3_250, %c0_251, %c0_252] : memref<4x1x16xf32, #tpu.memory_space<vmem>>, vector<1x1x16xf32>
    %312 = vector.shape_cast %311 : vector<1x1x16xf32> to vector<1x16xf32>
    %313 = vector.broadcast %312 : vector<1x16xf32> to vector<8x16xf32>
    %314 = arith.addf %310, %313 : vector<8x16xf32>
    %c3_253 = arith.constant 3 : index
    %c0_254 = arith.constant 0 : index
    %c0_255 = arith.constant 0 : index
    %315 = vector.load %arg7[%c3_253, %c0_254, %c0_255] : memref<4x32x16xf32, #tpu.memory_space<vmem>>, vector<1x32x16xf32>
    %316 = vector.shape_cast %315 : vector<1x32x16xf32> to vector<32x16xf32>
    %cst_256 = arith.constant dense<0.000000e+00> : vector<8x16xf32>
    %317 = tpu.matmul %6, %316, %cst_256 {dimension_numbers = #tpu.dot_dimension_numbers<[1], [0], [0], [1], [0, 0, 1, 1], [], []>} : vector<8x32xf32>, vector<32x16xf32>, vector<8x16xf32> -> vector<8x16xf32>
    %c3_257 = arith.constant 3 : index
    %c0_258 = arith.constant 0 : index
    %c0_259 = arith.constant 0 : index
    %318 = vector.load %arg8[%c3_257, %c0_258, %c0_259] : memref<4x1x16xf32, #tpu.memory_space<vmem>>, vector<1x1x16xf32>
    %319 = vector.shape_cast %318 : vector<1x1x16xf32> to vector<1x16xf32>
    %320 = vector.broadcast %319 : vector<1x16xf32> to vector<8x16xf32>
    %321 = arith.addf %317, %320 : vector<8x16xf32>
    %cst_260 = arith.constant dense<0.000000e+00> : vector<8x8xf32>
    %322 = tpu.matmul %307, %314, %cst_260 {dimension_numbers = #tpu.dot_dimension_numbers<[1], [1], [0], [0], [0, 0, 1, 0], [], []>} : vector<8x16xf32>, vector<8x16xf32>, vector<8x8xf32> -> vector<8x8xf32>
    %cst_261 = arith.constant 6.250000e-02 : f32
    %323 = vector.broadcast %cst_261 : f32 to vector<8x8xf32>
    %324 = arith.mulf %322, %323 : vector<8x8xf32>
    %cst_262 = arith.constant dense<0xFF800000> : vector<8xf32>
    %325 = vector.multi_reduction <maximumf>, %324, %cst_262 [1] : vector<8x8xf32> to vector<8xf32>
    %326 = vector.shape_cast %325 : vector<8xf32> to vector<8x1xf32>
    %327 = vector.broadcast %326 : vector<8x1xf32> to vector<8x8xf32>
    %328 = arith.subf %324, %327 : vector<8x8xf32>
    %329 = math.exp %328 : vector<8x8xf32>
    %cst_263 = arith.constant dense<0.000000e+00> : vector<8xf32>
    %330 = vector.multi_reduction <add>, %329, %cst_263 [1] : vector<8x8xf32> to vector<8xf32>
    %331 = vector.shape_cast %330 : vector<8xf32> to vector<8x1xf32>
    %332 = tpu.reciprocal %331 : vector<8x1xf32> -> vector<8x1xf32>
    %333 = vector.broadcast %332 : vector<8x1xf32> to vector<8x8xf32>
    %334 = arith.mulf %329, %333 : vector<8x8xf32>
    %c1_264 = arith.constant 1 : index
    %c3_265 = arith.constant 3 : index
    %c0_266 = arith.constant 0 : index
    %c0_267 = arith.constant 0 : index
    %335 = vector.load %arg20[%c1_264, %c3_265, %c0_266, %c0_267] : memref<2x4x8x8xf32, #tpu.memory_space<vmem>>, vector<1x1x8x8xf32>
    %336 = vector.shape_cast %335 : vector<1x1x8x8xf32> to vector<8x8xf32>
    %337 = vector.shape_cast %334 : vector<8x8xf32> to vector<1x1x8x8xf32>
    tpu.vector_store %arg20[%c1_264, %c3_265, %c0_266, %c0_267], %337 {strides = array<i32>} : memref<2x4x8x8xf32, #tpu.memory_space<vmem>>, vector<1x1x8x8xf32>,
    %cst_268 = arith.constant dense<0.000000e+00> : vector<8x16xf32>
    %338 = tpu.matmul %334, %321, %cst_268 {dimension_numbers = #tpu.dot_dimension_numbers<[1], [0], [0], [1], [0, 0, 1, 1], [], []>} : vector<8x8xf32>, vector<8x16xf32>, vector<8x16xf32> -> vector<8x16xf32>
    %c3_269 = arith.constant 3 : index
    %c0_270 = arith.constant 0 : index
    %c0_271 = arith.constant 0 : index
    %339 = vector.load %arg9[%c3_269, %c0_270, %c0_271] : memref<4x16x32xf32, #tpu.memory_space<vmem>>, vector<1x16x32xf32>
    %340 = vector.shape_cast %339 : vector<1x16x32xf32> to vector<16x32xf32>
    %cst_272 = arith.constant dense<0.000000e+00> : vector<8x32xf32>
    %341 = tpu.matmul %338, %340, %cst_272 {dimension_numbers = #tpu.dot_dimension_numbers<[1], [0], [0], [1], [0, 0, 1, 1], [], []>} : vector<8x16xf32>, vector<16x32xf32>, vector<8x32xf32> -> vector<8x32xf32>
    %342 = arith.addf %300, %341 : vector<8x32xf32>
    %343 = tpu.concatenate %174, %342 in 0 : vector<8x32xf32>, vector<8x32xf32> -> vector<16x32xf32>
    %c0_273 = arith.constant 0 : index
    %c0_274 = arith.constant 0 : index
    %344 = vector.load %arg10[%c0_273, %c0_274] : memref<1x32xf32, #tpu.memory_space<vmem>>, vector<1x32xf32>
    %345 = vector.broadcast %344 : vector<1x32xf32> to vector<16x32xf32>
    %346 = arith.addf %343, %345 : vector<16x32xf32>
    %347 = arith.addf %346, %0 : vector<16x32xf32>
    %c0_275 = arith.constant 0 : index
    %c0_276 = arith.constant 0 : index
    %348 = vector.load %arg11[%c0_275, %c0_276] : memref<1x32xf32, #tpu.memory_space<vmem>>, vector<1x32xf32>
    %c0_277 = arith.constant 0 : index
    %c0_278 = arith.constant 0 : index
    %349 = vector.load %arg12[%c0_277, %c0_278] : memref<1x32xf32, #tpu.memory_space<vmem>>, vector<1x32xf32>
    %cst_279 = arith.constant dense<0.000000e+00> : vector<16xf32>
    %350 = vector.multi_reduction <add>, %347, %cst_279 [1] : vector<16x32xf32> to vector<16xf32>
    %351 = vector.shape_cast %350 : vector<16xf32> to vector<16x1xf32>
    %cst_280 = arith.constant 3.200000e+01 : f32
    %352 = vector.broadcast %cst_280 : f32 to vector<16x1xf32>
    %353 = arith.divf %351, %352 : vector<16x1xf32>
    %354 = vector.broadcast %353 : vector<16x1xf32> to vector<16x32xf32>
    %355 = arith.subf %347, %354 : vector<16x32xf32>
    %356 = arith.mulf %355, %355 : vector<16x32xf32>
    %cst_281 = arith.constant dense<0.000000e+00> : vector<16xf32>
    %357 = vector.multi_reduction <add>, %356, %cst_281 [1] : vector<16x32xf32> to vector<16xf32>
    %358 = vector.shape_cast %357 : vector<16xf32> to vector<16x1xf32>
    %cst_282 = arith.constant 3.200000e+01 : f32
    %359 = vector.broadcast %cst_282 : f32 to vector<16x1xf32>
    %360 = arith.divf %358, %359 : vector<16x1xf32>
    %361 = vector.broadcast %353 : vector<16x1xf32> to vector<16x32xf32>
    %362 = arith.subf %347, %361 : vector<16x32xf32>
    %cst_283 = arith.constant 9.99999974E-6 : f32
    %363 = vector.broadcast %cst_283 : f32 to vector<16x1xf32>
    %364 = arith.addf %360, %363 : vector<16x1xf32>
    %365 = math.rsqrt %364 : vector<16x1xf32>
    %366 = vector.broadcast %365 : vector<16x1xf32> to vector<16x32xf32>
    %367 = arith.mulf %362, %366 : vector<16x32xf32>
    %368 = vector.broadcast %348 : vector<1x32xf32> to vector<16x32xf32>
    %369 = arith.mulf %367, %368 : vector<16x32xf32>
    %370 = vector.broadcast %349 : vector<1x32xf32> to vector<16x32xf32>
    %371 = arith.addf %369, %370 : vector<16x32xf32>
    %c0_284 = arith.constant 0 : index
    %c0_285 = arith.constant 0 : index
    %372 = vector.load %arg13[%c0_284, %c0_285] : memref<32x128xf32, #tpu.memory_space<vmem>>, vector<32x128xf32>
    %cst_286 = arith.constant dense<0.000000e+00> : vector<16x128xf32>
    %373 = tpu.matmul %371, %372, %cst_286 {dimension_numbers = #tpu.dot_dimension_numbers<[1], [0], [0], [1], [0, 0, 1, 1], [], []>} : vector<16x32xf32>, vector<32x128xf32>, vector<16x128xf32> -> vector<16x128xf32>
    %c0_287 = arith.constant 0 : index
    %c0_288 = arith.constant 0 : index
    %374 = vector.load %arg14[%c0_287, %c0_288] : memref<1x128xf32, #tpu.memory_space<vmem>>, vector<1x128xf32>
    %375 = vector.broadcast %374 : vector<1x128xf32> to vector<16x128xf32>
    %376 = arith.addf %373, %375 : vector<16x128xf32>
    %c0_289 = arith.constant 0 : index
    %c0_290 = arith.constant 0 : index
    %377 = vector.load %arg15[%c0_289, %c0_290] : memref<128x32xf32, #tpu.memory_space<vmem>>, vector<128x32xf32>
    %cst_291 = arith.constant dense<0.000000e+00> : vector<16x32xf32>
    %378 = tpu.matmul %376, %377, %cst_291 {dimension_numbers = #tpu.dot_dimension_numbers<[1], [0], [0], [1], [0, 0, 1, 1], [], []>} : vector<16x128xf32>, vector<128x32xf32>, vector<16x32xf32> -> vector<16x32xf32>
    %c0_292 = arith.constant 0 : index
    %c0_293 = arith.constant 0 : index
    %379 = vector.load %arg16[%c0_292, %c0_293] : memref<1x32xf32, #tpu.memory_space<vmem>>, vector<1x32xf32>
    %380 = vector.broadcast %379 : vector<1x32xf32> to vector<16x32xf32>
    %381 = arith.addf %378, %380 : vector<16x32xf32>
    %382 = arith.addf %371, %381 : vector<16x32xf32>
    %c0_294 = arith.constant 0 : index
    %c0_295 = arith.constant 0 : index
    %383 = vector.load %arg17[%c0_294, %c0_295] : memref<1x32xf32, #tpu.memory_space<vmem>>, vector<1x32xf32>
    %c0_296 = arith.constant 0 : index
    %c0_297 = arith.constant 0 : index
    %384 = vector.load %arg18[%c0_296, %c0_297] : memref<1x32xf32, #tpu.memory_space<vmem>>, vector<1x32xf32>
    %cst_298 = arith.constant dense<0.000000e+00> : vector<16xf32>
    %385 = vector.multi_reduction <add>, %382, %cst_298 [1] : vector<16x32xf32> to vector<16xf32>
    %386 = vector.shape_cast %385 : vector<16xf32> to vector<16x1xf32>
    %cst_299 = arith.constant 3.200000e+01 : f32
    %387 = vector.broadcast %cst_299 : f32 to vector<16x1xf32>
    %388 = arith.divf %386, %387 : vector<16x1xf32>
    %389 = vector.broadcast %388 : vector<16x1xf32> to vector<16x32xf32>
    %390 = arith.subf %382, %389 : vector<16x32xf32>
    %391 = arith.mulf %390, %390 : vector<16x32xf32>
    %cst_300 = arith.constant dense<0.000000e+00> : vector<16xf32>
    %392 = vector.multi_reduction <add>, %391, %cst_300 [1] : vector<16x32xf32> to vector<16xf32>
    %393 = vector.shape_cast %392 : vector<16xf32> to vector<16x1xf32>
    %cst_301 = arith.constant 3.200000e+01 : f32
    %394 = vector.broadcast %cst_301 : f32 to vector<16x1xf32>
    %395 = arith.divf %393, %394 : vector<16x1xf32>
    %396 = vector.broadcast %388 : vector<16x1xf32> to vector<16x32xf32>
    %397 = arith.subf %382, %396 : vector<16x32xf32>
    %cst_302 = arith.constant 9.99999974E-6 : f32
    %398 = vector.broadcast %cst_302 : f32 to vector<16x1xf32>
    %399 = arith.addf %395, %398 : vector<16x1xf32>
    %400 = math.rsqrt %399 : vector<16x1xf32>
    %401 = vector.broadcast %400 : vector<16x1xf32> to vector<16x32xf32>
    %402 = arith.mulf %397, %401 : vector<16x32xf32>
    %403 = vector.broadcast %383 : vector<1x32xf32> to vector<16x32xf32>
    %404 = arith.mulf %402, %403 : vector<16x32xf32>
    %405 = vector.broadcast %384 : vector<1x32xf32> to vector<16x32xf32>
    %406 = arith.addf %404, %405 : vector<16x32xf32>
    %407 = tpu.concatenate %3, %6 in 0 : vector<8x32xf32>, vector<8x32xf32> -> vector<16x32xf32>
    %408 = arith.addf %406, %407 : vector<16x32xf32>
    %c0_303 = arith.constant 0 : index
    %c0_304 = arith.constant 0 : index
    %409 = vector.load %arg19[%c0_303, %c0_304] : memref<16x32xf32, #tpu.memory_space<vmem>>, vector<16x32xf32>
    tpu.vector_store %arg19[%c0_303, %c0_304], %408 {strides = array<i32>} : memref<16x32xf32, #tpu.memory_space<vmem>>, vector<16x32xf32>,
    return
  }
  func.func @transform_0(%arg0: i32) -> (i32, i32) {
    %c0_i32 = arith.constant 0 : i32
    %c0_i32_0 = arith.constant 0 : i32
    %c0_i32_1 = arith.constant 0 : i32
    return %c0_i32, %c0_i32_0 : i32, i32
  }
  func.func @transform_1(%arg0: i32) -> (i32, i32) {
    %c0_i32 = arith.constant 0 : i32
    %c0_i32_0 = arith.constant 0 : i32
    %c0_i32_1 = arith.constant 0 : i32
    return %c0_i32, %c0_i32_0 : i32, i32
  }
  func.func @transform_2(%arg0: i32) -> (i32, i32, i32) {
    %c0_i32 = arith.constant 0 : i32
    %c0_i32_0 = arith.constant 0 : i32
    %c0_i32_1 = arith.constant 0 : i32
    %c0_i32_2 = arith.constant 0 : i32
    return %c0_i32, %c0_i32_0, %c0_i32_1 : i32, i32, i32
  }
  func.func @transform_3(%arg0: i32) -> (i32, i32, i32) {
    %c0_i32 = arith.constant 0 : i32
    %c0_i32_0 = arith.constant 0 : i32
    %c0_i32_1 = arith.constant 0 : i32
    %c0_i32_2 = arith.constant 0 : i32
    return %c0_i32, %c0_i32_0, %c0_i32_1 : i32, i32, i32
  }
  func.func @transform_4(%arg0: i32) -> (i32, i32, i32) {
    %c0_i32 = arith.constant 0 : i32
    %c0_i32_0 = arith.constant 0 : i32
    %c0_i32_1 = arith.constant 0 : i32
    %c0_i32_2 = arith.constant 0 : i32
    return %c0_i32, %c0_i32_0, %c0_i32_1 : i32, i32, i32
  }
  func.func @transform_5(%arg0: i32) -> (i32, i32, i32) {
    %c0_i32 = arith.constant 0 : i32
    %c0_i32_0 = arith.constant 0 : i32
    %c0_i32_1 = arith.constant 0 : i32
    %c0_i32_2 = arith.constant 0 : i32
    return %c0_i32, %c0_i32_0, %c0_i32_1 : i32, i32, i32
  }
  func.func @transform_6(%arg0: i32) -> (i32, i32, i32) {
    %c0_i32 = arith.constant 0 : i32
    %c0_i32_0 = arith.constant 0 : i32
    %c0_i32_1 = arith.constant 0 : i32
    %c0_i32_2 = arith.constant 0 : i32
    return %c0_i32, %c0_i32_0, %c0_i32_1 : i32, i32, i32
  }
  func.func @transform_7(%arg0: i32) -> (i32, i32, i32) {
    %c0_i32 = arith.constant 0 : i32
    %c0_i32_0 = arith.constant 0 : i32
    %c0_i32_1 = arith.constant 0 : i32
    %c0_i32_2 = arith.constant 0 : i32
    return %c0_i32, %c0_i32_0, %c0_i32_1 : i32, i32, i32
  }
  func.func @transform_8(%arg0: i32) -> (i32, i32, i32) {
    %c0_i32 = arith.constant 0 : i32
    %c0_i32_0 = arith.constant 0 : i32
    %c0_i32_1 = arith.constant 0 : i32
    %c0_i32_2 = arith.constant 0 : i32
    return %c0_i32, %c0_i32_0, %c0_i32_1 : i32, i32, i32
  }
  func.func @transform_9(%arg0: i32) -> (i32, i32) {
    %c0_i32 = arith.constant 0 : i32
    %c0_i32_0 = arith.constant 0 : i32
    %c0_i32_1 = arith.constant 0 : i32
    return %c0_i32, %c0_i32_0 : i32, i32
  }
  func.func @transform_10(%arg0: i32) -> (i32, i32) {
    %c0_i32 = arith.constant 0 : i32
    %c0_i32_0 = arith.constant 0 : i32
    %c0_i32_1 = arith.constant 0 : i32
    return %c0_i32, %c0_i32_0 : i32, i32
  }
  func.func @transform_11(%arg0: i32) -> (i32, i32) {
    %c0_i32 = arith.constant 0 : i32
    %c0_i32_0 = arith.constant 0 : i32
    %c0_i32_1 = arith.constant 0 : i32
    return %c0_i32, %c0_i32_0 : i32, i32
  }
  func.func @transform_12(%arg0: i32) -> (i32, i32) {
    %c0_i32 = arith.constant 0 : i32
    %c0_i32_0 = arith.constant 0 : i32
    %c0_i32_1 = arith.constant 0 : i32
    return %c0_i32, %c0_i32_0 : i32, i32
  }
  func.func @transform_13(%arg0: i32) -> (i32, i32) {
    %c0_i32 = arith.constant 0 : i32
    %c0_i32_0 = arith.constant 0 : i32
    %c0_i32_1 = arith.constant 0 : i32
    return %c0_i32, %c0_i32_0 : i32, i32
  }
  func.func @transform_14(%arg0: i32) -> (i32, i32) {
    %c0_i32 = arith.constant 0 : i32
    %c0_i32_0 = arith.constant 0 : i32
    %c0_i32_1 = arith.constant 0 : i32
    return %c0_i32, %c0_i32_0 : i32, i32
  }
  func.func @transform_15(%arg0: i32) -> (i32, i32) {
    %c0_i32 = arith.constant 0 : i32
    %c0_i32_0 = arith.constant 0 : i32
    %c0_i32_1 = arith.constant 0 : i32
    return %c0_i32, %c0_i32_0 : i32, i32
  }
  func.func @transform_16(%arg0: i32) -> (i32, i32) {
    %c0_i32 = arith.constant 0 : i32
    %c0_i32_0 = arith.constant 0 : i32
    %c0_i32_1 = arith.constant 0 : i32
    return %c0_i32, %c0_i32_0 : i32, i32
  }
  func.func @transform_17(%arg0: i32) -> (i32, i32) {
    %c0_i32 = arith.constant 0 : i32
    %c0_i32_0 = arith.constant 0 : i32
    %c0_i32_1 = arith.constant 0 : i32
    return %c0_i32, %c0_i32_0 : i32, i32
  }
  func.func @transform_18(%arg0: i32) -> (i32, i32) {
    %c0_i32 = arith.constant 0 : i32
    %c0_i32_0 = arith.constant 0 : i32
    %c0_i32_1 = arith.constant 0 : i32
    return %c0_i32, %c0_i32_0 : i32, i32
  }
  func.func @transform_19(%arg0: i32) -> (i32, i32, i32, i32) {
    %c0_i32 = arith.constant 0 : i32
    %c0_i32_0 = arith.constant 0 : i32
    %c0_i32_1 = arith.constant 0 : i32
    %c0_i32_2 = arith.constant 0 : i32
    %c0_i32_3 = arith.constant 0 : i32
    return %c0_i32, %c0_i32_0, %c0_i32_1, %c0_i32_2 : i32, i32, i32, i32
  }
}

</mosaic_0001>

<llo_original>
// kernel: mha_residual.1
$region0: #{mha_residual.1}
  #allocation0 [shape = 'u32[]', space=smem, size = 0x4, offset = 0x4, fixed_abs, tag = 'smem constant byte address 0x4 - core index']
  #allocation1 [shape = 'u32[144,128]{1,0:T(1,128)}', space=vmem, size = 0x12000, scoped, tag = 'internal scratch']
  %s0 = inlined_call_operand.vmem [shape: f32[16,32], index: 0, kind: input, shape index: {}]
  %s1 = inlined_call_operand.vmem [shape: f32[2,32], index: 1, kind: input, shape index: {}]
  %s2 = inlined_call_operand.vmem [shape: f32[4,32,16], index: 2, kind: input, shape index: {}]
  %s3 = inlined_call_operand.vmem [shape: f32[4,1,16], index: 3, kind: input, shape index: {}]
  %s4 = inlined_call_operand.vmem [shape: f32[4,32,16], index: 4, kind: input, shape index: {}]
  %s5 = inlined_call_operand.vmem [shape: f32[4,1,16], index: 5, kind: input, shape index: {}]
  %s6 = inlined_call_operand.vmem [shape: f32[4,32,16], index: 6, kind: input, shape index: {}]
  %s7 = inlined_call_operand.vmem [shape: f32[4,1,16], index: 7, kind: input, shape index: {}]
  %s8 = inlined_call_operand.vmem [shape: f32[4,16,32], index: 8, kind: input, shape index: {}]
  %s9 = inlined_call_operand.vmem [shape: f32[1,32], index: 9, kind: input, shape index: {}]
  %s10 = inlined_call_operand.vmem [shape: f32[1,32], index: 10, kind: input, shape index: {}]
  %s11 = inlined_call_operand.vmem [shape: f32[1,32], index: 11, kind: input, shape index: {}]
  %s12 = inlined_call_operand.vmem [shape: f32[32,128], index: 12, kind: input, shape index: {}]
  %s13 = inlined_call_operand.vmem [shape: f32[1,128], index: 13, kind: input, shape index: {}]
  %s14 = inlined_call_operand.vmem [shape: f32[128,32], index: 14, kind: input, shape index: {}]
  %s15 = inlined_call_operand.vmem [shape: f32[1,32], index: 15, kind: input, shape index: {}]
  %s16 = inlined_call_operand.vmem [shape: f32[1,32], index: 16, kind: input, shape index: {}]
  %s17 = inlined_call_operand.vmem [shape: f32[1,32], index: 17, kind: input, shape index: {}]
  %s18 = inlined_call_operand.hbm [shape: f32[16,32], index: 18, kind: output, shape index: {0}]
  %s19 = inlined_call_operand.hbm [shape: f32[2,4,8,8], index: 19, kind: output, shape index: {1}]
  %20 = xla_tuple %s18, %s19
  %s21 = sld [smem:[#allocation0]]
  $region90: #{mha_residual.1} parent=0
    _
  %s23 = ssub.s32 1, %s21
  %s24 = scalar_select 0, %s23, %s21
  $region1: #{mha_residual.1} parent=0
    #allocation2 [shape = 'u8[8192]{0}', space=vmem, size = 0x2000, scoped, tag = 'output window, operand 0, single buffered']
    #allocation3 [shape = 's32[1]{0}', space=sflag, size = 0x4, scoped, tag = 'scoped memory for mha_residual.1']
    #allocation4 [shape = 'u8[32768]{0}', space=vmem, size = 0x8000, scoped, tag = 'output window, operand 1, single buffered']
    #allocation5 [shape = 's32[1]{0}', space=sflag, size = 0x4, scoped, tag = 'scoped memory for mha_residual.1']
    %25 = vsyncpa [#allocation3], 0
    %26 = vsyncpa [#allocation5], 0
    // Predicated region
    $region2: #{mha_residual.1} parent=1 // pred_check
      _
    $region3: #{mha_residual.1} parent=1 // pred_check_branch
      %28 = sbr.rel (0) target = $region5
    $region4: #{mha_residual.1} parent=1 // pred_region
      _
    $region5: #{mha_residual.1} parent=1 // pred_fallthru
      _
    // Predicated region
    $region6: #{mha_residual.1} parent=1 // pred_check
      _
    $region7: #{mha_residual.1} parent=1 // pred_check_branch
      %30 = sbr.rel (0) target = $region9
    $region8: #{mha_residual.1} parent=1 // pred_region
      _
    $region9: #{mha_residual.1} parent=1 // pred_fallthru
      _
    // Predicated region
    $region10: #{mha_residual.1} parent=1 // pred_check
      _
    $region11: #{mha_residual.1} parent=1 // pred_check_branch
      %32 = sbr.rel (0) target = $region13
    $region12: #{mha_residual.1} parent=1 // pred_region
      _
    $region13: #{mha_residual.1} parent=1 // pred_fallthru
      _
    // Predicated region
    $region14: #{mha_residual.1} parent=1 // pred_check
      _
    $region15: #{mha_residual.1} parent=1 // pred_check_branch
      %34 = sbr.rel (0) target = $region17
    $region16: #{mha_residual.1} parent=1 // pred_region
      _
    $region17: #{mha_residual.1} parent=1 // pred_fallthru
      _
    // Predicated region
    $region18: #{mha_residual.1} parent=1 // pred_check
      _
    $region19: #{mha_residual.1} parent=1 // pred_check_branch
      %36 = sbr.rel (0) target = $region21
    $region20: #{mha_residual.1} parent=1 // pred_region
      _
    $region21: #{mha_residual.1} parent=1 // pred_fallthru
      _
    // Predicated region
    $region22: #{mha_residual.1} parent=1 // pred_check
      _
    $region23: #{mha_residual.1} parent=1 // pred_check_branch
      %38 = sbr.rel (0) target = $region25
    $region24: #{mha_residual.1} parent=1 // pred_region
      _
    $region25: #{mha_residual.1} parent=1 // pred_fallthru
      _
    // Predicated region
    $region26: #{mha_residual.1} parent=1 // pred_check
      _
    $region27: #{mha_residual.1} parent=1 // pred_check_branch
      %40 = sbr.rel (0) target = $region29
    $region28: #{mha_residual.1} parent=1 // pred_region
      _
    $region29: #{mha_residual.1} parent=1 // pred_fallthru
      _
    // Predicated region
    $region30: #{mha_residual.1} parent=1 // pred_check
      _
    $region31: #{mha_residual.1} parent=1 // pred_check_branch
      %42 = sbr.rel (0) target = $region33
    $region32: #{mha_residual.1} parent=1 // pred_region
      _
    $region33: #{mha_residual.1} parent=1 // pred_fallthru
      _
    // Predicated region
    $region34: #{mha_residual.1} parent=1 // pred_check
      _
    $region35: #{mha_residual.1} parent=1 // pred_check_branch
      %44 = sbr.rel (0) target = $region37
    $region36: #{mha_residual.1} parent=1 // pred_region
      _
    $region37: #{mha_residual.1} parent=1 // pred_fallthru
      _
    // Predicated region
    $region38: #{mha_residual.1} parent=1 // pred_check
      _
    $region39: #{mha_residual.1} parent=1 // pred_check_branch
      %46 = sbr.rel (0) target = $region41
    $region40: #{mha_residual.1} parent=1 // pred_region
      _
    $region41: #{mha_residual.1} parent=1 // pred_fallthru
      _
    // Predicated region
    $region42: #{mha_residual.1} parent=1 // pred_check
      _
    $region43: #{mha_residual.1} parent=1 // pred_check_branch
      %48 = sbr.rel (0) target = $region45
    $region44: #{mha_residual.1} parent=1 // pred_region
      _
    $region45: #{mha_residual.1} parent=1 // pred_fallthru
      _
    // Predicated region
    $region46: #{mha_residual.1} parent=1 // pred_check
      _
    $region47: #{mha_residual.1} parent=1 // pred_check_branch
      %50 = sbr.rel (0) target = $region49
    $region48: #{mha_residual.1} parent=1 // pred_region
      _
    $region49: #{mha_residual.1} parent=1 // pred_fallthru
      _
    // Predicated region
    $region50: #{mha_residual.1} parent=1 // pred_check
      _
    $region51: #{mha_residual.1} parent=1 // pred_check_branch
      %52 = sbr.rel (0) target = $region53
    $region52: #{mha_residual.1} parent=1 // pred_region
      _
    $region53: #{mha_residual.1} parent=1 // pred_fallthru
      _
    // Predicated region
    $region54: #{mha_residual.1} parent=1 // pred_check
      _
    $region55: #{mha_residual.1} parent=1 // pred_check_branch
      %54 = sbr.rel (0) target = $region57
    $region56: #{mha_residual.1} parent=1 // pred_region
      _
    $region57: #{mha_residual.1} parent=1 // pred_fallthru
      _
    // Predicated region
    $region58: #{mha_residual.1} parent=1 // pred_check
      _
    $region59: #{mha_residual.1} parent=1 // pred_check_branch
      %56 = sbr.rel (0) target = $region61
    $region60: #{mha_residual.1} parent=1 // pred_region
      _
    $region61: #{mha_residual.1} parent=1 // pred_fallthru
      _
    // Predicated region
    $region62: #{mha_residual.1} parent=1 // pred_check
      _
    $region63: #{mha_residual.1} parent=1 // pred_check_branch
      %58 = sbr.rel (0) target = $region65
    $region64: #{mha_residual.1} parent=1 // pred_region
      _
    $region65: #{mha_residual.1} parent=1 // pred_fallthru
      _
    // Predicated region
    $region66: #{mha_residual.1} parent=1 // pred_check
      _
    $region67: #{mha_residual.1} parent=1 // pred_check_branch
      %60 = sbr.rel (0) target = $region69
    $region68: #{mha_residual.1} parent=1 // pred_region
      _
    $region69: #{mha_residual.1} parent=1 // pred_fallthru
      _
    // Predicated region
    $region70: #{mha_residual.1} parent=1 // pred_check
      _
    $region71: #{mha_residual.1} parent=1 // pred_check_branch
      %62 = sbr.rel (0) target = $region73
    $region72: #{mha_residual.1} parent=1 // pred_region
      _
    $region73: #{mha_residual.1} parent=1 // pred_fallthru
      _
    %v63 = vld [vmem:[%s0] sm:$0xff]
    %v64 = vld [vmem:[%s0 + $0x8] sm:$0xff]
    %v65 = vld [vmem:[%s1] sm:$0x1]
    %v66 = vlaneseq
    %v67 = vshrl.u32 %v66, 7
    %v68 = vsub.s32 0, %v67
    %v69 = vrot.slane %v65, %v68
    %v70 = vld [vmem:[%s1 + $0x1] sm:$0x1]
    %v71 = vlaneseq
    %v72 = vshrl.u32 %v71, 7
    %v73 = vsub.s32 0, %v72
    %v74 = vrot.slane %v70, %v73
    %v75 = vld [vmem:[%s2] sm:$0xff]
    %v76 = vld [vmem:[%s2 + $0x8] sm:$0xff]
    %v77 = vld [vmem:[%s2 + $0x10] sm:$0xff]
    %v78 = vld [vmem:[%s2 + $0x18] sm:$0xff]
    %v79 = vld [vmem:[%s3] sm:$0x1]
    %v81 = vlaneseq
    %v82 = vshrl.u32 %v81, 7
    %v83 = vsub.s32 0, %v82
    %v84 = vrot.slane %v79, %v83
    %vm86 = vcmask 261120
    %v88 = vsel %vm86, %v63, 0
    %90 = vmatprep.subr.mxu0 0.0
    %91 = vmatpush1.msra.mxu0 %v75
    %92 = vmatprep.subr.mxu0 0.0
    %93 = vmatpush1.msra.mxu0 %v76
    %94 = vmatprep.subr.mxu0 0.0
    %95 = vmatpush1.msra.mxu0 %v77
    %96 = vmatprep.subr.mxu0 0.0
    %97 = vmatpush1.msra.mxu0 %v78
    %98 = vmatprep.subr.mxu0 0.0
    %99 = vmatpush1.msra.mxu0 0.0
    %100 = vmatprep.subr.mxu0 0.0
    %101 = vmatpush1.msra.mxu0 0.0
    %102 = vmatprep.subr.mxu0 0.0
    %103 = vmatpush1.msra.mxu0 0.0
    %104 = vmatprep.subr.mxu0 0.0
    %105 = vmatpush1.msra.mxu0 0.0
    %106 = vmatprep.subr.mxu0 0.0
    %107 = vmatpush1.msra.mxu0 0.0
    %108 = vmatprep.subr.mxu0 0.0
    %109 = vmatpush1.msra.mxu0 0.0
    %110 = vmatprep.subr.mxu0 0.0
    %111 = vmatpush1.msra.mxu0 0.0
    %112 = vmatprep.subr.mxu0 0.0
    %113 = vmatpush1.msra.mxu0 0.0
    %114 = vmatprep.subr.mxu0 0.0
    %115 = vmatpush1.msra.mxu0 0.0
    %116 = vmatprep.subr.mxu0 0.0
    %117 = vmatpush1.msra.mxu0 0.0
    %118 = vmatprep.subr.mxu0 0.0
    %119 = vmatpush1.msra.mxu0 0.0
    %120 = vmatprep.subr.mxu0 0.0
    %121 = vmatpush1.msra.mxu0 0.0
    %122 = vmatprep.subr.mxu0 0.0
    %123 = vmatpush1.msra.mxu0 0.0
    %124 = vmatprep.subr.mxu0 0.0
    %125 = vmatpush1.msra.mxu0 0.0
    %126 = vmatprep.subr.mxu0 0.0
    %127 = vmatpush1.msra.mxu0 0.0
    %128 = vmatprep.subr.mxu0 0.0
    %129 = vmatpush1.msra.mxu0 0.0
    %130 = vmatprep.subr.mxu0 0.0
    %131 = vmatpush1.msra.mxu0 0.0
    %132 = vmatprep.subr.mxu0 0.0
    %133 = vmatpush1.msra.mxu0 0.0
    %134 = vmatprep.subr.mxu0 0.0
    %135 = vmatpush1.msra.mxu0 0.0
    %136 = vmatprep.subr.mxu0 0.0
    %137 = vmatpush1.msra.mxu0 0.0
    %138 = vmatprep.subr.mxu0 0.0
    %139 = vmatpush1.msra.mxu0 0.0
    %140 = vmatprep.subr.mxu0 0.0
    %141 = vmatpush1.msra.mxu0 0.0
    %142 = vmatprep.subr.mxu0 0.0
    %143 = vmatpush1.msra.mxu0 0.0
    %144 = vmatprep.subr.mxu0 0.0
    %145 = vmatpush1.msra.mxu0 0.0
    %146 = vmatprep.subr.mxu0 0.0
    %147 = vmatpush1.msra.mxu0 0.0
    %148 = vmatprep.subr.mxu0 0.0
    %149 = vmatpush1.msra.mxu0 0.0
    %150 = vmatprep.subr.mxu0 0.0
    %151 = vmatpush1.msra.mxu0 0.0
    %152 = vmatprep.subr.mxu0 0.0
    %153 = vmatpush1.msra.mxu0 0.0
    %154 = vmatprep.mubr.f32.mxu0 0.0
    %155 = vmatmul.mubr.f32.gmra.mrb[0].mxu0 %v88
    %v156 = vpop.f32.mrb[0].mxu0
    %v157 = vadd.f32 %v84, %v156
    %v158 = vpop.f32.mrb[0].mxu0
    %159 = vdwg.mxu0
    %v160 = vld [vmem:[%s4] sm:$0xff]
    %v161 = vld [vmem:[%s4 + $0x8] sm:$0xff]
    %v162 = vld [vmem:[%s4 + $0x10] sm:$0xff]
    %v163 = vld [vmem:[%s4 + $0x18] sm:$0xff]
    %v164 = vld [vmem:[%s5] sm:$0x1]
    %v166 = vlaneseq
    %v167 = vshrl.u32 %v166, 7
    %v168 = vsub.s32 0, %v167
    %v169 = vrot.slane %v164, %v168
    %v172 = vsel %vm86, %v69, 0
    %174 = vmatprep.subr.mxu0 0.0
    %175 = vmatpush1.msra.mxu0 %v160
    %176 = vmatprep.subr.mxu0 0.0
    %177 = vmatpush1.msra.mxu0 %v161
    %178 = vmatprep.subr.mxu0 0.0
    %179 = vmatpush1.msra.mxu0 %v162
    %180 = vmatprep.subr.mxu0 0.0
    %181 = vmatpush1.msra.mxu0 %v163
    %182 = vmatprep.subr.mxu0 0.0
    %183 = vmatpush1.msra.mxu0 0.0
    %184 = vmatprep.subr.mxu0 0.0
    %185 = vmatpush1.msra.mxu0 0.0
    %186 = vmatprep.subr.mxu0 0.0
    %187 = vmatpush1.msra.mxu0 0.0
    %188 = vmatprep.subr.mxu0 0.0
    %189 = vmatpush1.msra.mxu0 0.0
    %190 = vmatprep.subr.mxu0 0.0
    %191 = vmatpush1.msra.mxu0 0.0
    %192 = vmatprep.subr.mxu0 0.0
    %193 = vmatpush1.msra.mxu0 0.0
    %194 = vmatprep.subr.mxu0 0.0
    %195 = vmatpush1.msra.mxu0 0.0
    %196 = vmatprep.subr.mxu0 0.0
    %197 = vmatpush1.msra.mxu0 0.0
    %198 = vmatprep.subr.mxu0 0.0
    %199 = vmatpush1.msra.mxu0 0.0
    %200 = vmatprep.subr.mxu0 0.0
    %201 = vmatpush1.msra.mxu0 0.0
    %202 = vmatprep.subr.mxu0 0.0
    %203 = vmatpush1.msra.mxu0 0.0
    %204 = vmatprep.subr.mxu0 0.0
    %205 = vmatpush1.msra.mxu0 0.0
    %206 = vmatprep.subr.mxu0 0.0
    %207 = vmatpush1.msra.mxu0 0.0
    %208 = vmatprep.subr.mxu0 0.0
    %209 = vmatpush1.msra.mxu0 0.0
    %210 = vmatprep.subr.mxu0 0.0
    %211 = vmatpush1.msra.mxu0 0.0
    %212 = vmatprep.subr.mxu0 0.0
    %213 = vmatpush1.msra.mxu0 0.0
    %214 = vmatprep.subr.mxu0 0.0
    %215 = vmatpush1.msra.mxu0 0.0
    %216 = vmatprep.subr.mxu0 0.0
    %217 = vmatpush1.msra.mxu0 0.0
    %218 = vmatprep.subr.mxu0 0.0
    %219 = vmatpush1.msra.mxu0 0.0
    %220 = vmatprep.subr.mxu0 0.0
    %221 = vmatpush1.msra.mxu0 0.0
    %222 = vmatprep.subr.mxu0 0.0
    %223 = vmatpush1.msra.mxu0 0.0
    %224 = vmatprep.subr.mxu0 0.0
    %225 = vmatpush1.msra.mxu0 0.0
    %226 = vmatprep.subr.mxu0 0.0
    %227 = vmatpush1.msra.mxu0 0.0
    %228 = vmatprep.subr.mxu0 0.0
    %229 = vmatpush1.msra.mxu0 0.0
    %230 = vmatprep.subr.mxu0 0.0
    %231 = vmatpush1.msra.mxu0 0.0
    %232 = vmatprep.subr.mxu0 0.0
    %233 = vmatpush1.msra.mxu0 0.0
    %234 = vmatprep.subr.mxu0 0.0
    %235 = vmatpush1.msra.mxu0 0.0
    %236 = vmatprep.subr.mxu0 0.0
    %237 = vmatpush1.msra.mxu0 0.0
    %238 = vmatprep.mubr.f32.mxu0 0.0
    %239 = vmatmul.mubr.f32.gmra.mrb[0].mxu0 %v172
    %v240 = vpop.f32.mrb[0].mxu0
    %v241 = vadd.f32 %v169, %v240
    %v242 = vpop.f32.mrb[0].mxu0
    %243 = vdwg.mxu0
    %v244 = vld [vmem:[%s6] sm:$0xff]
    %v245 = vld [vmem:[%s6 + $0x8] sm:$0xff]
    %v246 = vld [vmem:[%s6 + $0x10] sm:$0xff]
    %v247 = vld [vmem:[%s6 + $0x18] sm:$0xff]
    %v248 = vld [vmem:[%s7] sm:$0x1]
    %v250 = vlaneseq
    %v251 = vshrl.u32 %v250, 7
    %v252 = vsub.s32 0, %v251
    %v253 = vrot.slane %v248, %v252
    %255 = vmatprep.subr.mxu0 0.0
    %256 = vmatpush1.msra.mxu0 %v244
    %257 = vmatprep.subr.mxu0 0.0
    %258 = vmatpush1.msra.mxu0 %v245
    %259 = vmatprep.subr.mxu0 0.0
    %260 = vmatpush1.msra.mxu0 %v246
    %261 = vmatprep.subr.mxu0 0.0
    %262 = vmatpush1.msra.mxu0 %v247
    %263 = vmatprep.subr.mxu0 0.0
    %264 = vmatpush1.msra.mxu0 0.0
    %265 = vmatprep.subr.mxu0 0.0
    %266 = vmatpush1.msra.mxu0 0.0
    %267 = vmatprep.subr.mxu0 0.0
    %268 = vmatpush1.msra.mxu0 0.0
    %269 = vmatprep.subr.mxu0 0.0
    %270 = vmatpush1.msra.mxu0 0.0
    %271 = vmatprep.subr.mxu0 0.0
    %272 = vmatpush1.msra.mxu0 0.0
    %273 = vmatprep.subr.mxu0 0.0
    %274 = vmatpush1.msra.mxu0 0.0
    %275 = vmatprep.subr.mxu0 0.0
    %276 = vmatpush1.msra.mxu0 0.0
    %277 = vmatprep.subr.mxu0 0.0
    %278 = vmatpush1.msra.mxu0 0.0
    %279 = vmatprep.subr.mxu0 0.0
    %280 = vmatpush1.msra.mxu0 0.0
    %281 = vmatprep.subr.mxu0 0.0
    %282 = vmatpush1.msra.mxu0 0.0
    %283 = vmatprep.subr.mxu0 0.0
    %284 = vmatpush1.msra.mxu0 0.0
    %285 = vmatprep.subr.mxu0 0.0
    %286 = vmatpush1.msra.mxu0 0.0
    %287 = vmatprep.subr.mxu0 0.0
    %288 = vmatpush1.msra.mxu0 0.0
    %289 = vmatprep.subr.mxu0 0.0
    %290 = vmatpush1.msra.mxu0 0.0
    %291 = vmatprep.subr.mxu0 0.0
    %292 = vmatpush1.msra.mxu0 0.0
    %293 = vmatprep.subr.mxu0 0.0
    %294 = vmatpush1.msra.mxu0 0.0
    %295 = vmatprep.subr.mxu0 0.0
    %296 = vmatpush1.msra.mxu0 0.0
    %297 = vmatprep.subr.mxu0 0.0
    %298 = vmatpush1.msra.mxu0 0.0
    %299 = vmatprep.subr.mxu0 0.0
    %300 = vmatpush1.msra.mxu0 0.0
    %301 = vmatprep.subr.mxu0 0.0
    %302 = vmatpush1.msra.mxu0 0.0
    %303 = vmatprep.subr.mxu0 0.0
    %304 = vmatpush1.msra.mxu0 0.0
    %305 = vmatprep.subr.mxu0 0.0
    %306 = vmatpush1.msra.mxu0 0.0
    %307 = vmatprep.subr.mxu0 0.0
    %308 = vmatpush1.msra.mxu0 0.0
    %309 = vmatprep.subr.mxu0 0.0
    %310 = vmatpush1.msra.mxu0 0.0
    %311 = vmatprep.subr.mxu0 0.0
    %312 = vmatpush1.msra.mxu0 0.0
    %313 = vmatprep.subr.mxu0 0.0
    %314 = vmatpush1.msra.mxu0 0.0
    %315 = vmatprep.subr.mxu0 0.0
    %316 = vmatpush1.msra.mxu0 0.0
    %317 = vmatprep.subr.mxu0 0.0
    %318 = vmatpush1.msra.mxu0 0.0
    %319 = vmatprep.mubr.f32.mxu0 0.0
    %320 = vmatmul.mubr.f32.gmra.mrb[0].mxu0 %v172
    %v321 = vpop.f32.mrb[0].mxu0
    %v322 = vadd.f32 %v253, %v321
    %v323 = vpop.f32.mrb[0].mxu0
    %324 = vdwg.mxu0
    %vm325 = vcmask 130048
    %v327 = vsel %vm325, %v157, 0
    %v330 = vsel %vm325, %v241, 0
    %332 = vmatprep.subr.mxu0 0.0
    %333 = vmatpush1.xpose.msra.mxu0 %v330
    %334 = vmatprep.subr.mxu0 0.0
    %335 = vmatpush1.xpose.msra.mxu0 0.0
    %336 = vmatprep.subr.mxu0 0.0
    %337 = vmatpush1.xpose.msra.mxu0 0.0
    %338 = vmatprep.subr.mxu0 0.0
    %339 = vmatpush1.xpose.msra.mxu0 0.0
    %340 = vmatprep.subr.mxu0 0.0
    %341 = vmatpush1.xpose.msra.mxu0 0.0
    %342 = vmatprep.subr.mxu0 0.0
    %343 = vmatpush1.xpose.msra.mxu0 0.0
    %344 = vmatprep.subr.mxu0 0.0
    %345 = vmatpush1.xpose.msra.mxu0 0.0
    %346 = vmatprep.subr.mxu0 0.0
    %347 = vmatpush1.xpose.msra.mxu0 0.0
    %348 = vmatprep.subr.mxu0 0.0
    %349 = vmatpush1.xpose.msra.mxu0 0.0
    %350 = vmatprep.subr.mxu0 0.0
    %351 = vmatpush1.xpose.msra.mxu0 0.0
    %352 = vmatprep.subr.mxu0 0.0
    %353 = vmatpush1.xpose.msra.mxu0 0.0
    %354 = vmatprep.subr.mxu0 0.0
    %355 = vmatpush1.xpose.msra.mxu0 0.0
    %356 = vmatprep.subr.mxu0 0.0
    %357 = vmatpush1.xpose.msra.mxu0 0.0
    %358 = vmatprep.subr.mxu0 0.0
    %359 = vmatpush1.xpose.msra.mxu0 0.0
    %360 = vmatprep.subr.mxu0 0.0
    %361 = vmatpush1.xpose.msra.mxu0 0.0
    %362 = vmatprep.subr.mxu0 0.0
    %363 = vmatpush1.xpose.msra.mxu0 0.0
    %364 = vmatprep.subr.mxu0 0.0
    %365 = vmatpush1.xpose.msra.mxu0 0.0
    %366 = vmatprep.subr.mxu0 0.0
    %367 = vmatpush1.xpose.msra.mxu0 0.0
    %368 = vmatprep.subr.mxu0 0.0
    %369 = vmatpush1.xpose.msra.mxu0 0.0
    %370 = vmatprep.subr.mxu0 0.0
    %371 = vmatpush1.xpose.msra.mxu0 0.0
    %372 = vmatprep.subr.mxu0 0.0
    %373 = vmatpush1.xpose.msra.mxu0 0.0
    %374 = vmatprep.subr.mxu0 0.0
    %375 = vmatpush1.xpose.msra.mxu0 0.0
    %376 = vmatprep.subr.mxu0 0.0
    %377 = vmatpush1.xpose.msra.mxu0 0.0
    %378 = vmatprep.subr.mxu0 0.0
    %379 = vmatpush1.xpose.msra.mxu0 0.0
    %380 = vmatprep.subr.mxu0 0.0
    %381 = vmatpush1.xpose.msra.mxu0 0.0
    %382 = vmatprep.subr.mxu0 0.0
    %383 = vmatpush1.xpose.msra.mxu0 0.0
    %384 = vmatprep.subr.mxu0 0.0
    %385 = vmatpush1.xpose.msra.mxu0 0.0
    %386 = vmatprep.subr.mxu0 0.0
    %387 = vmatpush1.xpose.msra.mxu0 0.0
    %388 = vmatprep.subr.mxu0 0.0
    %389 = vmatpush1.xpose.msra.mxu0 0.0
    %390 = vmatprep.subr.mxu0 0.0
    %391 = vmatpush1.xpose.msra.mxu0 0.0
    %392 = vmatprep.subr.mxu0 0.0
    %393 = vmatpush1.xpose.msra.mxu0 0.0
    %394 = vmatprep.subr.mxu0 0.0
    %395 = vmatpush1.xpose.msra.mxu0 0.0
    %396 = vmatprep.mubr.f32.mxu0 0.0
    %397 = vmatmul.mubr.f32.gmra.mrb[0].mxu0 %v327
    %v398 = vpop.f32.mrb[0].mxu0
    %v399 = vadd.f32 0.0, %v398
    %v400 = vpop.f32.mrb[0].mxu0
    %401 = vdwg.mxu0
    %v402 = vmul.f32 %v399, 0.0625
    %vm403 = vcmask 64512
    %v404 = vsel %vm403, %v402, -inf
    %405 = vmax.xlane.f32.xlu0 %v404
    %v406 = vpop.xlane.xlu0 %405
    %v407 = vsub.f32 %v402, %v406
    %v408 = vmul.f32 %v407, 1.442695
    %v409 = vpow.pop %v408
    %v410 = vsel %vm403, %v409, 0.0
    %411 = vadd.xlane.f32.xlu0 %v410
    %v412 = vpop.xlane.xlu0 %411
    %v413 = vrcp.pop %v412
    %v414 = vmul.f32 %v409, %v413
    %415 = vst.msk [vmem:[#allocation4] sm:$0xff] %vm403, %v414
    %v417 = vsel %vm403, %v414, 0
    %419 = vmatprep.subr.mxu0 0.0
    %420 = vmatpush1.msra.mxu0 %v322
    %421 = vmatprep.subr.mxu0 0.0
    %422 = vmatpush1.msra.mxu0 0.0
    %423 = vmatprep.subr.mxu0 0.0
    %424 = vmatpush1.msra.mxu0 0.0
    %425 = vmatprep.subr.mxu0 0.0
    %426 = vmatpush1.msra.mxu0 0.0
    %427 = vmatprep.subr.mxu0 0.0
    %428 = vmatpush1.msra.mxu0 0.0
    %429 = vmatprep.subr.mxu0 0.0
    %430 = vmatpush1.msra.mxu0 0.0
    %431 = vmatprep.subr.mxu0 0.0
    %432 = vmatpush1.msra.mxu0 0.0
    %433 = vmatprep.subr.mxu0 0.0
    %434 = vmatpush1.msra.mxu0 0.0
    %435 = vmatprep.subr.mxu0 0.0
    %436 = vmatpush1.msra.mxu0 0.0
    %437 = vmatprep.subr.mxu0 0.0
    %438 = vmatpush1.msra.mxu0 0.0
    %439 = vmatprep.subr.mxu0 0.0
    %440 = vmatpush1.msra.mxu0 0.0
    %441 = vmatprep.subr.mxu0 0.0
    %442 = vmatpush1.msra.mxu0 0.0
    %443 = vmatprep.subr.mxu0 0.0
    %444 = vmatpush1.msra.mxu0 0.0
    %445 = vmatprep.subr.mxu0 0.0
    %446 = vmatpush1.msra.mxu0 0.0
    %447 = vmatprep.subr.mxu0 0.0
    %448 = vmatpush1.msra.mxu0 0.0
    %449 = vmatprep.subr.mxu0 0.0
    %450 = vmatpush1.msra.mxu0 0.0
    %451 = vmatprep.subr.mxu0 0.0
    %452 = vmatpush1.msra.mxu0 0.0
    %453 = vmatprep.subr.mxu0 0.0
    %454 = vmatpush1.msra.mxu0 0.0
    %455 = vmatprep.subr.mxu0 0.0
    %456 = vmatpush1.msra.mxu0 0.0
    %457 = vmatprep.subr.mxu0 0.0
    %458 = vmatpush1.msra.mxu0 0.0
    %459 = vmatprep.subr.mxu0 0.0
    %460 = vmatpush1.msra.mxu0 0.0
    %461 = vmatprep.subr.mxu0 0.0
    %462 = vmatpush1.msra.mxu0 0.0
    %463 = vmatprep.subr.mxu0 0.0
    %464 = vmatpush1.msra.mxu0 0.0
    %465 = vmatprep.subr.mxu0 0.0
    %466 = vmatpush1.msra.mxu0 0.0
    %467 = vmatprep.subr.mxu0 0.0
    %468 = vmatpush1.msra.mxu0 0.0
    %469 = vmatprep.subr.mxu0 0.0
    %470 = vmatpush1.msra.mxu0 0.0
    %471 = vmatprep.subr.mxu0 0.0
    %472 = vmatpush1.msra.mxu0 0.0
    %473 = vmatprep.subr.mxu0 0.0
    %474 = vmatpush1.msra.mxu0 0.0
    %475 = vmatprep.subr.mxu0 0.0
    %476 = vmatpush1.msra.mxu0 0.0
    %477 = vmatprep.subr.mxu0 0.0
    %478 = vmatpush1.msra.mxu0 0.0
    %479 = vmatprep.subr.mxu0 0.0
    %480 = vmatpush1.msra.mxu0 0.0
    %481 = vmatprep.subr.mxu0 0.0
    %482 = vmatpush1.msra.mxu0 0.0
    %483 = vmatprep.mubr.f32.mxu0 0.0
    %484 = vmatmul.mubr.f32.gmra.mrb[0].mxu0 %v417
    %v485 = vpop.f32.mrb[0].mxu0
    %v486 = vadd.f32 0.0, %v485
    %v487 = vpop.f32.mrb[0].mxu0
    %488 = vdwg.mxu0
    %v489 = vld [vmem:[%s8] sm:$0xff]
    %v490 = vld [vmem:[%s8 + $0x8] sm:$0xff]
    %s491 = scalar_lea.vmem %s2, 32
    %v492 = vld [vmem:[%s491] sm:$0xff]
    %v493 = vld [vmem:[%s491 + $0x8] sm:$0xff]
    %v494 = vld [vmem:[%s491 + $0x10] sm:$0xff]
    %v495 = vld [vmem:[%s491 + $0x18] sm:$0xff]
    %s496 = scalar_lea.vmem %s3, 1
    %v497 = vld [vmem:[%s496] sm:$0x1]
    %v499 = vlaneseq
    %v500 = vshrl.u32 %v499, 7
    %v501 = vsub.s32 0, %v500
    %v502 = vrot.slane %v497, %v501
    %504 = vmatprep.subr.mxu0 0.0
    %505 = vmatpush1.msra.mxu0 %v492
    %506 = vmatprep.subr.mxu0 0.0
    %507 = vmatpush1.msra.mxu0 %v493
    %508 = vmatprep.subr.mxu0 0.0
    %509 = vmatpush1.msra.mxu0 %v494
    %510 = vmatprep.subr.mxu0 0.0
    %511 = vmatpush1.msra.mxu0 %v495
    %512 = vmatprep.subr.mxu0 0.0
    %513 = vmatpush1.msra.mxu0 0.0
    %514 = vmatprep.subr.mxu0 0.0
    %515 = vmatpush1.msra.mxu0 0.0
    %516 = vmatprep.subr.mxu0 0.0
    %517 = vmatpush1.msra.mxu0 0.0
    %518 = vmatprep.subr.mxu0 0.0
    %519 = vmatpush1.msra.mxu0 0.0
    %520 = vmatprep.subr.mxu0 0.0
    %521 = vmatpush1.msra.mxu0 0.0
    %522 = vmatprep.subr.mxu0 0.0
    %523 = vmatpush1.msra.mxu0 0.0
    %524 = vmatprep.subr.mxu0 0.0
    %525 = vmatpush1.msra.mxu0 0.0
    %526 = vmatprep.subr.mxu0 0.0
    %527 = vmatpush1.msra.mxu0 0.0
    %528 = vmatprep.subr.mxu0 0.0
    %529 = vmatpush1.msra.mxu0 0.0
    %530 = vmatprep.subr.mxu0 0.0
    %531 = vmatpush1.msra.mxu0 0.0
    %532 = vmatprep.subr.mxu0 0.0
    %533 = vmatpush1.msra.mxu0 0.0
    %534 = vmatprep.subr.mxu0 0.0
    %535 = vmatpush1.msra.mxu0 0.0
    %536 = vmatprep.subr.mxu0 0.0
    %537 = vmatpush1.msra.mxu0 0.0
    %538 = vmatprep.subr.mxu0 0.0
    %539 = vmatpush1.msra.mxu0 0.0
    %540 = vmatprep.subr.mxu0 0.0
    %541 = vmatpush1.msra.mxu0 0.0
    %542 = vmatprep.subr.mxu0 0.0
    %543 = vmatpush1.msra.mxu0 0.0
    %544 = vmatprep.subr.mxu0 0.0
    %545 = vmatpush1.msra.mxu0 0.0
    %546 = vmatprep.subr.mxu0 0.0
    %547 = vmatpush1.msra.mxu0 0.0
    %548 = vmatprep.subr.mxu0 0.0
    %549 = vmatpush1.msra.mxu0 0.0
    %550 = vmatprep.subr.mxu0 0.0
    %551 = vmatpush1.msra.mxu0 0.0
    %552 = vmatprep.subr.mxu0 0.0
    %553 = vmatpush1.msra.mxu0 0.0
    %554 = vmatprep.subr.mxu0 0.0
    %555 = vmatpush1.msra.mxu0 0.0
    %556 = vmatprep.subr.mxu0 0.0
    %557 = vmatpush1.msra.mxu0 0.0
    %558 = vmatprep.subr.mxu0 0.0
    %559 = vmatpush1.msra.mxu0 0.0
    %560 = vmatprep.subr.mxu0 0.0
    %561 = vmatpush1.msra.mxu0 0.0
    %562 = vmatprep.subr.mxu0 0.0
    %563 = vmatpush1.msra.mxu0 0.0
    %564 = vmatprep.subr.mxu0 0.0
    %565 = vmatpush1.msra.mxu0 0.0
    %566 = vmatprep.subr.mxu0 0.0
    %567 = vmatpush1.msra.mxu0 0.0
    %568 = vmatprep.mubr.f32.mxu0 0.0
    %569 = vmatmul.mubr.f32.gmra.mrb[0].mxu0 %v88
    %v570 = vpop.f32.mrb[0].mxu0
    %v571 = vadd.f32 %v502, %v570
    %v572 = vpop.f32.mrb[0].mxu0
    %573 = vdwg.mxu0
    %s574 = scalar_lea.vmem %s4, 32
    %v575 = vld [vmem:[%s574] sm:$0xff]
    %v576 = vld [vmem:[%s574 + $0x8] sm:$0xff]
    %v577 = vld [vmem:[%s574 + $0x10] sm:$0xff]
    %v578 = vld [vmem:[%s574 + $0x18] sm:$0xff]
    %s579 = scalar_lea.vmem %s5, 1
    %v580 = vld [vmem:[%s579] sm:$0x1]
    %v582 = vlaneseq
    %v583 = vshrl.u32 %v582, 7
    %v584 = vsub.s32 0, %v583
    %v585 = vrot.slane %v580, %v584
    %587 = vmatprep.subr.mxu0 0.0
    %588 = vmatpush1.msra.mxu0 %v575
    %589 = vmatprep.subr.mxu0 0.0
    %590 = vmatpush1.msra.mxu0 %v576
    %591 = vmatprep.subr.mxu0 0.0
    %592 = vmatpush1.msra.mxu0 %v577
    %593 = vmatprep.subr.mxu0 0.0
    %594 = vmatpush1.msra.mxu0 %v578
    %595 = vmatprep.subr.mxu0 0.0
    %596 = vmatpush1.msra.mxu0 0.0
    %597 = vmatprep.subr.mxu0 0.0
    %598 = vmatpush1.msra.mxu0 0.0
    %599 = vmatprep.subr.mxu0 0.0
    %600 = vmatpush1.msra.mxu0 0.0
    %601 = vmatprep.subr.mxu0 0.0
    %602 = vmatpush1.msra.mxu0 0.0
    %603 = vmatprep.subr.mxu0 0.0
    %604 = vmatpush1.msra.mxu0 0.0
    %605 = vmatprep.subr.mxu0 0.0
    %606 = vmatpush1.msra.mxu0 0.0
    %607 = vmatprep.subr.mxu0 0.0
    %608 = vmatpush1.msra.mxu0 0.0
    %609 = vmatprep.subr.mxu0 0.0
    %610 = vmatpush1.msra.mxu0 0.0
    %611 = vmatprep.subr.mxu0 0.0
    %612 = vmatpush1.msra.mxu0 0.0
    %613 = vmatprep.subr.mxu0 0.0
    %614 = vmatpush1.msra.mxu0 0.0
    %615 = vmatprep.subr.mxu0 0.0
    %616 = vmatpush1.msra.mxu0 0.0
    %617 = vmatprep.subr.mxu0 0.0
    %618 = vmatpush1.msra.mxu0 0.0
    %619 = vmatprep.subr.mxu0 0.0
    %620 = vmatpush1.msra.mxu0 0.0
    %621 = vmatprep.subr.mxu0 0.0
    %622 = vmatpush1.msra.mxu0 0.0
    %623 = vmatprep.subr.mxu0 0.0
    %624 = vmatpush1.msra.mxu0 0.0
    %625 = vmatprep.subr.mxu0 0.0
    %626 = vmatpush1.msra.mxu0 0.0
    %627 = vmatprep.subr.mxu0 0.0
    %628 = vmatpush1.msra.mxu0 0.0
    %629 = vmatprep.subr.mxu0 0.0
    %630 = vmatpush1.msra.mxu0 0.0
    %631 = vmatprep.subr.mxu0 0.0
    %632 = vmatpush1.msra.mxu0 0.0
    %633 = vmatprep.subr.mxu0 0.0
    %634 = vmatpush1.msra.mxu0 0.0
    %635 = vmatprep.subr.mxu0 0.0
    %636 = vmatpush1.msra.mxu0 0.0
    %637 = vmatprep.subr.mxu0 0.0
    %638 = vmatpush1.msra.mxu0 0.0
    %639 = vmatprep.subr.mxu0 0.0
    %640 = vmatpush1.msra.mxu0 0.0
    %641 = vmatprep.subr.mxu0 0.0
    %642 = vmatpush1.msra.mxu0 0.0
    %643 = vmatprep.subr.mxu0 0.0
    %644 = vmatpush1.msra.mxu0 0.0
    %645 = vmatprep.subr.mxu0 0.0
    %646 = vmatpush1.msra.mxu0 0.0
    %647 = vmatprep.subr.mxu0 0.0
    %648 = vmatpush1.msra.mxu0 0.0
    %649 = vmatprep.subr.mxu0 0.0
    %650 = vmatpush1.msra.mxu0 0.0
    %651 = vmatprep.mubr.f32.mxu0 0.0
    %652 = vmatmul.mubr.f32.gmra.mrb[0].mxu0 %v172
    %v653 = vpop.f32.mrb[0].mxu0
    %v654 = vadd.f32 %v585, %v653
    %v655 = vpop.f32.mrb[0].mxu0
    %656 = vdwg.mxu0
    %s657 = scalar_lea.vmem %s6, 32
    %v658 = vld [vmem:[%s657] sm:$0xff]
    %v659 = vld [vmem:[%s657 + $0x8] sm:$0xff]
    %v660 = vld [vmem:[%s657 + $0x10] sm:$0xff]
    %v661 = vld [vmem:[%s657 + $0x18] sm:$0xff]
    %s662 = scalar_lea.vmem %s7, 1
    %v663 = vld [vmem:[%s662] sm:$0x1]
    %v665 = vlaneseq
    %v666 = vshrl.u32 %v665, 7
    %v667 = vsub.s32 0, %v666
    %v668 = vrot.slane %v663, %v667
    %670 = vmatprep.subr.mxu0 0.0
    %671 = vmatpush1.msra.mxu0 %v658
    %672 = vmatprep.subr.mxu0 0.0
    %673 = vmatpush1.msra.mxu0 %v659
    %674 = vmatprep.subr.mxu0 0.0
    %675 = vmatpush1.msra.mxu0 %v660
    %676 = vmatprep.subr.mxu0 0.0
    %677 = vmatpush1.msra.mxu0 %v661
    %678 = vmatprep.subr.mxu0 0.0
    %679 = vmatpush1.msra.mxu0 0.0
    %680 = vmatprep.subr.mxu0 0.0
    %681 = vmatpush1.msra.mxu0 0.0
    %682 = vmatprep.subr.mxu0 0.0
    %683 = vmatpush1.msra.mxu0 0.0
    %684 = vmatprep.subr.mxu0 0.0
    %685 = vmatpush1.msra.mxu0 0.0
    %686 = vmatprep.subr.mxu0 0.0
    %687 = vmatpush1.msra.mxu0 0.0
    %688 = vmatprep.subr.mxu0 0.0
    %689 = vmatpush1.msra.mxu0 0.0
    %690 = vmatprep.subr.mxu0 0.0
    %691 = vmatpush1.msra.mxu0 0.0
    %692 = vmatprep.subr.mxu0 0.0
    %693 = vmatpush1.msra.mxu0 0.0
    %694 = vmatprep.subr.mxu0 0.0
    %695 = vmatpush1.msra.mxu0 0.0
    %696 = vmatprep.subr.mxu0 0.0
    %697 = vmatpush1.msra.mxu0 0.0
    %698 = vmatprep.subr.mxu0 0.0
    %699 = vmatpush1.msra.mxu0 0.0
    %700 = vmatprep.subr.mxu0 0.0
    %701 = vmatpush1.msra.mxu0 0.0
    %702 = vmatprep.subr.mxu0 0.0
    %703 = vmatpush1.msra.mxu0 0.0
    %704 = vmatprep.subr.mxu0 0.0
    %705 = vmatpush1.msra.mxu0 0.0
    %706 = vmatprep.subr.mxu0 0.0
    %707 = vmatpush1.msra.mxu0 0.0
    %708 = vmatprep.subr.mxu0 0.0
    %709 = vmatpush1.msra.mxu0 0.0
    %710 = vmatprep.subr.mxu0 0.0
    %711 = vmatpush1.msra.mxu0 0.0
    %712 = vmatprep.subr.mxu0 0.0
    %713 = vmatpush1.msra.mxu0 0.0
    %714 = vmatprep.subr.mxu0 0.0
    %715 = vmatpush1.msra.mxu0 0.0
    %716 = vmatprep.subr.mxu0 0.0
    %717 = vmatpush1.msra.mxu0 0.0
    %718 = vmatprep.subr.mxu0 0.0
    %719 = vmatpush1.msra.mxu0 0.0
    %720 = vmatprep.subr.mxu0 0.0
    %721 = vmatpush1.msra.mxu0 0.0
    %722 = vmatprep.subr.mxu0 0.0
    %723 = vmatpush1.msra.mxu0 0.0
    %724 = vmatprep.subr.mxu0 0.0
    %725 = vmatpush1.msra.mxu0 0.0
    %726 = vmatprep.subr.mxu0 0.0
    %727 = vmatpush1.msra.mxu0 0.0
    %728 = vmatprep.subr.mxu0 0.0
    %729 = vmatpush1.msra.mxu0 0.0
    %730 = vmatprep.subr.mxu0 0.0
    %731 = vmatpush1.msra.mxu0 0.0
    %732 = vmatprep.subr.mxu0 0.0
    %733 = vmatpush1.msra.mxu0 0.0
    %734 = vmatprep.mubr.f32.mxu0 0.0
    %735 = vmatmul.mubr.f32.gmra.mrb[0].mxu0 %v172
    %v736 = vpop.f32.mrb[0].mxu0
    %v737 = vadd.f32 %v668, %v736
    %v738 = vpop.f32.mrb[0].mxu0
    %739 = vdwg.mxu0
    %v741 = vsel %vm325, %v571, 0
    %v744 = vsel %vm325, %v654, 0
    %746 = vmatprep.subr.mxu0 0.0
    %747 = vmatpush1.xpose.msra.mxu0 %v744
    %748 = vmatprep.subr.mxu0 0.0
    %749 = vmatpush1.xpose.msra.mxu0 0.0
    %750 = vmatprep.subr.mxu0 0.0
    %751 = vmatpush1.xpose.msra.mxu0 0.0
    %752 = vmatprep.subr.mxu0 0.0
    %753 = vmatpush1.xpose.msra.mxu0 0.0
    %754 = vmatprep.subr.mxu0 0.0
    %755 = vmatpush1.xpose.msra.mxu0 0.0
    %756 = vmatprep.subr.mxu0 0.0
    %757 = vmatpush1.xpose.msra.mxu0 0.0
    %758 = vmatprep.subr.mxu0 0.0
    %759 = vmatpush1.xpose.msra.mxu0 0.0
    %760 = vmatprep.subr.mxu0 0.0
    %761 = vmatpush1.xpose.msra.mxu0 0.0
    %762 = vmatprep.subr.mxu0 0.0
    %763 = vmatpush1.xpose.msra.mxu0 0.0
    %764 = vmatprep.subr.mxu0 0.0
    %765 = vmatpush1.xpose.msra.mxu0 0.0
    %766 = vmatprep.subr.mxu0 0.0
    %767 = vmatpush1.xpose.msra.mxu0 0.0
    %768 = vmatprep.subr.mxu0 0.0
    %769 = vmatpush1.xpose.msra.mxu0 0.0
    %770 = vmatprep.subr.mxu0 0.0
    %771 = vmatpush1.xpose.msra.mxu0 0.0
    %772 = vmatprep.subr.mxu0 0.0
    %773 = vmatpush1.xpose.msra.mxu0 0.0
    %774 = vmatprep.subr.mxu0 0.0
    %775 = vmatpush1.xpose.msra.mxu0 0.0
    %776 = vmatprep.subr.mxu0 0.0
    %777 = vmatpush1.xpose.msra.mxu0 0.0
    %778 = vmatprep.subr.mxu0 0.0
    %779 = vmatpush1.xpose.msra.mxu0 0.0
    %780 = vmatprep.subr.mxu0 0.0
    %781 = vmatpush1.xpose.msra.mxu0 0.0
    %782 = vmatprep.subr.mxu0 0.0
    %783 = vmatpush1.xpose.msra.mxu0 0.0
    %784 = vmatprep.subr.mxu0 0.0
    %785 = vmatpush1.xpose.msra.mxu0 0.0
    %786 = vmatprep.subr.mxu0 0.0
    %787 = vmatpush1.xpose.msra.mxu0 0.0
    %788 = vmatprep.subr.mxu0 0.0
    %789 = vmatpush1.xpose.msra.mxu0 0.0
    %790 = vmatprep.subr.mxu0 0.0
    %791 = vmatpush1.xpose.msra.mxu0 0.0
    %792 = vmatprep.subr.mxu0 0.0
    %793 = vmatpush1.xpose.msra.mxu0 0.0
    %794 = vmatprep.subr.mxu0 0.0
    %795 = vmatpush1.xpose.msra.mxu0 0.0
    %796 = vmatprep.subr.mxu0 0.0
    %797 = vmatpush1.xpose.msra.mxu0 0.0
    %798 = vmatprep.subr.mxu0 0.0
    %799 = vmatpush1.xpose.msra.mxu0 0.0
    %800 = vmatprep.subr.mxu0 0.0
    %801 = vmatpush1.xpose.msra.mxu0 0.0
    %802 = vmatprep.subr.mxu0 0.0
    %803 = vmatpush1.xpose.msra.mxu0 0.0
    %804 = vmatprep.subr.mxu0 0.0
    %805 = vmatpush1.xpose.msra.mxu0 0.0
    %806 = vmatprep.subr.mxu0 0.0
    %807 = vmatpush1.xpose.msra.mxu0 0.0
    %808 = vmatprep.subr.mxu0 0.0
    %809 = vmatpush1.xpose.msra.mxu0 0.0
    %810 = vmatprep.mubr.f32.mxu0 0.0
    %811 = vmatmul.mubr.f32.gmra.mrb[0].mxu0 %v741
    %v812 = vpop.f32.mrb[0].mxu0
    %v813 = vadd.f32 0.0, %v812
    %v814 = vpop.f32.mrb[0].mxu0
    %815 = vdwg.mxu0
    %v816 = vmul.f32 %v813, 0.0625
    %v817 = vsel %vm403, %v816, -inf
    %818 = vmax.xlane.f32.xlu0 %v817
    %v819 = vpop.xlane.xlu0 %818
    %v820 = vsub.f32 %v816, %v819
    %v821 = vmul.f32 %v820, 1.442695
    %v822 = vpow.pop %v821
    %v823 = vsel %vm403, %v822, 0.0
    %824 = vadd.xlane.f32.xlu0 %v823
    %v825 = vpop.xlane.xlu0 %824
    %v826 = vrcp.pop %v825
    %v827 = vmul.f32 %v822, %v826
    %s828 = scalar_lea.vmem [#allocation4], 8
    %829 = vst.msk [vmem:[%s828] sm:$0xff] %vm403, %v827
    %v831 = vsel %vm403, %v827, 0
    %833 = vmatprep.subr.mxu0 0.0
    %834 = vmatpush1.msra.mxu0 %v737
    %835 = vmatprep.subr.mxu0 0.0
    %836 = vmatpush1.msra.mxu0 0.0
    %837 = vmatprep.subr.mxu0 0.0
    %838 = vmatpush1.msra.mxu0 0.0
    %839 = vmatprep.subr.mxu0 0.0
    %840 = vmatpush1.msra.mxu0 0.0
    %841 = vmatprep.subr.mxu0 0.0
    %842 = vmatpush1.msra.mxu0 0.0
    %843 = vmatprep.subr.mxu0 0.0
    %844 = vmatpush1.msra.mxu0 0.0
    %845 = vmatprep.subr.mxu0 0.0
    %846 = vmatpush1.msra.mxu0 0.0
    %847 = vmatprep.subr.mxu0 0.0
    %848 = vmatpush1.msra.mxu0 0.0
    %849 = vmatprep.subr.mxu0 0.0
    %850 = vmatpush1.msra.mxu0 0.0
    %851 = vmatprep.subr.mxu0 0.0
    %852 = vmatpush1.msra.mxu0 0.0
    %853 = vmatprep.subr.mxu0 0.0
    %854 = vmatpush1.msra.mxu0 0.0
    %855 = vmatprep.subr.mxu0 0.0
    %856 = vmatpush1.msra.mxu0 0.0
    %857 = vmatprep.subr.mxu0 0.0
    %858 = vmatpush1.msra.mxu0 0.0
    %859 = vmatprep.subr.mxu0 0.0
    %860 = vmatpush1.msra.mxu0 0.0
    %861 = vmatprep.subr.mxu0 0.0
    %862 = vmatpush1.msra.mxu0 0.0
    %863 = vmatprep.subr.mxu0 0.0
    %864 = vmatpush1.msra.mxu0 0.0
    %865 = vmatprep.subr.mxu0 0.0
    %866 = vmatpush1.msra.mxu0 0.0
    %867 = vmatprep.subr.mxu0 0.0
    %868 = vmatpush1.msra.mxu0 0.0
    %869 = vmatprep.subr.mxu0 0.0
    %870 = vmatpush1.msra.mxu0 0.0
    %871 = vmatprep.subr.mxu0 0.0
    %872 = vmatpush1.msra.mxu0 0.0
    %873 = vmatprep.subr.mxu0 0.0
    %874 = vmatpush1.msra.mxu0 0.0
    %875 = vmatprep.subr.mxu0 0.0
    %876 = vmatpush1.msra.mxu0 0.0
    %877 = vmatprep.subr.mxu0 0.0
    %878 = vmatpush1.msra.mxu0 0.0
    %879 = vmatprep.subr.mxu0 0.0
    %880 = vmatpush1.msra.mxu0 0.0
    %881 = vmatprep.subr.mxu0 0.0
    %882 = vmatpush1.msra.mxu0 0.0
    %883 = vmatprep.subr.mxu0 0.0
    %884 = vmatpush1.msra.mxu0 0.0
    %885 = vmatprep.subr.mxu0 0.0
    %886 = vmatpush1.msra.mxu0 0.0
    %887 = vmatprep.subr.mxu0 0.0
    %888 = vmatpush1.msra.mxu0 0.0
    %889 = vmatprep.subr.mxu0 0.0
    %890 = vmatpush1.msra.mxu0 0.0
    %891 = vmatprep.subr.mxu0 0.0
    %892 = vmatpush1.msra.mxu0 0.0
    %893 = vmatprep.subr.mxu0 0.0
    %894 = vmatpush1.msra.mxu0 0.0
    %895 = vmatprep.subr.mxu0 0.0
    %896 = vmatpush1.msra.mxu0 0.0
    %897 = vmatprep.mubr.f32.mxu0 0.0
    %898 = vmatmul.mubr.f32.gmra.mrb[0].mxu0 %v831
    %v899 = vpop.f32.mrb[0].mxu0
    %v900 = vadd.f32 0.0, %v899
    %v901 = vpop.f32.mrb[0].mxu0
    %902 = vdwg.mxu0
    %s903 = scalar_lea.vmem %s8, 16
    %v904 = vld [vmem:[%s903] sm:$0xff]
    %v905 = vld [vmem:[%s903 + $0x8] sm:$0xff]
    %v907 = vsel %vm325, %v900, 0
    %909 = vmatprep.subr.mxu0 0.0
    %910 = vmatpush1.msra.mxu0 %v904
    %911 = vmatprep.subr.mxu0 0.0
    %912 = vmatpush1.msra.mxu0 %v905
    %913 = vmatprep.subr.mxu0 0.0
    %914 = vmatpush1.msra.mxu0 0.0
    %915 = vmatprep.subr.mxu0 0.0
    %916 = vmatpush1.msra.mxu0 0.0
    %917 = vmatprep.subr.mxu0 0.0
    %918 = vmatpush1.msra.mxu0 0.0
    %919 = vmatprep.subr.mxu0 0.0
    %920 = vmatpush1.msra.mxu0 0.0
    %921 = vmatprep.subr.mxu0 0.0
    %922 = vmatpush1.msra.mxu0 0.0
    %923 = vmatprep.subr.mxu0 0.0
    %924 = vmatpush1.msra.mxu0 0.0
    %925 = vmatprep.subr.mxu0 0.0
    %926 = vmatpush1.msra.mxu0 0.0
    %927 = vmatprep.subr.mxu0 0.0
    %928 = vmatpush1.msra.mxu0 0.0
    %929 = vmatprep.subr.mxu0 0.0
    %930 = vmatpush1.msra.mxu0 0.0
    %931 = vmatprep.subr.mxu0 0.0
    %932 = vmatpush1.msra.mxu0 0.0
    %933 = vmatprep.subr.mxu0 0.0
    %934 = vmatpush1.msra.mxu0 0.0
    %935 = vmatprep.subr.mxu0 0.0
    %936 = vmatpush1.msra.mxu0 0.0
    %937 = vmatprep.subr.mxu0 0.0
    %938 = vmatpush1.msra.mxu0 0.0
    %939 = vmatprep.subr.mxu0 0.0
    %940 = vmatpush1.msra.mxu0 0.0
    %941 = vmatprep.subr.mxu0 0.0
    %942 = vmatpush1.msra.mxu0 0.0
    %943 = vmatprep.subr.mxu0 0.0
    %944 = vmatpush1.msra.mxu0 0.0
    %945 = vmatprep.subr.mxu0 0.0
    %946 = vmatpush1.msra.mxu0 0.0
    %947 = vmatprep.subr.mxu0 0.0
    %948 = vmatpush1.msra.mxu0 0.0
    %949 = vmatprep.subr.mxu0 0.0
    %950 = vmatpush1.msra.mxu0 0.0
    %951 = vmatprep.subr.mxu0 0.0
    %952 = vmatpush1.msra.mxu0 0.0
    %953 = vmatprep.subr.mxu0 0.0
    %954 = vmatpush1.msra.mxu0 0.0
    %955 = vmatprep.subr.mxu0 0.0
    %956 = vmatpush1.msra.mxu0 0.0
    %957 = vmatprep.subr.mxu0 0.0
    %958 = vmatpush1.msra.mxu0 0.0
    %959 = vmatprep.subr.mxu0 0.0
    %960 = vmatpush1.msra.mxu0 0.0
    %961 = vmatprep.subr.mxu0 0.0
    %962 = vmatpush1.msra.mxu0 0.0
    %963 = vmatprep.subr.mxu0 0.0
    %964 = vmatpush1.msra.mxu0 0.0
    %965 = vmatprep.subr.mxu0 0.0
    %966 = vmatpush1.msra.mxu0 0.0
    %967 = vmatprep.subr.mxu0 0.0
    %968 = vmatpush1.msra.mxu0 0.0
    %969 = vmatprep.subr.mxu0 0.0
    %970 = vmatpush1.msra.mxu0 0.0
    %971 = vmatprep.subr.mxu0 0.0
    %972 = vmatpush1.msra.mxu0 0.0
    %973 = vmatprep.mubr.f32.mxu0 0.0
    %974 = vmatmul.mubr.f32.gmra.mrb[0].mxu0 %v907
    %v975 = vpop.f32.mrb[0].mxu0
    %v976 = vadd.f32 0.0, %v975
    %v977 = vpop.f32.mrb[0].mxu0
    %978 = vdwg.mxu0
    %v980 = vsel %vm325, %v486, 0
    %982 = vmatprep.subr.mxu0 0.0
    %983 = vmatpush1.msra.mxu0 %v489
    %984 = vmatprep.subr.mxu0 0.0
    %985 = vmatpush1.msra.mxu0 %v490
    %986 = vmatprep.subr.mxu0 0.0
    %987 = vmatpush1.msra.mxu0 0.0
    %988 = vmatprep.subr.mxu0 0.0
    %989 = vmatpush1.msra.mxu0 0.0
    %990 = vmatprep.subr.mxu0 0.0
    %991 = vmatpush1.msra.mxu0 0.0
    %992 = vmatprep.subr.mxu0 0.0
    %993 = vmatpush1.msra.mxu0 0.0
    %994 = vmatprep.subr.mxu0 0.0
    %995 = vmatpush1.msra.mxu0 0.0
    %996 = vmatprep.subr.mxu0 0.0
    %997 = vmatpush1.msra.mxu0 0.0
    %998 = vmatprep.subr.mxu0 0.0
    %999 = vmatpush1.msra.mxu0 0.0
    %1000 = vmatprep.subr.mxu0 0.0
    %1001 = vmatpush1.msra.mxu0 0.0
    %1002 = vmatprep.subr.mxu0 0.0
    %1003 = vmatpush1.msra.mxu0 0.0
    %1004 = vmatprep.subr.mxu0 0.0
    %1005 = vmatpush1.msra.mxu0 0.0
    %1006 = vmatprep.subr.mxu0 0.0
    %1007 = vmatpush1.msra.mxu0 0.0
    %1008 = vmatprep.subr.mxu0 0.0
    %1009 = vmatpush1.msra.mxu0 0.0
    %1010 = vmatprep.subr.mxu0 0.0
    %1011 = vmatpush1.msra.mxu0 0.0
    %1012 = vmatprep.subr.mxu0 0.0
    %1013 = vmatpush1.msra.mxu0 0.0
    %1014 = vmatprep.subr.mxu0 0.0
    %1015 = vmatpush1.msra.mxu0 0.0
    %1016 = vmatprep.subr.mxu0 0.0
    %1017 = vmatpush1.msra.mxu0 0.0
    %1018 = vmatprep.subr.mxu0 0.0
    %1019 = vmatpush1.msra.mxu0 0.0
    %1020 = vmatprep.subr.mxu0 0.0
    %1021 = vmatpush1.msra.mxu0 0.0
    %1022 = vmatprep.subr.mxu0 0.0
    %1023 = vmatpush1.msra.mxu0 0.0
    %1024 = vmatprep.subr.mxu0 0.0
    %1025 = vmatpush1.msra.mxu0 0.0
    %1026 = vmatprep.subr.mxu0 0.0
    %1027 = vmatpush1.msra.mxu0 0.0
    %1028 = vmatprep.subr.mxu0 0.0
    %1029 = vmatpush1.msra.mxu0 0.0
    %1030 = vmatprep.subr.mxu0 0.0
    %1031 = vmatpush1.msra.mxu0 0.0
    %1032 = vmatprep.subr.mxu0 0.0
    %1033 = vmatpush1.msra.mxu0 0.0
    %1034 = vmatprep.subr.mxu0 0.0
    %1035 = vmatpush1.msra.mxu0 0.0
    %1036 = vmatprep.subr.mxu0 0.0
    %1037 = vmatpush1.msra.mxu0 0.0
    %1038 = vmatprep.subr.mxu0 0.0
    %1039 = vmatpush1.msra.mxu0 0.0
    %1040 = vmatprep.subr.mxu0 0.0
    %1041 = vmatpush1.msra.mxu0 0.0
    %1042 = vmatprep.subr.mxu0 0.0
    %1043 = vmatpush1.msra.mxu0 0.0
    %1044 = vmatprep.subr.mxu0 0.0
    %1045 = vmatpush1.msra.mxu0 0.0
    %1046 = vmatprep.mubr.f32.mxu0 0.0
    %1047 = vmatmul.mubr.f32.gmra.mrb[0].mxu0 %v980
    %v1048 = vpop.f32.mrb[0].mxu0
    %v1049 = vadd.f32 %v976, %v1048
    %v1050 = vpop.f32.mrb[0].mxu0
    %1051 = vdwg.mxu0
    %s1052 = scalar_lea.vmem %s2, 64
    %v1053 = vld [vmem:[%s1052] sm:$0xff]
    %v1054 = vld [vmem:[%s1052 + $0x8] sm:$0xff]
    %v1055 = vld [vmem:[%s1052 + $0x10] sm:$0xff]
    %v1056 = vld [vmem:[%s1052 + $0x18] sm:$0xff]
    %s1057 = scalar_lea.vmem %s3, 2
    %v1058 = vld [vmem:[%s1057] sm:$0x1]
    %v1060 = vlaneseq
    %v1061 = vshrl.u32 %v1060, 7
    %v1062 = vsub.s32 0, %v1061
    %v1063 = vrot.slane %v1058, %v1062
    %1065 = vmatprep.subr.mxu0 0.0
    %1066 = vmatpush1.msra.mxu0 %v1053
    %1067 = vmatprep.subr.mxu0 0.0
    %1068 = vmatpush1.msra.mxu0 %v1054
    %1069 = vmatprep.subr.mxu0 0.0
    %1070 = vmatpush1.msra.mxu0 %v1055
    %1071 = vmatprep.subr.mxu0 0.0
    %1072 = vmatpush1.msra.mxu0 %v1056
    %1073 = vmatprep.subr.mxu0 0.0
    %1074 = vmatpush1.msra.mxu0 0.0
    %1075 = vmatprep.subr.mxu0 0.0
    %1076 = vmatpush1.msra.mxu0 0.0
    %1077 = vmatprep.subr.mxu0 0.0
    %1078 = vmatpush1.msra.mxu0 0.0
    %1079 = vmatprep.subr.mxu0 0.0
    %1080 = vmatpush1.msra.mxu0 0.0
    %1081 = vmatprep.subr.mxu0 0.0
    %1082 = vmatpush1.msra.mxu0 0.0
    %1083 = vmatprep.subr.mxu0 0.0
    %1084 = vmatpush1.msra.mxu0 0.0
    %1085 = vmatprep.subr.mxu0 0.0
    %1086 = vmatpush1.msra.mxu0 0.0
    %1087 = vmatprep.subr.mxu0 0.0
    %1088 = vmatpush1.msra.mxu0 0.0
    %1089 = vmatprep.subr.mxu0 0.0
    %1090 = vmatpush1.msra.mxu0 0.0
    %1091 = vmatprep.subr.mxu0 0.0
    %1092 = vmatpush1.msra.mxu0 0.0
    %1093 = vmatprep.subr.mxu0 0.0
    %1094 = vmatpush1.msra.mxu0 0.0
    %1095 = vmatprep.subr.mxu0 0.0
    %1096 = vmatpush1.msra.mxu0 0.0
    %1097 = vmatprep.subr.mxu0 0.0
    %1098 = vmatpush1.msra.mxu0 0.0
    %1099 = vmatprep.subr.mxu0 0.0
    %1100 = vmatpush1.msra.mxu0 0.0
    %1101 = vmatprep.subr.mxu0 0.0
    %1102 = vmatpush1.msra.mxu0 0.0
    %1103 = vmatprep.subr.mxu0 0.0
    %1104 = vmatpush1.msra.mxu0 0.0
    %1105 = vmatprep.subr.mxu0 0.0
    %1106 = vmatpush1.msra.mxu0 0.0
    %1107 = vmatprep.subr.mxu0 0.0
    %1108 = vmatpush1.msra.mxu0 0.0
    %1109 = vmatprep.subr.mxu0 0.0
    %1110 = vmatpush1.msra.mxu0 0.0
    %1111 = vmatprep.subr.mxu0 0.0
    %1112 = vmatpush1.msra.mxu0 0.0
    %1113 = vmatprep.subr.mxu0 0.0
    %1114 = vmatpush1.msra.mxu0 0.0
    %1115 = vmatprep.subr.mxu0 0.0
    %1116 = vmatpush1.msra.mxu0 0.0
    %1117 = vmatprep.subr.mxu0 0.0
    %1118 = vmatpush1.msra.mxu0 0.0
    %1119 = vmatprep.subr.mxu0 0.0
    %1120 = vmatpush1.msra.mxu0 0.0
    %1121 = vmatprep.subr.mxu0 0.0
    %1122 = vmatpush1.msra.mxu0 0.0
    %1123 = vmatprep.subr.mxu0 0.0
    %1124 = vmatpush1.msra.mxu0 0.0
    %1125 = vmatprep.subr.mxu0 0.0
    %1126 = vmatpush1.msra.mxu0 0.0
    %1127 = vmatprep.subr.mxu0 0.0
    %1128 = vmatpush1.msra.mxu0 0.0
    %1129 = vmatprep.mubr.f32.mxu0 0.0
    %1130 = vmatmul.mubr.f32.gmra.mrb[0].mxu0 %v88
    %v1131 = vpop.f32.mrb[0].mxu0
    %v1132 = vadd.f32 %v1063, %v1131
    %v1133 = vpop.f32.mrb[0].mxu0
    %1134 = vdwg.mxu0
    %s1135 = scalar_lea.vmem %s4, 64
    %v1136 = vld [vmem:[%s1135] sm:$0xff]
    %v1137 = vld [vmem:[%s1135 + $0x8] sm:$0xff]
    %v1138 = vld [vmem:[%s1135 + $0x10] sm:$0xff]
    %v1139 = vld [vmem:[%s1135 + $0x18] sm:$0xff]
    %s1140 = scalar_lea.vmem %s5, 2
    %v1141 = vld [vmem:[%s1140] sm:$0x1]
    %v1143 = vlaneseq
    %v1144 = vshrl.u32 %v1143, 7
    %v1145 = vsub.s32 0, %v1144
    %v1146 = vrot.slane %v1141, %v1145
    %1148 = vmatprep.subr.mxu0 0.0
    %1149 = vmatpush1.msra.mxu0 %v1136
    %1150 = vmatprep.subr.mxu0 0.0
    %1151 = vmatpush1.msra.mxu0 %v1137
    %1152 = vmatprep.subr.mxu0 0.0
    %1153 = vmatpush1.msra.mxu0 %v1138
    %1154 = vmatprep.subr.mxu0 0.0
    %1155 = vmatpush1.msra.mxu0 %v1139
    %1156 = vmatprep.subr.mxu0 0.0
    %1157 = vmatpush1.msra.mxu0 0.0
    %1158 = vmatprep.subr.mxu0 0.0
    %1159 = vmatpush1.msra.mxu0 0.0
    %1160 = vmatprep.subr.mxu0 0.0
    %1161 = vmatpush1.msra.mxu0 0.0
    %1162 = vmatprep.subr.mxu0 0.0
    %1163 = vmatpush1.msra.mxu0 0.0
    %1164 = vmatprep.subr.mxu0 0.0
    %1165 = vmatpush1.msra.mxu0 0.0
    %1166 = vmatprep.subr.mxu0 0.0
    %1167 = vmatpush1.msra.mxu0 0.0
    %1168 = vmatprep.subr.mxu0 0.0
    %1169 = vmatpush1.msra.mxu0 0.0
    %1170 = vmatprep.subr.mxu0 0.0
    %1171 = vmatpush1.msra.mxu0 0.0
    %1172 = vmatprep.subr.mxu0 0.0
    %1173 = vmatpush1.msra.mxu0 0.0
    %1174 = vmatprep.subr.mxu0 0.0
    %1175 = vmatpush1.msra.mxu0 0.0
    %1176 = vmatprep.subr.mxu0 0.0
    %1177 = vmatpush1.msra.mxu0 0.0
    %1178 = vmatprep.subr.mxu0 0.0
    %1179 = vmatpush1.msra.mxu0 0.0
    %1180 = vmatprep.subr.mxu0 0.0
    %1181 = vmatpush1.msra.mxu0 0.0
    %1182 = vmatprep.subr.mxu0 0.0
    %1183 = vmatpush1.msra.mxu0 0.0
    %1184 = vmatprep.subr.mxu0 0.0
    %1185 = vmatpush1.msra.mxu0 0.0
    %1186 = vmatprep.subr.mxu0 0.0
    %1187 = vmatpush1.msra.mxu0 0.0
    %1188 = vmatprep.subr.mxu0 0.0
    %1189 = vmatpush1.msra.mxu0 0.0
    %1190 = vmatprep.subr.mxu0 0.0
    %1191 = vmatpush1.msra.mxu0 0.0
    %1192 = vmatprep.subr.mxu0 0.0
    %1193 = vmatpush1.msra.mxu0 0.0
    %1194 = vmatprep.subr.mxu0 0.0
    %1195 = vmatpush1.msra.mxu0 0.0
    %1196 = vmatprep.subr.mxu0 0.0
    %1197 = vmatpush1.msra.mxu0 0.0
    %1198 = vmatprep.subr.mxu0 0.0
    %1199 = vmatpush1.msra.mxu0 0.0
    %1200 = vmatprep.subr.mxu0 0.0
    %1201 = vmatpush1.msra.mxu0 0.0
    %1202 = vmatprep.subr.mxu0 0.0
    %1203 = vmatpush1.msra.mxu0 0.0
    %1204 = vmatprep.subr.mxu0 0.0
    %1205 = vmatpush1.msra.mxu0 0.0
    %1206 = vmatprep.subr.mxu0 0.0
    %1207 = vmatpush1.msra.mxu0 0.0
    %1208 = vmatprep.subr.mxu0 0.0
    %1209 = vmatpush1.msra.mxu0 0.0
    %1210 = vmatprep.subr.mxu0 0.0
    %1211 = vmatpush1.msra.mxu0 0.0
    %1212 = vmatprep.mubr.f32.mxu0 0.0
    %1213 = vmatmul.mubr.f32.gmra.mrb[0].mxu0 %v172
    %v1214 = vpop.f32.mrb[0].mxu0
    %v1215 = vadd.f32 %v1146, %v1214
    %v1216 = vpop.f32.mrb[0].mxu0
    %1217 = vdwg.mxu0
    %s1218 = scalar_lea.vmem %s6, 64
    %v1219 = vld [vmem:[%s1218] sm:$0xff]
    %v1220 = vld [vmem:[%s1218 + $0x8] sm:$0xff]
    %v1221 = vld [vmem:[%s1218 + $0x10] sm:$0xff]
    %v1222 = vld [vmem:[%s1218 + $0x18] sm:$0xff]
    %s1223 = scalar_lea.vmem %s7, 2
    %v1224 = vld [vmem:[%s1223] sm:$0x1]
    %v1226 = vlaneseq
    %v1227 = vshrl.u32 %v1226, 7
    %v1228 = vsub.s32 0, %v1227
    %v1229 = vrot.slane %v1224, %v1228
    %1231 = vmatprep.subr.mxu0 0.0
    %1232 = vmatpush1.msra.mxu0 %v1219
    %1233 = vmatprep.subr.mxu0 0.0
    %1234 = vmatpush1.msra.mxu0 %v1220
    %1235 = vmatprep.subr.mxu0 0.0
    %1236 = vmatpush1.msra.mxu0 %v1221
    %1237 = vmatprep.subr.mxu0 0.0
    %1238 = vmatpush1.msra.mxu0 %v1222
    %1239 = vmatprep.subr.mxu0 0.0
    %1240 = vmatpush1.msra.mxu0 0.0
    %1241 = vmatprep.subr.mxu0 0.0
    %1242 = vmatpush1.msra.mxu0 0.0
    %1243 = vmatprep.subr.mxu0 0.0
    %1244 = vmatpush1.msra.mxu0 0.0
    %1245 = vmatprep.subr.mxu0 0.0
    %1246 = vmatpush1.msra.mxu0 0.0
    %1247 = vmatprep.subr.mxu0 0.0
    %1248 = vmatpush1.msra.mxu0 0.0
    %1249 = vmatprep.subr.mxu0 0.0
    %1250 = vmatpush1.msra.mxu0 0.0
    %1251 = vmatprep.subr.mxu0 0.0
    %1252 = vmatpush1.msra.mxu0 0.0
    %1253 = vmatprep.subr.mxu0 0.0
    %1254 = vmatpush1.msra.mxu0 0.0
    %1255 = vmatprep.subr.mxu0 0.0
    %1256 = vmatpush1.msra.mxu0 0.0
    %1257 = vmatprep.subr.mxu0 0.0
    %1258 = vmatpush1.msra.mxu0 0.0
    %1259 = vmatprep.subr.mxu0 0.0
    %1260 = vmatpush1.msra.mxu0 0.0
    %1261 = vmatprep.subr.mxu0 0.0
    %1262 = vmatpush1.msra.mxu0 0.0
    %1263 = vmatprep.subr.mxu0 0.0
    %1264 = vmatpush1.msra.mxu0 0.0
    %1265 = vmatprep.subr.mxu0 0.0
    %1266 = vmatpush1.msra.mxu0 0.0
    %1267 = vmatprep.subr.mxu0 0.0
    %1268 = vmatpush1.msra.mxu0 0.0
    %1269 = vmatprep.subr.mxu0 0.0
    %1270 = vmatpush1.msra.mxu0 0.0
    %1271 = vmatprep.subr.mxu0 0.0
    %1272 = vmatpush1.msra.mxu0 0.0
    %1273 = vmatprep.subr.mxu0 0.0
    %1274 = vmatpush1.msra.mxu0 0.0
    %1275 = vmatprep.subr.mxu0 0.0
    %1276 = vmatpush1.msra.mxu0 0.0
    %1277 = vmatprep.subr.mxu0 0.0
    %1278 = vmatpush1.msra.mxu0 0.0
    %1279 = vmatprep.subr.mxu0 0.0
    %1280 = vmatpush1.msra.mxu0 0.0
    %1281 = vmatprep.subr.mxu0 0.0
    %1282 = vmatpush1.msra.mxu0 0.0
    %1283 = vmatprep.subr.mxu0 0.0
    %1284 = vmatpush1.msra.mxu0 0.0
    %1285 = vmatprep.subr.mxu0 0.0
    %1286 = vmatpush1.msra.mxu0 0.0
    %1287 = vmatprep.subr.mxu0 0.0
    %1288 = vmatpush1.msra.mxu0 0.0
    %1289 = vmatprep.subr.mxu0 0.0
    %1290 = vmatpush1.msra.mxu0 0.0
    %1291 = vmatprep.subr.mxu0 0.0
    %1292 = vmatpush1.msra.mxu0 0.0
    %1293 = vmatprep.subr.mxu0 0.0
    %1294 = vmatpush1.msra.mxu0 0.0
    %1295 = vmatprep.mubr.f32.mxu0 0.0
    %1296 = vmatmul.mubr.f32.gmra.mrb[0].mxu0 %v172
    %v1297 = vpop.f32.mrb[0].mxu0
    %v1298 = vadd.f32 %v1229, %v1297
    %v1299 = vpop.f32.mrb[0].mxu0
    %1300 = vdwg.mxu0
    %v1302 = vsel %vm325, %v1132, 0
    %v1305 = vsel %vm325, %v1215, 0
    %1307 = vmatprep.subr.mxu0 0.0
    %1308 = vmatpush1.xpose.msra.mxu0 %v1305
    %1309 = vmatprep.subr.mxu0 0.0
    %1310 = vmatpush1.xpose.msra.mxu0 0.0
    %1311 = vmatprep.subr.mxu0 0.0
    %1312 = vmatpush1.xpose.msra.mxu0 0.0
    %1313 = vmatprep.subr.mxu0 0.0
    %1314 = vmatpush1.xpose.msra.mxu0 0.0
    %1315 = vmatprep.subr.mxu0 0.0
    %1316 = vmatpush1.xpose.msra.mxu0 0.0
    %1317 = vmatprep.subr.mxu0 0.0
    %1318 = vmatpush1.xpose.msra.mxu0 0.0
    %1319 = vmatprep.subr.mxu0 0.0
    %1320 = vmatpush1.xpose.msra.mxu0 0.0
    %1321 = vmatprep.subr.mxu0 0.0
    %1322 = vmatpush1.xpose.msra.mxu0 0.0
    %1323 = vmatprep.subr.mxu0 0.0
    %1324 = vmatpush1.xpose.msra.mxu0 0.0
    %1325 = vmatprep.subr.mxu0 0.0
    %1326 = vmatpush1.xpose.msra.mxu0 0.0
    %1327 = vmatprep.subr.mxu0 0.0
    %1328 = vmatpush1.xpose.msra.mxu0 0.0
    %1329 = vmatprep.subr.mxu0 0.0
    %1330 = vmatpush1.xpose.msra.mxu0 0.0
    %1331 = vmatprep.subr.mxu0 0.0
    %1332 = vmatpush1.xpose.msra.mxu0 0.0
    %1333 = vmatprep.subr.mxu0 0.0
    %1334 = vmatpush1.xpose.msra.mxu0 0.0
    %1335 = vmatprep.subr.mxu0 0.0
    %1336 = vmatpush1.xpose.msra.mxu0 0.0
    %1337 = vmatprep.subr.mxu0 0.0
    %1338 = vmatpush1.xpose.msra.mxu0 0.0
    %1339 = vmatprep.subr.mxu0 0.0
    %1340 = vmatpush1.xpose.msra.mxu0 0.0
    %1341 = vmatprep.subr.mxu0 0.0
    %1342 = vmatpush1.xpose.msra.mxu0 0.0
    %1343 = vmatprep.subr.mxu0 0.0
    %1344 = vmatpush1.xpose.msra.mxu0 0.0
    %1345 = vmatprep.subr.mxu0 0.0
    %1346 = vmatpush1.xpose.msra.mxu0 0.0
    %1347 = vmatprep.subr.mxu0 0.0
    %1348 = vmatpush1.xpose.msra.mxu0 0.0
    %1349 = vmatprep.subr.mxu0 0.0
    %1350 = vmatpush1.xpose.msra.mxu0 0.0
    %1351 = vmatprep.subr.mxu0 0.0
    %1352 = vmatpush1.xpose.msra.mxu0 0.0
    %1353 = vmatprep.subr.mxu0 0.0
    %1354 = vmatpush1.xpose.msra.mxu0 0.0
    %1355 = vmatprep.subr.mxu0 0.0
    %1356 = vmatpush1.xpose.msra.mxu0 0.0
    %1357 = vmatprep.subr.mxu0 0.0
    %1358 = vmatpush1.xpose.msra.mxu0 0.0
    %1359 = vmatprep.subr.mxu0 0.0
    %1360 = vmatpush1.xpose.msra.mxu0 0.0
    %1361 = vmatprep.subr.mxu0 0.0
    %1362 = vmatpush1.xpose.msra.mxu0 0.0
    %1363 = vmatprep.subr.mxu0 0.0
    %1364 = vmatpush1.xpose.msra.mxu0 0.0
    %1365 = vmatprep.subr.mxu0 0.0
    %1366 = vmatpush1.xpose.msra.mxu0 0.0
    %1367 = vmatprep.subr.mxu0 0.0
    %1368 = vmatpush1.xpose.msra.mxu0 0.0
    %1369 = vmatprep.subr.mxu0 0.0
    %1370 = vmatpush1.xpose.msra.mxu0 0.0
    %1371 = vmatprep.mubr.f32.mxu0 0.0
    %1372 = vmatmul.mubr.f32.gmra.mrb[0].mxu0 %v1302
    %v1373 = vpop.f32.mrb[0].mxu0
    %v1374 = vadd.f32 0.0, %v1373
    %v1375 = vpop.f32.mrb[0].mxu0
    %1376 = vdwg.mxu0
    %v1377 = vmul.f32 %v1374, 0.0625
    %v1378 = vsel %vm403, %v1377, -inf
    %1379 = vmax.xlane.f32.xlu0 %v1378
    %v1380 = vpop.xlane.xlu0 %1379
    %v1381 = vsub.f32 %v1377, %v1380
    %v1382 = vmul.f32 %v1381, 1.442695
    %v1383 = vpow.pop %v1382
    %v1384 = vsel %vm403, %v1383, 0.0
    %1385 = vadd.xlane.f32.xlu0 %v1384
    %v1386 = vpop.xlane.xlu0 %1385
    %v1387 = vrcp.pop %v1386
    %v1388 = vmul.f32 %v1383, %v1387
    %s1389 = scalar_lea.vmem [#allocation4], 16
    %1390 = vst.msk [vmem:[%s1389] sm:$0xff] %vm403, %v1388
    %v1392 = vsel %vm403, %v1388, 0
    %1394 = vmatprep.subr.mxu0 0.0
    %1395 = vmatpush1.msra.mxu0 %v1298
    %1396 = vmatprep.subr.mxu0 0.0
    %1397 = vmatpush1.msra.mxu0 0.0
    %1398 = vmatprep.subr.mxu0 0.0
    %1399 = vmatpush1.msra.mxu0 0.0
    %1400 = vmatprep.subr.mxu0 0.0
    %1401 = vmatpush1.msra.mxu0 0.0
    %1402 = vmatprep.subr.mxu0 0.0
    %1403 = vmatpush1.msra.mxu0 0.0
    %1404 = vmatprep.subr.mxu0 0.0
    %1405 = vmatpush1.msra.mxu0 0.0
    %1406 = vmatprep.subr.mxu0 0.0
    %1407 = vmatpush1.msra.mxu0 0.0
    %1408 = vmatprep.subr.mxu0 0.0
    %1409 = vmatpush1.msra.mxu0 0.0
    %1410 = vmatprep.subr.mxu0 0.0
    %1411 = vmatpush1.msra.mxu0 0.0
    %1412 = vmatprep.subr.mxu0 0.0
    %1413 = vmatpush1.msra.mxu0 0.0
    %1414 = vmatprep.subr.mxu0 0.0
    %1415 = vmatpush1.msra.mxu0 0.0
    %1416 = vmatprep.subr.mxu0 0.0
    %1417 = vmatpush1.msra.mxu0 0.0
    %1418 = vmatprep.subr.mxu0 0.0
    %1419 = vmatpush1.msra.mxu0 0.0
    %1420 = vmatprep.subr.mxu0 0.0
    %1421 = vmatpush1.msra.mxu0 0.0
    %1422 = vmatprep.subr.mxu0 0.0
    %1423 = vmatpush1.msra.mxu0 0.0
    %1424 = vmatprep.subr.mxu0 0.0
    %1425 = vmatpush1.msra.mxu0 0.0
    %1426 = vmatprep.subr.mxu0 0.0
    %1427 = vmatpush1.msra.mxu0 0.0
    %1428 = vmatprep.subr.mxu0 0.0
    %1429 = vmatpush1.msra.mxu0 0.0
    %1430 = vmatprep.subr.mxu0 0.0
    %1431 = vmatpush1.msra.mxu0 0.0
    %1432 = vmatprep.subr.mxu0 0.0
    %1433 = vmatpush1.msra.mxu0 0.0
    %1434 = vmatprep.subr.mxu0 0.0
    %1435 = vmatpush1.msra.mxu0 0.0
    %1436 = vmatprep.subr.mxu0 0.0
    %1437 = vmatpush1.msra.mxu0 0.0
    %1438 = vmatprep.subr.mxu0 0.0
    %1439 = vmatpush1.msra.mxu0 0.0
    %1440 = vmatprep.subr.mxu0 0.0
    %1441 = vmatpush1.msra.mxu0 0.0
    %1442 = vmatprep.subr.mxu0 0.0
    %1443 = vmatpush1.msra.mxu0 0.0
    %1444 = vmatprep.subr.mxu0 0.0
    %1445 = vmatpush1.msra.mxu0 0.0
    %1446 = vmatprep.subr.mxu0 0.0
    %1447 = vmatpush1.msra.mxu0 0.0
    %1448 = vmatprep.subr.mxu0 0.0
    %1449 = vmatpush1.msra.mxu0 0.0
    %1450 = vmatprep.subr.mxu0 0.0
    %1451 = vmatpush1.msra.mxu0 0.0
    %1452 = vmatprep.subr.mxu0 0.0
    %1453 = vmatpush1.msra.mxu0 0.0
    %1454 = vmatprep.subr.mxu0 0.0
    %1455 = vmatpush1.msra.mxu0 0.0
    %1456 = vmatprep.subr.mxu0 0.0
    %1457 = vmatpush1.msra.mxu0 0.0
    %1458 = vmatprep.mubr.f32.mxu0 0.0
    %1459 = vmatmul.mubr.f32.gmra.mrb[0].mxu0 %v1392
    %v1460 = vpop.f32.mrb[0].mxu0
    %v1461 = vadd.f32 0.0, %v1460
    %v1462 = vpop.f32.mrb[0].mxu0
    %1463 = vdwg.mxu0
    %s1464 = scalar_lea.vmem %s8, 32
    %v1465 = vld [vmem:[%s1464] sm:$0xff]
    %v1466 = vld [vmem:[%s1464 + $0x8] sm:$0xff]
    %v1468 = vsel %vm325, %v1461, 0
    %1470 = vmatprep.subr.mxu0 0.0
    %1471 = vmatpush1.msra.mxu0 %v1465
    %1472 = vmatprep.subr.mxu0 0.0
    %1473 = vmatpush1.msra.mxu0 %v1466
    %1474 = vmatprep.subr.mxu0 0.0
    %1475 = vmatpush1.msra.mxu0 0.0
    %1476 = vmatprep.subr.mxu0 0.0
    %1477 = vmatpush1.msra.mxu0 0.0
    %1478 = vmatprep.subr.mxu0 0.0
    %1479 = vmatpush1.msra.mxu0 0.0
    %1480 = vmatprep.subr.mxu0 0.0
    %1481 = vmatpush1.msra.mxu0 0.0
    %1482 = vmatprep.subr.mxu0 0.0
    %1483 = vmatpush1.msra.mxu0 0.0
    %1484 = vmatprep.subr.mxu0 0.0
    %1485 = vmatpush1.msra.mxu0 0.0
    %1486 = vmatprep.subr.mxu0 0.0
    %1487 = vmatpush1.msra.mxu0 0.0
    %1488 = vmatprep.subr.mxu0 0.0
    %1489 = vmatpush1.msra.mxu0 0.0
    %1490 = vmatprep.subr.mxu0 0.0
    %1491 = vmatpush1.msra.mxu0 0.0
    %1492 = vmatprep.subr.mxu0 0.0
    %1493 = vmatpush1.msra.mxu0 0.0
    %1494 = vmatprep.subr.mxu0 0.0
    %1495 = vmatpush1.msra.mxu0 0.0
    %1496 = vmatprep.subr.mxu0 0.0
    %1497 = vmatpush1.msra.mxu0 0.0
    %1498 = vmatprep.subr.mxu0 0.0
    %1499 = vmatpush1.msra.mxu0 0.0
    %1500 = vmatprep.subr.mxu0 0.0
    %1501 = vmatpush1.msra.mxu0 0.0
    %1502 = vmatprep.subr.mxu0 0.0
    %1503 = vmatpush1.msra.mxu0 0.0
    %1504 = vmatprep.subr.mxu0 0.0
    %1505 = vmatpush1.msra.mxu0 0.0
    %1506 = vmatprep.subr.mxu0 0.0
    %1507 = vmatpush1.msra.mxu0 0.0
    %1508 = vmatprep.subr.mxu0 0.0
    %1509 = vmatpush1.msra.mxu0 0.0
    %1510 = vmatprep.subr.mxu0 0.0
    %1511 = vmatpush1.msra.mxu0 0.0
    %1512 = vmatprep.subr.mxu0 0.0
    %1513 = vmatpush1.msra.mxu0 0.0
    %1514 = vmatprep.subr.mxu0 0.0
    %1515 = vmatpush1.msra.mxu0 0.0
    %1516 = vmatprep.subr.mxu0 0.0
    %1517 = vmatpush1.msra.mxu0 0.0
    %1518 = vmatprep.subr.mxu0 0.0
    %1519 = vmatpush1.msra.mxu0 0.0
    %1520 = vmatprep.subr.mxu0 0.0
    %1521 = vmatpush1.msra.mxu0 0.0
    %1522 = vmatprep.subr.mxu0 0.0
    %1523 = vmatpush1.msra.mxu0 0.0
    %1524 = vmatprep.subr.mxu0 0.0
    %1525 = vmatpush1.msra.mxu0 0.0
    %1526 = vmatprep.subr.mxu0 0.0
    %1527 = vmatpush1.msra.mxu0 0.0
    %1528 = vmatprep.subr.mxu0 0.0
    %1529 = vmatpush1.msra.mxu0 0.0
    %1530 = vmatprep.subr.mxu0 0.0
    %1531 = vmatpush1.msra.mxu0 0.0
    %1532 = vmatprep.subr.mxu0 0.0
    %1533 = vmatpush1.msra.mxu0 0.0
    %1534 = vmatprep.mubr.f32.mxu0 0.0
    %1535 = vmatmul.mubr.f32.gmra.mrb[0].mxu0 %v1468
    %v1536 = vpop.f32.mrb[0].mxu0
    %v1537 = vadd.f32 0.0, %v1536
    %v1538 = vpop.f32.mrb[0].mxu0
    %1539 = vdwg.mxu0
    %v1540 = vadd.f32 %v1049, %v1537
    %s1541 = scalar_lea.vmem %s2, 96
    %v1542 = vld [vmem:[%s1541] sm:$0xff]
    %v1543 = vld [vmem:[%s1541 + $0x8] sm:$0xff]
    %v1544 = vld [vmem:[%s1541 + $0x10] sm:$0xff]
    %v1545 = vld [vmem:[%s1541 + $0x18] sm:$0xff]
    %s1546 = scalar_lea.vmem %s3, 3
    %v1547 = vld [vmem:[%s1546] sm:$0x1]
    %v1549 = vlaneseq
    %v1550 = vshrl.u32 %v1549, 7
    %v1551 = vsub.s32 0, %v1550
    %v1552 = vrot.slane %v1547, %v1551
    %1554 = vmatprep.subr.mxu0 0.0
    %1555 = vmatpush1.msra.mxu0 %v1542
    %1556 = vmatprep.subr.mxu0 0.0
    %1557 = vmatpush1.msra.mxu0 %v1543
    %1558 = vmatprep.subr.mxu0 0.0
    %1559 = vmatpush1.msra.mxu0 %v1544
    %1560 = vmatprep.subr.mxu0 0.0
    %1561 = vmatpush1.msra.mxu0 %v1545
    %1562 = vmatprep.subr.mxu0 0.0
    %1563 = vmatpush1.msra.mxu0 0.0
    %1564 = vmatprep.subr.mxu0 0.0
    %1565 = vmatpush1.msra.mxu0 0.0
    %1566 = vmatprep.subr.mxu0 0.0
    %1567 = vmatpush1.msra.mxu0 0.0
    %1568 = vmatprep.subr.mxu0 0.0
    %1569 = vmatpush1.msra.mxu0 0.0
    %1570 = vmatprep.subr.mxu0 0.0
    %1571 = vmatpush1.msra.mxu0 0.0
    %1572 = vmatprep.subr.mxu0 0.0
    %1573 = vmatpush1.msra.mxu0 0.0
    %1574 = vmatprep.subr.mxu0 0.0
    %1575 = vmatpush1.msra.mxu0 0.0
    %1576 = vmatprep.subr.mxu0 0.0
    %1577 = vmatpush1.msra.mxu0 0.0
    %1578 = vmatprep.subr.mxu0 0.0
    %1579 = vmatpush1.msra.mxu0 0.0
    %1580 = vmatprep.subr.mxu0 0.0
    %1581 = vmatpush1.msra.mxu0 0.0
    %1582 = vmatprep.subr.mxu0 0.0
    %1583 = vmatpush1.msra.mxu0 0.0
    %1584 = vmatprep.subr.mxu0 0.0
    %1585 = vmatpush1.msra.mxu0 0.0
    %1586 = vmatprep.subr.mxu0 0.0
    %1587 = vmatpush1.msra.mxu0 0.0
    %1588 = vmatprep.subr.mxu0 0.0
    %1589 = vmatpush1.msra.mxu0 0.0
    %1590 = vmatprep.subr.mxu0 0.0
    %1591 = vmatpush1.msra.mxu0 0.0
    %1592 = vmatprep.subr.mxu0 0.0
    %1593 = vmatpush1.msra.mxu0 0.0
    %1594 = vmatprep.subr.mxu0 0.0
    %1595 = vmatpush1.msra.mxu0 0.0
    %1596 = vmatprep.subr.mxu0 0.0
    %1597 = vmatpush1.msra.mxu0 0.0
    %1598 = vmatprep.subr.mxu0 0.0
    %1599 = vmatpush1.msra.mxu0 0.0
    %1600 = vmatprep.subr.mxu0 0.0
    %1601 = vmatpush1.msra.mxu0 0.0
    %1602 = vmatprep.subr.mxu0 0.0
    %1603 = vmatpush1.msra.mxu0 0.0
    %1604 = vmatprep.subr.mxu0 0.0
    %1605 = vmatpush1.msra.mxu0 0.0
    %1606 = vmatprep.subr.mxu0 0.0
    %1607 = vmatpush1.msra.mxu0 0.0
    %1608 = vmatprep.subr.mxu0 0.0
    %1609 = vmatpush1.msra.mxu0 0.0
    %1610 = vmatprep.subr.mxu0 0.0
    %1611 = vmatpush1.msra.mxu0 0.0
    %1612 = vmatprep.subr.mxu0 0.0
    %1613 = vmatpush1.msra.mxu0 0.0
    %1614 = vmatprep.subr.mxu0 0.0
    %1615 = vmatpush1.msra.mxu0 0.0
    %1616 = vmatprep.subr.mxu0 0.0
    %1617 = vmatpush1.msra.mxu0 0.0
    %1618 = vmatprep.mubr.f32.mxu0 0.0
    %1619 = vmatmul.mubr.f32.gmra.mrb[0].mxu0 %v88
    %v1620 = vpop.f32.mrb[0].mxu0
    %v1621 = vadd.f32 %v1552, %v1620
    %v1622 = vpop.f32.mrb[0].mxu0
    %1623 = vdwg.mxu0
    %s1624 = scalar_lea.vmem %s4, 96
    %v1625 = vld [vmem:[%s1624] sm:$0xff]
    %v1626 = vld [vmem:[%s1624 + $0x8] sm:$0xff]
    %v1627 = vld [vmem:[%s1624 + $0x10] sm:$0xff]
    %v1628 = vld [vmem:[%s1624 + $0x18] sm:$0xff]
    %s1629 = scalar_lea.vmem %s5, 3
    %v1630 = vld [vmem:[%s1629] sm:$0x1]
    %v1632 = vlaneseq
    %v1633 = vshrl.u32 %v1632, 7
    %v1634 = vsub.s32 0, %v1633
    %v1635 = vrot.slane %v1630, %v1634
    %1637 = vmatprep.subr.mxu0 0.0
    %1638 = vmatpush1.msra.mxu0 %v1625
    %1639 = vmatprep.subr.mxu0 0.0
    %1640 = vmatpush1.msra.mxu0 %v1626
    %1641 = vmatprep.subr.mxu0 0.0
    %1642 = vmatpush1.msra.mxu0 %v1627
    %1643 = vmatprep.subr.mxu0 0.0
    %1644 = vmatpush1.msra.mxu0 %v1628
    %1645 = vmatprep.subr.mxu0 0.0
    %1646 = vmatpush1.msra.mxu0 0.0
    %1647 = vmatprep.subr.mxu0 0.0
    %1648 = vmatpush1.msra.mxu0 0.0
    %1649 = vmatprep.subr.mxu0 0.0
    %1650 = vmatpush1.msra.mxu0 0.0
    %1651 = vmatprep.subr.mxu0 0.0
    %1652 = vmatpush1.msra.mxu0 0.0
    %1653 = vmatprep.subr.mxu0 0.0
    %1654 = vmatpush1.msra.mxu0 0.0
    %1655 = vmatprep.subr.mxu0 0.0
    %1656 = vmatpush1.msra.mxu0 0.0
    %1657 = vmatprep.subr.mxu0 0.0
    %1658 = vmatpush1.msra.mxu0 0.0
    %1659 = vmatprep.subr.mxu0 0.0
    %1660 = vmatpush1.msra.mxu0 0.0
    %1661 = vmatprep.subr.mxu0 0.0
    %1662 = vmatpush1.msra.mxu0 0.0
    %1663 = vmatprep.subr.mxu0 0.0
    %1664 = vmatpush1.msra.mxu0 0.0
    %1665 = vmatprep.subr.mxu0 0.0
    %1666 = vmatpush1.msra.mxu0 0.0
    %1667 = vmatprep.subr.mxu0 0.0
    %1668 = vmatpush1.msra.mxu0 0.0
    %1669 = vmatprep.subr.mxu0 0.0
    %1670 = vmatpush1.msra.mxu0 0.0
    %1671 = vmatprep.subr.mxu0 0.0
    %1672 = vmatpush1.msra.mxu0 0.0
    %1673 = vmatprep.subr.mxu0 0.0
    %1674 = vmatpush1.msra.mxu0 0.0
    %1675 = vmatprep.subr.mxu0 0.0
    %1676 = vmatpush1.msra.mxu0 0.0
    %1677 = vmatprep.subr.mxu0 0.0
    %1678 = vmatpush1.msra.mxu0 0.0
    %1679 = vmatprep.subr.mxu0 0.0
    %1680 = vmatpush1.msra.mxu0 0.0
    %1681 = vmatprep.subr.mxu0 0.0
    %1682 = vmatpush1.msra.mxu0 0.0
    %1683 = vmatprep.subr.mxu0 0.0
    %1684 = vmatpush1.msra.mxu0 0.0
    %1685 = vmatprep.subr.mxu0 0.0
    %1686 = vmatpush1.msra.mxu0 0.0
    %1687 = vmatprep.subr.mxu0 0.0
    %1688 = vmatpush1.msra.mxu0 0.0
    %1689 = vmatprep.subr.mxu0 0.0
    %1690 = vmatpush1.msra.mxu0 0.0
    %1691 = vmatprep.subr.mxu0 0.0
    %1692 = vmatpush1.msra.mxu0 0.0
    %1693 = vmatprep.subr.mxu0 0.0
    %1694 = vmatpush1.msra.mxu0 0.0
    %1695 = vmatprep.subr.mxu0 0.0
    %1696 = vmatpush1.msra.mxu0 0.0
    %1697 = vmatprep.subr.mxu0 0.0
    %1698 = vmatpush1.msra.mxu0 0.0
    %1699 = vmatprep.subr.mxu0 0.0
    %1700 = vmatpush1.msra.mxu0 0.0
    %1701 = vmatprep.mubr.f32.mxu0 0.0
    %1702 = vmatmul.mubr.f32.gmra.mrb[0].mxu0 %v172
    %v1703 = vpop.f32.mrb[0].mxu0
    %v1704 = vadd.f32 %v1635, %v1703
    %v1705 = vpop.f32.mrb[0].mxu0
    %1706 = vdwg.mxu0
    %s1707 = scalar_lea.vmem %s6, 96
    %v1708 = vld [vmem:[%s1707] sm:$0xff]
    %v1709 = vld [vmem:[%s1707 + $0x8] sm:$0xff]
    %v1710 = vld [vmem:[%s1707 + $0x10] sm:$0xff]
    %v1711 = vld [vmem:[%s1707 + $0x18] sm:$0xff]
    %s1712 = scalar_lea.vmem %s7, 3
    %v1713 = vld [vmem:[%s1712] sm:$0x1]
    %v1715 = vlaneseq
    %v1716 = vshrl.u32 %v1715, 7
    %v1717 = vsub.s32 0, %v1716
    %v1718 = vrot.slane %v1713, %v1717
    %1720 = vmatprep.subr.mxu0 0.0
    %1721 = vmatpush1.msra.mxu0 %v1708
    %1722 = vmatprep.subr.mxu0 0.0
    %1723 = vmatpush1.msra.mxu0 %v1709
    %1724 = vmatprep.subr.mxu0 0.0
    %1725 = vmatpush1.msra.mxu0 %v1710
    %1726 = vmatprep.subr.mxu0 0.0
    %1727 = vmatpush1.msra.mxu0 %v1711
    %1728 = vmatprep.subr.mxu0 0.0
    %1729 = vmatpush1.msra.mxu0 0.0
    %1730 = vmatprep.subr.mxu0 0.0
    %1731 = vmatpush1.msra.mxu0 0.0
    %1732 = vmatprep.subr.mxu0 0.0
    %1733 = vmatpush1.msra.mxu0 0.0
    %1734 = vmatprep.subr.mxu0 0.0
    %1735 = vmatpush1.msra.mxu0 0.0
    %1736 = vmatprep.subr.mxu0 0.0
    %1737 = vmatpush1.msra.mxu0 0.0
    %1738 = vmatprep.subr.mxu0 0.0
    %1739 = vmatpush1.msra.mxu0 0.0
    %1740 = vmatprep.subr.mxu0 0.0
    %1741 = vmatpush1.msra.mxu0 0.0
    %1742 = vmatprep.subr.mxu0 0.0
    %1743 = vmatpush1.msra.mxu0 0.0
    %1744 = vmatprep.subr.mxu0 0.0
    %1745 = vmatpush1.msra.mxu0 0.0
    %1746 = vmatprep.subr.mxu0 0.0
    %1747 = vmatpush1.msra.mxu0 0.0
    %1748 = vmatprep.subr.mxu0 0.0
    %1749 = vmatpush1.msra.mxu0 0.0
    %1750 = vmatprep.subr.mxu0 0.0
    %1751 = vmatpush1.msra.mxu0 0.0
    %1752 = vmatprep.subr.mxu0 0.0
    %1753 = vmatpush1.msra.mxu0 0.0
    %1754 = vmatprep.subr.mxu0 0.0
    %1755 = vmatpush1.msra.mxu0 0.0
    %1756 = vmatprep.subr.mxu0 0.0
    %1757 = vmatpush1.msra.mxu0 0.0
    %1758 = vmatprep.subr.mxu0 0.0
    %1759 = vmatpush1.msra.mxu0 0.0
    %1760 = vmatprep.subr.mxu0 0.0
    %1761 = vmatpush1.msra.mxu0 0.0
    %1762 = vmatprep.subr.mxu0 0.0
    %1763 = vmatpush1.msra.mxu0 0.0
    %1764 = vmatprep.subr.mxu0 0.0
    %1765 = vmatpush1.msra.mxu0 0.0
    %1766 = vmatprep.subr.mxu0 0.0
    %1767 = vmatpush1.msra.mxu0 0.0
    %1768 = vmatprep.subr.mxu0 0.0
    %1769 = vmatpush1.msra.mxu0 0.0
    %1770 = vmatprep.subr.mxu0 0.0
    %1771 = vmatpush1.msra.mxu0 0.0
    %1772 = vmatprep.subr.mxu0 0.0
    %1773 = vmatpush1.msra.mxu0 0.0
    %1774 = vmatprep.subr.mxu0 0.0
    %1775 = vmatpush1.msra.mxu0 0.0
    %1776 = vmatprep.subr.mxu0 0.0
    %1777 = vmatpush1.msra.mxu0 0.0
    %1778 = vmatprep.subr.mxu0 0.0
    %1779 = vmatpush1.msra.mxu0 0.0
    %1780 = vmatprep.subr.mxu0 0.0
    %1781 = vmatpush1.msra.mxu0 0.0
    %1782 = vmatprep.subr.mxu0 0.0
    %1783 = vmatpush1.msra.mxu0 0.0
    %1784 = vmatprep.mubr.f32.mxu0 0.0
    %1785 = vmatmul.mubr.f32.gmra.mrb[0].mxu0 %v172
    %v1786 = vpop.f32.mrb[0].mxu0
    %v1787 = vadd.f32 %v1718, %v1786
    %v1788 = vpop.f32.mrb[0].mxu0
    %1789 = vdwg.mxu0
    %v1791 = vsel %vm325, %v1621, 0
    %v1794 = vsel %vm325, %v1704, 0
    %1796 = vmatprep.subr.mxu0 0.0
    %1797 = vmatpush1.xpose.msra.mxu0 %v1794
    %1798 = vmatprep.subr.mxu0 0.0
    %1799 = vmatpush1.xpose.msra.mxu0 0.0
    %1800 = vmatprep.subr.mxu0 0.0
    %1801 = vmatpush1.xpose.msra.mxu0 0.0
    %1802 = vmatprep.subr.mxu0 0.0
    %1803 = vmatpush1.xpose.msra.mxu0 0.0
    %1804 = vmatprep.subr.mxu0 0.0
    %1805 = vmatpush1.xpose.msra.mxu0 0.0
    %1806 = vmatprep.subr.mxu0 0.0
    %1807 = vmatpush1.xpose.msra.mxu0 0.0
    %1808 = vmatprep.subr.mxu0 0.0
    %1809 = vmatpush1.xpose.msra.mxu0 0.0
    %1810 = vmatprep.subr.mxu0 0.0
    %1811 = vmatpush1.xpose.msra.mxu0 0.0
    %1812 = vmatprep.subr.mxu0 0.0
    %1813 = vmatpush1.xpose.msra.mxu0 0.0
    %1814 = vmatprep.subr.mxu0 0.0
    %1815 = vmatpush1.xpose.msra.mxu0 0.0
    %1816 = vmatprep.subr.mxu0 0.0
    %1817 = vmatpush1.xpose.msra.mxu0 0.0
    %1818 = vmatprep.subr.mxu0 0.0
    %1819 = vmatpush1.xpose.msra.mxu0 0.0
    %1820 = vmatprep.subr.mxu0 0.0
    %1821 = vmatpush1.xpose.msra.mxu0 0.0
    %1822 = vmatprep.subr.mxu0 0.0
    %1823 = vmatpush1.xpose.msra.mxu0 0.0
    %1824 = vmatprep.subr.mxu0 0.0
    %1825 = vmatpush1.xpose.msra.mxu0 0.0
    %1826 = vmatprep.subr.mxu0 0.0
    %1827 = vmatpush1.xpose.msra.mxu0 0.0
    %1828 = vmatprep.subr.mxu0 0.0
    %1829 = vmatpush1.xpose.msra.mxu0 0.0
    %1830 = vmatprep.subr.mxu0 0.0
    %1831 = vmatpush1.xpose.msra.mxu0 0.0
    %1832 = vmatprep.subr.mxu0 0.0
    %1833 = vmatpush1.xpose.msra.mxu0 0.0
    %1834 = vmatprep.subr.mxu0 0.0
    %1835 = vmatpush1.xpose.msra.mxu0 0.0
    %1836 = vmatprep.subr.mxu0 0.0
    %1837 = vmatpush1.xpose.msra.mxu0 0.0
    %1838 = vmatprep.subr.mxu0 0.0
    %1839 = vmatpush1.xpose.msra.mxu0 0.0
    %1840 = vmatprep.subr.mxu0 0.0
    %1841 = vmatpush1.xpose.msra.mxu0 0.0
    %1842 = vmatprep.subr.mxu0 0.0
    %1843 = vmatpush1.xpose.msra.mxu0 0.0
    %1844 = vmatprep.subr.mxu0 0.0
    %1845 = vmatpush1.xpose.msra.mxu0 0.0
    %1846 = vmatprep.subr.mxu0 0.0
    %1847 = vmatpush1.xpose.msra.mxu0 0.0
    %1848 = vmatprep.subr.mxu0 0.0
    %1849 = vmatpush1.xpose.msra.mxu0 0.0
    %1850 = vmatprep.subr.mxu0 0.0
    %1851 = vmatpush1.xpose.msra.mxu0 0.0
    %1852 = vmatprep.subr.mxu0 0.0
    %1853 = vmatpush1.xpose.msra.mxu0 0.0
    %1854 = vmatprep.subr.mxu0 0.0
    %1855 = vmatpush1.xpose.msra.mxu0 0.0
    %1856 = vmatprep.subr.mxu0 0.0
    %1857 = vmatpush1.xpose.msra.mxu0 0.0
    %1858 = vmatprep.subr.mxu0 0.0
    %1859 = vmatpush1.xpose.msra.mxu0 0.0
    %1860 = vmatprep.mubr.f32.mxu0 0.0
    %1861 = vmatmul.mubr.f32.gmra.mrb[0].mxu0 %v1791
    %v1862 = vpop.f32.mrb[0].mxu0
    %v1863 = vadd.f32 0.0, %v1862
    %v1864 = vpop.f32.mrb[0].mxu0
    %1865 = vdwg.mxu0
    %v1866 = vmul.f32 %v1863, 0.0625
    %v1867 = vsel %vm403, %v1866, -inf
    %1868 = vmax.xlane.f32.xlu0 %v1867
    %v1869 = vpop.xlane.xlu0 %1868
    %v1870 = vsub.f32 %v1866, %v1869
    %v1871 = vmul.f32 %v1870, 1.442695
    %v1872 = vpow.pop %v1871
    %v1873 = vsel %vm403, %v1872, 0.0
    %1874 = vadd.xlane.f32.xlu0 %v1873
    %v1875 = vpop.xlane.xlu0 %1874
    %v1876 = vrcp.pop %v1875
    %v1877 = vmul.f32 %v1872, %v1876
    %s1878 = scalar_lea.vmem [#allocation4], 24
    %1879 = vst.msk [vmem:[%s1878] sm:$0xff] %vm403, %v1877
    %v1881 = vsel %vm403, %v1877, 0
    %1883 = vmatprep.subr.mxu0 0.0
    %1884 = vmatpush1.msra.mxu0 %v1787
    %1885 = vmatprep.subr.mxu0 0.0
    %1886 = vmatpush1.msra.mxu0 0.0
    %1887 = vmatprep.subr.mxu0 0.0
    %1888 = vmatpush1.msra.mxu0 0.0
    %1889 = vmatprep.subr.mxu0 0.0
    %1890 = vmatpush1.msra.mxu0 0.0
    %1891 = vmatprep.subr.mxu0 0.0
    %1892 = vmatpush1.msra.mxu0 0.0
    %1893 = vmatprep.subr.mxu0 0.0
    %1894 = vmatpush1.msra.mxu0 0.0
    %1895 = vmatprep.subr.mxu0 0.0
    %1896 = vmatpush1.msra.mxu0 0.0
    %1897 = vmatprep.subr.mxu0 0.0
    %1898 = vmatpush1.msra.mxu0 0.0
    %1899 = vmatprep.subr.mxu0 0.0
    %1900 = vmatpush1.msra.mxu0 0.0
    %1901 = vmatprep.subr.mxu0 0.0
    %1902 = vmatpush1.msra.mxu0 0.0
    %1903 = vmatprep.subr.mxu0 0.0
    %1904 = vmatpush1.msra.mxu0 0.0
    %1905 = vmatprep.subr.mxu0 0.0
    %1906 = vmatpush1.msra.mxu0 0.0
    %1907 = vmatprep.subr.mxu0 0.0
    %1908 = vmatpush1.msra.mxu0 0.0
    %1909 = vmatprep.subr.mxu0 0.0
    %1910 = vmatpush1.msra.mxu0 0.0
    %1911 = vmatprep.subr.mxu0 0.0
    %1912 = vmatpush1.msra.mxu0 0.0
    %1913 = vmatprep.subr.mxu0 0.0
    %1914 = vmatpush1.msra.mxu0 0.0
    %1915 = vmatprep.subr.mxu0 0.0
    %1916 = vmatpush1.msra.mxu0 0.0
    %1917 = vmatprep.subr.mxu0 0.0
    %1918 = vmatpush1.msra.mxu0 0.0
    %1919 = vmatprep.subr.mxu0 0.0
    %1920 = vmatpush1.msra.mxu0 0.0
    %1921 = vmatprep.subr.mxu0 0.0
    %1922 = vmatpush1.msra.mxu0 0.0
    %1923 = vmatprep.subr.mxu0 0.0
    %1924 = vmatpush1.msra.mxu0 0.0
    %1925 = vmatprep.subr.mxu0 0.0
    %1926 = vmatpush1.msra.mxu0 0.0
    %1927 = vmatprep.subr.mxu0 0.0
    %1928 = vmatpush1.msra.mxu0 0.0
    %1929 = vmatprep.subr.mxu0 0.0
    %1930 = vmatpush1.msra.mxu0 0.0
    %1931 = vmatprep.subr.mxu0 0.0
    %1932 = vmatpush1.msra.mxu0 0.0
    %1933 = vmatprep.subr.mxu0 0.0
    %1934 = vmatpush1.msra.mxu0 0.0
    %1935 = vmatprep.subr.mxu0 0.0
    %1936 = vmatpush1.msra.mxu0 0.0
    %1937 = vmatprep.subr.mxu0 0.0
    %1938 = vmatpush1.msra.mxu0 0.0
    %1939 = vmatprep.subr.mxu0 0.0
    %1940 = vmatpush1.msra.mxu0 0.0
    %1941 = vmatprep.subr.mxu0 0.0
    %1942 = vmatpush1.msra.mxu0 0.0
    %1943 = vmatprep.subr.mxu0 0.0
    %1944 = vmatpush1.msra.mxu0 0.0
    %1945 = vmatprep.subr.mxu0 0.0
    %1946 = vmatpush1.msra.mxu0 0.0
    %1947 = vmatprep.mubr.f32.mxu0 0.0
    %1948 = vmatmul.mubr.f32.gmra.mrb[0].mxu0 %v1881
    %v1949 = vpop.f32.mrb[0].mxu0
    %v1950 = vadd.f32 0.0, %v1949
    %v1951 = vpop.f32.mrb[0].mxu0
    %1952 = vdwg.mxu0
    %s1953 = scalar_lea.vmem %s8, 48
    %v1954 = vld [vmem:[%s1953] sm:$0xff]
    %v1955 = vld [vmem:[%s1953 + $0x8] sm:$0xff]
    %v1957 = vsel %vm325, %v1950, 0
    %1959 = vmatprep.subr.mxu0 0.0
    %1960 = vmatpush1.msra.mxu0 %v1954
    %1961 = vmatprep.subr.mxu0 0.0
    %1962 = vmatpush1.msra.mxu0 %v1955
    %1963 = vmatprep.subr.mxu0 0.0
    %1964 = vmatpush1.msra.mxu0 0.0
    %1965 = vmatprep.subr.mxu0 0.0
    %1966 = vmatpush1.msra.mxu0 0.0
    %1967 = vmatprep.subr.mxu0 0.0
    %1968 = vmatpush1.msra.mxu0 0.0
    %1969 = vmatprep.subr.mxu0 0.0
    %1970 = vmatpush1.msra.mxu0 0.0
    %1971 = vmatprep.subr.mxu0 0.0
    %1972 = vmatpush1.msra.mxu0 0.0
    %1973 = vmatprep.subr.mxu0 0.0
    %1974 = vmatpush1.msra.mxu0 0.0
    %1975 = vmatprep.subr.mxu0 0.0
    %1976 = vmatpush1.msra.mxu0 0.0
    %1977 = vmatprep.subr.mxu0 0.0
    %1978 = vmatpush1.msra.mxu0 0.0
    %1979 = vmatprep.subr.mxu0 0.0
    %1980 = vmatpush1.msra.mxu0 0.0
    %1981 = vmatprep.subr.mxu0 0.0
    %1982 = vmatpush1.msra.mxu0 0.0
    %1983 = vmatprep.subr.mxu0 0.0
    %1984 = vmatpush1.msra.mxu0 0.0
    %1985 = vmatprep.subr.mxu0 0.0
    %1986 = vmatpush1.msra.mxu0 0.0
    %1987 = vmatprep.subr.mxu0 0.0
    %1988 = vmatpush1.msra.mxu0 0.0
    %1989 = vmatprep.subr.mxu0 0.0
    %1990 = vmatpush1.msra.mxu0 0.0
    %1991 = vmatprep.subr.mxu0 0.0
    %1992 = vmatpush1.msra.mxu0 0.0
    %1993 = vmatprep.subr.mxu0 0.0
    %1994 = vmatpush1.msra.mxu0 0.0
    %1995 = vmatprep.subr.mxu0 0.0
    %1996 = vmatpush1.msra.mxu0 0.0
    %1997 = vmatprep.subr.mxu0 0.0
    %1998 = vmatpush1.msra.mxu0 0.0
    %1999 = vmatprep.subr.mxu0 0.0
    %2000 = vmatpush1.msra.mxu0 0.0
    %2001 = vmatprep.subr.mxu0 0.0
    %2002 = vmatpush1.msra.mxu0 0.0
    %2003 = vmatprep.subr.mxu0 0.0
    %2004 = vmatpush1.msra.mxu0 0.0
    %2005 = vmatprep.subr.mxu0 0.0
    %2006 = vmatpush1.msra.mxu0 0.0
    %2007 = vmatprep.subr.mxu0 0.0
    %2008 = vmatpush1.msra.mxu0 0.0
    %2009 = vmatprep.subr.mxu0 0.0
    %2010 = vmatpush1.msra.mxu0 0.0
    %2011 = vmatprep.subr.mxu0 0.0
    %2012 = vmatpush1.msra.mxu0 0.0
    %2013 = vmatprep.subr.mxu0 0.0
    %2014 = vmatpush1.msra.mxu0 0.0
    %2015 = vmatprep.subr.mxu0 0.0
    %2016 = vmatpush1.msra.mxu0 0.0
    %2017 = vmatprep.subr.mxu0 0.0
    %2018 = vmatpush1.msra.mxu0 0.0
    %2019 = vmatprep.subr.mxu0 0.0
    %2020 = vmatpush1.msra.mxu0 0.0
    %2021 = vmatprep.subr.mxu0 0.0
    %2022 = vmatpush1.msra.mxu0 0.0
    %2023 = vmatprep.mubr.f32.mxu0 0.0
    %2024 = vmatmul.mubr.f32.gmra.mrb[0].mxu0 %v1957
    %v2025 = vpop.f32.mrb[0].mxu0
    %v2026 = vadd.f32 0.0, %v2025
    %v2027 = vpop.f32.mrb[0].mxu0
    %2028 = vdwg.mxu0
    %v2029 = vadd.f32 %v1540, %v2026
    %v2030 = vld [vmem:[%s2] sm:$0xff]
    %v2031 = vld [vmem:[%s2 + $0x8] sm:$0xff]
    %v2032 = vld [vmem:[%s2 + $0x10] sm:$0xff]
    %v2033 = vld [vmem:[%s2 + $0x18] sm:$0xff]
    %v2034 = vld [vmem:[%s3] sm:$0x1]
    %v2036 = vlaneseq
    %v2037 = vshrl.u32 %v2036, 7
    %v2038 = vsub.s32 0, %v2037
    %v2039 = vrot.slane %v2034, %v2038
    %v2042 = vsel %vm86, %v64, 0
    %2044 = vmatprep.subr.mxu0 0.0
    %2045 = vmatpush1.msra.mxu0 %v2030
    %2046 = vmatprep.subr.mxu0 0.0
    %2047 = vmatpush1.msra.mxu0 %v2031
    %2048 = vmatprep.subr.mxu0 0.0
    %2049 = vmatpush1.msra.mxu0 %v2032
    %2050 = vmatprep.subr.mxu0 0.0
    %2051 = vmatpush1.msra.mxu0 %v2033
    %2052 = vmatprep.subr.mxu0 0.0
    %2053 = vmatpush1.msra.mxu0 0.0
    %2054 = vmatprep.subr.mxu0 0.0
    %2055 = vmatpush1.msra.mxu0 0.0
    %2056 = vmatprep.subr.mxu0 0.0
    %2057 = vmatpush1.msra.mxu0 0.0
    %2058 = vmatprep.subr.mxu0 0.0
    %2059 = vmatpush1.msra.mxu0 0.0
    %2060 = vmatprep.subr.mxu0 0.0
    %2061 = vmatpush1.msra.mxu0 0.0
    %2062 = vmatprep.subr.mxu0 0.0
    %2063 = vmatpush1.msra.mxu0 0.0
    %2064 = vmatprep.subr.mxu0 0.0
    %2065 = vmatpush1.msra.mxu0 0.0
    %2066 = vmatprep.subr.mxu0 0.0
    %2067 = vmatpush1.msra.mxu0 0.0
    %2068 = vmatprep.subr.mxu0 0.0
    %2069 = vmatpush1.msra.mxu0 0.0
    %2070 = vmatprep.subr.mxu0 0.0
    %2071 = vmatpush1.msra.mxu0 0.0
    %2072 = vmatprep.subr.mxu0 0.0
    %2073 = vmatpush1.msra.mxu0 0.0
    %2074 = vmatprep.subr.mxu0 0.0
    %2075 = vmatpush1.msra.mxu0 0.0
    %2076 = vmatprep.subr.mxu0 0.0
    %2077 = vmatpush1.msra.mxu0 0.0
    %2078 = vmatprep.subr.mxu0 0.0
    %2079 = vmatpush1.msra.mxu0 0.0
    %2080 = vmatprep.subr.mxu0 0.0
    %2081 = vmatpush1.msra.mxu0 0.0
    %2082 = vmatprep.subr.mxu0 0.0
    %2083 = vmatpush1.msra.mxu0 0.0
    %2084 = vmatprep.subr.mxu0 0.0
    %2085 = vmatpush1.msra.mxu0 0.0
    %2086 = vmatprep.subr.mxu0 0.0
    %2087 = vmatpush1.msra.mxu0 0.0
    %2088 = vmatprep.subr.mxu0 0.0
    %2089 = vmatpush1.msra.mxu0 0.0
    %2090 = vmatprep.subr.mxu0 0.0
    %2091 = vmatpush1.msra.mxu0 0.0
    %2092 = vmatprep.subr.mxu0 0.0
    %2093 = vmatpush1.msra.mxu0 0.0
    %2094 = vmatprep.subr.mxu0 0.0
    %2095 = vmatpush1.msra.mxu0 0.0
    %2096 = vmatprep.subr.mxu0 0.0
    %2097 = vmatpush1.msra.mxu0 0.0
    %2098 = vmatprep.subr.mxu0 0.0
    %2099 = vmatpush1.msra.mxu0 0.0
    %2100 = vmatprep.subr.mxu0 0.0
    %2101 = vmatpush1.msra.mxu0 0.0
    %2102 = vmatprep.subr.mxu0 0.0
    %2103 = vmatpush1.msra.mxu0 0.0
    %2104 = vmatprep.subr.mxu0 0.0
    %2105 = vmatpush1.msra.mxu0 0.0
    %2106 = vmatprep.subr.mxu0 0.0
    %2107 = vmatpush1.msra.mxu0 0.0
    %2108 = vmatprep.mubr.f32.mxu0 0.0
    %2109 = vmatmul.mubr.f32.gmra.mrb[0].mxu0 %v2042
    %v2110 = vpop.f32.mrb[0].mxu0
    %v2111 = vadd.f32 %v2039, %v2110
    %v2112 = vpop.f32.mrb[0].mxu0
    %2113 = vdwg.mxu0
    %v2114 = vld [vmem:[%s4] sm:$0xff]
    %v2115 = vld [vmem:[%s4 + $0x8] sm:$0xff]
    %v2116 = vld [vmem:[%s4 + $0x10] sm:$0xff]
    %v2117 = vld [vmem:[%s4 + $0x18] sm:$0xff]
    %v2118 = vld [vmem:[%s5] sm:$0x1]
    %v2120 = vlaneseq
    %v2121 = vshrl.u32 %v2120, 7
    %v2122 = vsub.s32 0, %v2121
    %v2123 = vrot.slane %v2118, %v2122
    %v2126 = vsel %vm86, %v74, 0
    %2128 = vmatprep.subr.mxu0 0.0
    %2129 = vmatpush1.msra.mxu0 %v2114
    %2130 = vmatprep.subr.mxu0 0.0
    %2131 = vmatpush1.msra.mxu0 %v2115
    %2132 = vmatprep.subr.mxu0 0.0
    %2133 = vmatpush1.msra.mxu0 %v2116
    %2134 = vmatprep.subr.mxu0 0.0
    %2135 = vmatpush1.msra.mxu0 %v2117
    %2136 = vmatprep.subr.mxu0 0.0
    %2137 = vmatpush1.msra.mxu0 0.0
    %2138 = vmatprep.subr.mxu0 0.0
    %2139 = vmatpush1.msra.mxu0 0.0
    %2140 = vmatprep.subr.mxu0 0.0
    %2141 = vmatpush1.msra.mxu0 0.0
    %2142 = vmatprep.subr.mxu0 0.0
    %2143 = vmatpush1.msra.mxu0 0.0
    %2144 = vmatprep.subr.mxu0 0.0
    %2145 = vmatpush1.msra.mxu0 0.0
    %2146 = vmatprep.subr.mxu0 0.0
    %2147 = vmatpush1.msra.mxu0 0.0
    %2148 = vmatprep.subr.mxu0 0.0
    %2149 = vmatpush1.msra.mxu0 0.0
    %2150 = vmatprep.subr.mxu0 0.0
    %2151 = vmatpush1.msra.mxu0 0.0
    %2152 = vmatprep.subr.mxu0 0.0
    %2153 = vmatpush1.msra.mxu0 0.0
    %2154 = vmatprep.subr.mxu0 0.0
    %2155 = vmatpush1.msra.mxu0 0.0
    %2156 = vmatprep.subr.mxu0 0.0
    %2157 = vmatpush1.msra.mxu0 0.0
    %2158 = vmatprep.subr.mxu0 0.0
    %2159 = vmatpush1.msra.mxu0 0.0
    %2160 = vmatprep.subr.mxu0 0.0
    %2161 = vmatpush1.msra.mxu0 0.0
    %2162 = vmatprep.subr.mxu0 0.0
    %2163 = vmatpush1.msra.mxu0 0.0
    %2164 = vmatprep.subr.mxu0 0.0
    %2165 = vmatpush1.msra.mxu0 0.0
    %2166 = vmatprep.subr.mxu0 0.0
    %2167 = vmatpush1.msra.mxu0 0.0
    %2168 = vmatprep.subr.mxu0 0.0
    %2169 = vmatpush1.msra.mxu0 0.0
    %2170 = vmatprep.subr.mxu0 0.0
    %2171 = vmatpush1.msra.mxu0 0.0
    %2172 = vmatprep.subr.mxu0 0.0
    %2173 = vmatpush1.msra.mxu0 0.0
    %2174 = vmatprep.subr.mxu0 0.0
    %2175 = vmatpush1.msra.mxu0 0.0
    %2176 = vmatprep.subr.mxu0 0.0
    %2177 = vmatpush1.msra.mxu0 0.0
    %2178 = vmatprep.subr.mxu0 0.0
    %2179 = vmatpush1.msra.mxu0 0.0
    %2180 = vmatprep.subr.mxu0 0.0
    %2181 = vmatpush1.msra.mxu0 0.0
    %2182 = vmatprep.subr.mxu0 0.0
    %2183 = vmatpush1.msra.mxu0 0.0
    %2184 = vmatprep.subr.mxu0 0.0
    %2185 = vmatpush1.msra.mxu0 0.0
    %2186 = vmatprep.subr.mxu0 0.0
    %2187 = vmatpush1.msra.mxu0 0.0
    %2188 = vmatprep.subr.mxu0 0.0
    %2189 = vmatpush1.msra.mxu0 0.0
    %2190 = vmatprep.subr.mxu0 0.0
    %2191 = vmatpush1.msra.mxu0 0.0
    %2192 = vmatprep.mubr.f32.mxu0 0.0
    %2193 = vmatmul.mubr.f32.gmra.mrb[0].mxu0 %v2126
    %v2194 = vpop.f32.mrb[0].mxu0
    %v2195 = vadd.f32 %v2123, %v2194
    %v2196 = vpop.f32.mrb[0].mxu0
    %2197 = vdwg.mxu0
    %v2198 = vld [vmem:[%s6] sm:$0xff]
    %v2199 = vld [vmem:[%s6 + $0x8] sm:$0xff]
    %v2200 = vld [vmem:[%s6 + $0x10] sm:$0xff]
    %v2201 = vld [vmem:[%s6 + $0x18] sm:$0xff]
    %v2202 = vld [vmem:[%s7] sm:$0x1]
    %v2204 = vlaneseq
    %v2205 = vshrl.u32 %v2204, 7
    %v2206 = vsub.s32 0, %v2205
    %v2207 = vrot.slane %v2202, %v2206
    %2209 = vmatprep.subr.mxu0 0.0
    %2210 = vmatpush1.msra.mxu0 %v2198
    %2211 = vmatprep.subr.mxu0 0.0
    %2212 = vmatpush1.msra.mxu0 %v2199
    %2213 = vmatprep.subr.mxu0 0.0
    %2214 = vmatpush1.msra.mxu0 %v2200
    %2215 = vmatprep.subr.mxu0 0.0
    %2216 = vmatpush1.msra.mxu0 %v2201
    %2217 = vmatprep.subr.mxu0 0.0
    %2218 = vmatpush1.msra.mxu0 0.0
    %2219 = vmatprep.subr.mxu0 0.0
    %2220 = vmatpush1.msra.mxu0 0.0
    %2221 = vmatprep.subr.mxu0 0.0
    %2222 = vmatpush1.msra.mxu0 0.0
    %2223 = vmatprep.subr.mxu0 0.0
    %2224 = vmatpush1.msra.mxu0 0.0
    %2225 = vmatprep.subr.mxu0 0.0
    %2226 = vmatpush1.msra.mxu0 0.0
    %2227 = vmatprep.subr.mxu0 0.0
    %2228 = vmatpush1.msra.mxu0 0.0
    %2229 = vmatprep.subr.mxu0 0.0
    %2230 = vmatpush1.msra.mxu0 0.0
    %2231 = vmatprep.subr.mxu0 0.0
    %2232 = vmatpush1.msra.mxu0 0.0
    %2233 = vmatprep.subr.mxu0 0.0
    %2234 = vmatpush1.msra.mxu0 0.0
    %2235 = vmatprep.subr.mxu0 0.0
    %2236 = vmatpush1.msra.mxu0 0.0
    %2237 = vmatprep.subr.mxu0 0.0
    %2238 = vmatpush1.msra.mxu0 0.0
    %2239 = vmatprep.subr.mxu0 0.0
    %2240 = vmatpush1.msra.mxu0 0.0
    %2241 = vmatprep.subr.mxu0 0.0
    %2242 = vmatpush1.msra.mxu0 0.0
    %2243 = vmatprep.subr.mxu0 0.0
    %2244 = vmatpush1.msra.mxu0 0.0
    %2245 = vmatprep.subr.mxu0 0.0
    %2246 = vmatpush1.msra.mxu0 0.0
    %2247 = vmatprep.subr.mxu0 0.0
    %2248 = vmatpush1.msra.mxu0 0.0
    %2249 = vmatprep.subr.mxu0 0.0
    %2250 = vmatpush1.msra.mxu0 0.0
    %2251 = vmatprep.subr.mxu0 0.0
    %2252 = vmatpush1.msra.mxu0 0.0
    %2253 = vmatprep.subr.mxu0 0.0
    %2254 = vmatpush1.msra.mxu0 0.0
    %2255 = vmatprep.subr.mxu0 0.0
    %2256 = vmatpush1.msra.mxu0 0.0
    %2257 = vmatprep.subr.mxu0 0.0
    %2258 = vmatpush1.msra.mxu0 0.0
    %2259 = vmatprep.subr.mxu0 0.0
    %2260 = vmatpush1.msra.mxu0 0.0
    %2261 = vmatprep.subr.mxu0 0.0
    %2262 = vmatpush1.msra.mxu0 0.0
    %2263 = vmatprep.subr.mxu0 0.0
    %2264 = vmatpush1.msra.mxu0 0.0
    %2265 = vmatprep.subr.mxu0 0.0
    %2266 = vmatpush1.msra.mxu0 0.0
    %2267 = vmatprep.subr.mxu0 0.0
    %2268 = vmatpush1.msra.mxu0 0.0
    %2269 = vmatprep.subr.mxu0 0.0
    %2270 = vmatpush1.msra.mxu0 0.0
    %2271 = vmatprep.subr.mxu0 0.0
    %2272 = vmatpush1.msra.mxu0 0.0
    %2273 = vmatprep.mubr.f32.mxu0 0.0
    %2274 = vmatmul.mubr.f32.gmra.mrb[0].mxu0 %v2126
    %v2275 = vpop.f32.mrb[0].mxu0
    %v2276 = vadd.f32 %v2207, %v2275
    %v2277 = vpop.f32.mrb[0].mxu0
    %2278 = vdwg.mxu0
    %v2280 = vsel %vm325, %v2111, 0
    %v2283 = vsel %vm325, %v2195, 0
    %2285 = vmatprep.subr.mxu0 0.0
    %2286 = vmatpush1.xpose.msra.mxu0 %v2283
    %2287 = vmatprep.subr.mxu0 0.0
    %2288 = vmatpush1.xpose.msra.mxu0 0.0
    %2289 = vmatprep.subr.mxu0 0.0
    %2290 = vmatpush1.xpose.msra.mxu0 0.0
    %2291 = vmatprep.subr.mxu0 0.0
    %2292 = vmatpush1.xpose.msra.mxu0 0.0
    %2293 = vmatprep.subr.mxu0 0.0
    %2294 = vmatpush1.xpose.msra.mxu0 0.0
    %2295 = vmatprep.subr.mxu0 0.0
    %2296 = vmatpush1.xpose.msra.mxu0 0.0
    %2297 = vmatprep.subr.mxu0 0.0
    %2298 = vmatpush1.xpose.msra.mxu0 0.0
    %2299 = vmatprep.subr.mxu0 0.0
    %2300 = vmatpush1.xpose.msra.mxu0 0.0
    %2301 = vmatprep.subr.mxu0 0.0
    %2302 = vmatpush1.xpose.msra.mxu0 0.0
    %2303 = vmatprep.subr.mxu0 0.0
    %2304 = vmatpush1.xpose.msra.mxu0 0.0
    %2305 = vmatprep.subr.mxu0 0.0
    %2306 = vmatpush1.xpose.msra.mxu0 0.0
    %2307 = vmatprep.subr.mxu0 0.0
    %2308 = vmatpush1.xpose.msra.mxu0 0.0
    %2309 = vmatprep.subr.mxu0 0.0
    %2310 = vmatpush1.xpose.msra.mxu0 0.0
    %2311 = vmatprep.subr.mxu0 0.0
    %2312 = vmatpush1.xpose.msra.mxu0 0.0
    %2313 = vmatprep.subr.mxu0 0.0
    %2314 = vmatpush1.xpose.msra.mxu0 0.0
    %2315 = vmatprep.subr.mxu0 0.0
    %2316 = vmatpush1.xpose.msra.mxu0 0.0
    %2317 = vmatprep.subr.mxu0 0.0
    %2318 = vmatpush1.xpose.msra.mxu0 0.0
    %2319 = vmatprep.subr.mxu0 0.0
    %2320 = vmatpush1.xpose.msra.mxu0 0.0
    %2321 = vmatprep.subr.mxu0 0.0
    %2322 = vmatpush1.xpose.msra.mxu0 0.0
    %2323 = vmatprep.subr.mxu0 0.0
    %2324 = vmatpush1.xpose.msra.mxu0 0.0
    %2325 = vmatprep.subr.mxu0 0.0
    %2326 = vmatpush1.xpose.msra.mxu0 0.0
    %2327 = vmatprep.subr.mxu0 0.0
    %2328 = vmatpush1.xpose.msra.mxu0 0.0
    %2329 = vmatprep.subr.mxu0 0.0
    %2330 = vmatpush1.xpose.msra.mxu0 0.0
    %2331 = vmatprep.subr.mxu0 0.0
    %2332 = vmatpush1.xpose.msra.mxu0 0.0
    %2333 = vmatprep.subr.mxu0 0.0
    %2334 = vmatpush1.xpose.msra.mxu0 0.0
    %2335 = vmatprep.subr.mxu0 0.0
    %2336 = vmatpush1.xpose.msra.mxu0 0.0
    %2337 = vmatprep.subr.mxu0 0.0
    %2338 = vmatpush1.xpose.msra.mxu0 0.0
    %2339 = vmatprep.subr.mxu0 0.0
    %2340 = vmatpush1.xpose.msra.mxu0 0.0
    %2341 = vmatprep.subr.mxu0 0.0
    %2342 = vmatpush1.xpose.msra.mxu0 0.0
    %2343 = vmatprep.subr.mxu0 0.0
    %2344 = vmatpush1.xpose.msra.mxu0 0.0
    %2345 = vmatprep.subr.mxu0 0.0
    %2346 = vmatpush1.xpose.msra.mxu0 0.0
    %2347 = vmatprep.subr.mxu0 0.0
    %2348 = vmatpush1.xpose.msra.mxu0 0.0
    %2349 = vmatprep.mubr.f32.mxu0 0.0
    %2350 = vmatmul.mubr.f32.gmra.mrb[0].mxu0 %v2280
    %v2351 = vpop.f32.mrb[0].mxu0
    %v2352 = vadd.f32 0.0, %v2351
    %v2353 = vpop.f32.mrb[0].mxu0
    %2354 = vdwg.mxu0
    %v2355 = vmul.f32 %v2352, 0.0625
    %v2356 = vsel %vm403, %v2355, -inf
    %2357 = vmax.xlane.f32.xlu0 %v2356
    %v2358 = vpop.xlane.xlu0 %2357
    %v2359 = vsub.f32 %v2355, %v2358
    %v2360 = vmul.f32 %v2359, 1.442695
    %v2361 = vpow.pop %v2360
    %v2362 = vsel %vm403, %v2361, 0.0
    %2363 = vadd.xlane.f32.xlu0 %v2362
    %v2364 = vpop.xlane.xlu0 %2363
    %v2365 = vrcp.pop %v2364
    %v2366 = vmul.f32 %v2361, %v2365
    %s2367 = scalar_lea.vmem [#allocation4], 32
    %2368 = vst.msk [vmem:[%s2367] sm:$0xff] %vm403, %v2366
    %v2370 = vsel %vm403, %v2366, 0
    %2372 = vmatprep.subr.mxu0 0.0
    %2373 = vmatpush1.msra.mxu0 %v2276
    %2374 = vmatprep.subr.mxu0 0.0
    %2375 = vmatpush1.msra.mxu0 0.0
    %2376 = vmatprep.subr.mxu0 0.0
    %2377 = vmatpush1.msra.mxu0 0.0
    %2378 = vmatprep.subr.mxu0 0.0
    %2379 = vmatpush1.msra.mxu0 0.0
    %2380 = vmatprep.subr.mxu0 0.0
    %2381 = vmatpush1.msra.mxu0 0.0
    %2382 = vmatprep.subr.mxu0 0.0
    %2383 = vmatpush1.msra.mxu0 0.0
    %2384 = vmatprep.subr.mxu0 0.0
    %2385 = vmatpush1.msra.mxu0 0.0
    %2386 = vmatprep.subr.mxu0 0.0
    %2387 = vmatpush1.msra.mxu0 0.0
    %2388 = vmatprep.subr.mxu0 0.0
    %2389 = vmatpush1.msra.mxu0 0.0
    %2390 = vmatprep.subr.mxu0 0.0
    %2391 = vmatpush1.msra.mxu0 0.0
    %2392 = vmatprep.subr.mxu0 0.0
    %2393 = vmatpush1.msra.mxu0 0.0
    %2394 = vmatprep.subr.mxu0 0.0
    %2395 = vmatpush1.msra.mxu0 0.0
    %2396 = vmatprep.subr.mxu0 0.0
    %2397 = vmatpush1.msra.mxu0 0.0
    %2398 = vmatprep.subr.mxu0 0.0
    %2399 = vmatpush1.msra.mxu0 0.0
    %2400 = vmatprep.subr.mxu0 0.0
    %2401 = vmatpush1.msra.mxu0 0.0
    %2402 = vmatprep.subr.mxu0 0.0
    %2403 = vmatpush1.msra.mxu0 0.0
    %2404 = vmatprep.subr.mxu0 0.0
    %2405 = vmatpush1.msra.mxu0 0.0
    %2406 = vmatprep.subr.mxu0 0.0
    %2407 = vmatpush1.msra.mxu0 0.0
    %2408 = vmatprep.subr.mxu0 0.0
    %2409 = vmatpush1.msra.mxu0 0.0
    %2410 = vmatprep.subr.mxu0 0.0
    %2411 = vmatpush1.msra.mxu0 0.0
    %2412 = vmatprep.subr.mxu0 0.0
    %2413 = vmatpush1.msra.mxu0 0.0
    %2414 = vmatprep.subr.mxu0 0.0
    %2415 = vmatpush1.msra.mxu0 0.0
    %2416 = vmatprep.subr.mxu0 0.0
    %2417 = vmatpush1.msra.mxu0 0.0
    %2418 = vmatprep.subr.mxu0 0.0
    %2419 = vmatpush1.msra.mxu0 0.0
    %2420 = vmatprep.subr.mxu0 0.0
    %2421 = vmatpush1.msra.mxu0 0.0
    %2422 = vmatprep.subr.mxu0 0.0
    %2423 = vmatpush1.msra.mxu0 0.0
    %2424 = vmatprep.subr.mxu0 0.0
    %2425 = vmatpush1.msra.mxu0 0.0
    %2426 = vmatprep.subr.mxu0 0.0
    %2427 = vmatpush1.msra.mxu0 0.0
    %2428 = vmatprep.subr.mxu0 0.0
    %2429 = vmatpush1.msra.mxu0 0.0
    %2430 = vmatprep.subr.mxu0 0.0
    %2431 = vmatpush1.msra.mxu0 0.0
    %2432 = vmatprep.subr.mxu0 0.0
    %2433 = vmatpush1.msra.mxu0 0.0
    %2434 = vmatprep.subr.mxu0 0.0
    %2435 = vmatpush1.msra.mxu0 0.0
    %2436 = vmatprep.mubr.f32.mxu0 0.0
    %2437 = vmatmul.mubr.f32.gmra.mrb[0].mxu0 %v2370
    %v2438 = vpop.f32.mrb[0].mxu0
    %v2439 = vadd.f32 0.0, %v2438
    %v2440 = vpop.f32.mrb[0].mxu0
    %2441 = vdwg.mxu0
    %v2442 = vld [vmem:[%s8] sm:$0xff]
    %v2443 = vld [vmem:[%s8 + $0x8] sm:$0xff]
    %v2444 = vld [vmem:[%s491] sm:$0xff]
    %v2445 = vld [vmem:[%s491 + $0x8] sm:$0xff]
    %v2446 = vld [vmem:[%s491 + $0x10] sm:$0xff]
    %v2447 = vld [vmem:[%s491 + $0x18] sm:$0xff]
    %v2448 = vld [vmem:[%s496] sm:$0x1]
    %v2450 = vlaneseq
    %v2451 = vshrl.u32 %v2450, 7
    %v2452 = vsub.s32 0, %v2451
    %v2453 = vrot.slane %v2448, %v2452
    %2455 = vmatprep.subr.mxu0 0.0
    %2456 = vmatpush1.msra.mxu0 %v2444
    %2457 = vmatprep.subr.mxu0 0.0
    %2458 = vmatpush1.msra.mxu0 %v2445
    %2459 = vmatprep.subr.mxu0 0.0
    %2460 = vmatpush1.msra.mxu0 %v2446
    %2461 = vmatprep.subr.mxu0 0.0
    %2462 = vmatpush1.msra.mxu0 %v2447
    %2463 = vmatprep.subr.mxu0 0.0
    %2464 = vmatpush1.msra.mxu0 0.0
    %2465 = vmatprep.subr.mxu0 0.0
    %2466 = vmatpush1.msra.mxu0 0.0
    %2467 = vmatprep.subr.mxu0 0.0
    %2468 = vmatpush1.msra.mxu0 0.0
    %2469 = vmatprep.subr.mxu0 0.0
    %2470 = vmatpush1.msra.mxu0 0.0
    %2471 = vmatprep.subr.mxu0 0.0
    %2472 = vmatpush1.msra.mxu0 0.0
    %2473 = vmatprep.subr.mxu0 0.0
    %2474 = vmatpush1.msra.mxu0 0.0
    %2475 = vmatprep.subr.mxu0 0.0
    %2476 = vmatpush1.msra.mxu0 0.0
    %2477 = vmatprep.subr.mxu0 0.0
    %2478 = vmatpush1.msra.mxu0 0.0
    %2479 = vmatprep.subr.mxu0 0.0
    %2480 = vmatpush1.msra.mxu0 0.0
    %2481 = vmatprep.subr.mxu0 0.0
    %2482 = vmatpush1.msra.mxu0 0.0
    %2483 = vmatprep.subr.mxu0 0.0
    %2484 = vmatpush1.msra.mxu0 0.0
    %2485 = vmatprep.subr.mxu0 0.0
    %2486 = vmatpush1.msra.mxu0 0.0
    %2487 = vmatprep.subr.mxu0 0.0
    %2488 = vmatpush1.msra.mxu0 0.0
    %2489 = vmatprep.subr.mxu0 0.0
    %2490 = vmatpush1.msra.mxu0 0.0
    %2491 = vmatprep.subr.mxu0 0.0
    %2492 = vmatpush1.msra.mxu0 0.0
    %2493 = vmatprep.subr.mxu0 0.0
    %2494 = vmatpush1.msra.mxu0 0.0
    %2495 = vmatprep.subr.mxu0 0.0
    %2496 = vmatpush1.msra.mxu0 0.0
    %2497 = vmatprep.subr.mxu0 0.0
    %2498 = vmatpush1.msra.mxu0 0.0
    %2499 = vmatprep.subr.mxu0 0.0
    %2500 = vmatpush1.msra.mxu0 0.0
    %2501 = vmatprep.subr.mxu0 0.0
    %2502 = vmatpush1.msra.mxu0 0.0
    %2503 = vmatprep.subr.mxu0 0.0
    %2504 = vmatpush1.msra.mxu0 0.0
    %2505 = vmatprep.subr.mxu0 0.0
    %2506 = vmatpush1.msra.mxu0 0.0
    %2507 = vmatprep.subr.mxu0 0.0
    %2508 = vmatpush1.msra.mxu0 0.0
    %2509 = vmatprep.subr.mxu0 0.0
    %2510 = vmatpush1.msra.mxu0 0.0
    %2511 = vmatprep.subr.mxu0 0.0
    %2512 = vmatpush1.msra.mxu0 0.0
    %2513 = vmatprep.subr.mxu0 0.0
    %2514 = vmatpush1.msra.mxu0 0.0
    %2515 = vmatprep.subr.mxu0 0.0
    %2516 = vmatpush1.msra.mxu0 0.0
    %2517 = vmatprep.subr.mxu0 0.0
    %2518 = vmatpush1.msra.mxu0 0.0
    %2519 = vmatprep.mubr.f32.mxu0 0.0
    %2520 = vmatmul.mubr.f32.gmra.mrb[0].mxu0 %v2042
    %v2521 = vpop.f32.mrb[0].mxu0
    %v2522 = vadd.f32 %v2453, %v2521
    %v2523 = vpop.f32.mrb[0].mxu0
    %2524 = vdwg.mxu0
    %v2525 = vld [vmem:[%s574] sm:$0xff]
    %v2526 = vld [vmem:[%s574 + $0x8] sm:$0xff]
    %v2527 = vld [vmem:[%s574 + $0x10] sm:$0xff]
    %v2528 = vld [vmem:[%s574 + $0x18] sm:$0xff]
    %v2529 = vld [vmem:[%s579] sm:$0x1]
    %v2531 = vlaneseq
    %v2532 = vshrl.u32 %v2531, 7
    %v2533 = vsub.s32 0, %v2532
    %v2534 = vrot.slane %v2529, %v2533
    %2536 = vmatprep.subr.mxu0 0.0
    %2537 = vmatpush1.msra.mxu0 %v2525
    %2538 = vmatprep.subr.mxu0 0.0
    %2539 = vmatpush1.msra.mxu0 %v2526
    %2540 = vmatprep.subr.mxu0 0.0
    %2541 = vmatpush1.msra.mxu0 %v2527
    %2542 = vmatprep.subr.mxu0 0.0
    %2543 = vmatpush1.msra.mxu0 %v2528
    %2544 = vmatprep.subr.mxu0 0.0
    %2545 = vmatpush1.msra.mxu0 0.0
    %2546 = vmatprep.subr.mxu0 0.0
    %2547 = vmatpush1.msra.mxu0 0.0
    %2548 = vmatprep.subr.mxu0 0.0
    %2549 = vmatpush1.msra.mxu0 0.0
    %2550 = vmatprep.subr.mxu0 0.0
    %2551 = vmatpush1.msra.mxu0 0.0
    %2552 = vmatprep.subr.mxu0 0.0
    %2553 = vmatpush1.msra.mxu0 0.0
    %2554 = vmatprep.subr.mxu0 0.0
    %2555 = vmatpush1.msra.mxu0 0.0
    %2556 = vmatprep.subr.mxu0 0.0
    %2557 = vmatpush1.msra.mxu0 0.0
    %2558 = vmatprep.subr.mxu0 0.0
    %2559 = vmatpush1.msra.mxu0 0.0
    %2560 = vmatprep.subr.mxu0 0.0
    %2561 = vmatpush1.msra.mxu0 0.0
    %2562 = vmatprep.subr.mxu0 0.0
    %2563 = vmatpush1.msra.mxu0 0.0
    %2564 = vmatprep.subr.mxu0 0.0
    %2565 = vmatpush1.msra.mxu0 0.0
    %2566 = vmatprep.subr.mxu0 0.0
    %2567 = vmatpush1.msra.mxu0 0.0
    %2568 = vmatprep.subr.mxu0 0.0
    %2569 = vmatpush1.msra.mxu0 0.0
    %2570 = vmatprep.subr.mxu0 0.0
    %2571 = vmatpush1.msra.mxu0 0.0
    %2572 = vmatprep.subr.mxu0 0.0
    %2573 = vmatpush1.msra.mxu0 0.0
    %2574 = vmatprep.subr.mxu0 0.0
    %2575 = vmatpush1.msra.mxu0 0.0
    %2576 = vmatprep.subr.mxu0 0.0
    %2577 = vmatpush1.msra.mxu0 0.0
    %2578 = vmatprep.subr.mxu0 0.0
    %2579 = vmatpush1.msra.mxu0 0.0
    %2580 = vmatprep.subr.mxu0 0.0
    %2581 = vmatpush1.msra.mxu0 0.0
    %2582 = vmatprep.subr.mxu0 0.0
    %2583 = vmatpush1.msra.mxu0 0.0
    %2584 = vmatprep.subr.mxu0 0.0
    %2585 = vmatpush1.msra.mxu0 0.0
    %2586 = vmatprep.subr.mxu0 0.0
    %2587 = vmatpush1.msra.mxu0 0.0
    %2588 = vmatprep.subr.mxu0 0.0
    %2589 = vmatpush1.msra.mxu0 0.0
    %2590 = vmatprep.subr.mxu0 0.0
    %2591 = vmatpush1.msra.mxu0 0.0
    %2592 = vmatprep.subr.mxu0 0.0
    %2593 = vmatpush1.msra.mxu0 0.0
    %2594 = vmatprep.subr.mxu0 0.0
    %2595 = vmatpush1.msra.mxu0 0.0
    %2596 = vmatprep.subr.mxu0 0.0
    %2597 = vmatpush1.msra.mxu0 0.0
    %2598 = vmatprep.subr.mxu0 0.0
    %2599 = vmatpush1.msra.mxu0 0.0
    %2600 = vmatprep.mubr.f32.mxu0 0.0
    %2601 = vmatmul.mubr.f32.gmra.mrb[0].mxu0 %v2126
    %v2602 = vpop.f32.mrb[0].mxu0
    %v2603 = vadd.f32 %v2534, %v2602
    %v2604 = vpop.f32.mrb[0].mxu0
    %2605 = vdwg.mxu0
    %v2606 = vld [vmem:[%s657] sm:$0xff]
    %v2607 = vld [vmem:[%s657 + $0x8] sm:$0xff]
    %v2608 = vld [vmem:[%s657 + $0x10] sm:$0xff]
    %v2609 = vld [vmem:[%s657 + $0x18] sm:$0xff]
    %v2610 = vld [vmem:[%s662] sm:$0x1]
    %v2612 = vlaneseq
    %v2613 = vshrl.u32 %v2612, 7
    %v2614 = vsub.s32 0, %v2613
    %v2615 = vrot.slane %v2610, %v2614
    %2617 = vmatprep.subr.mxu0 0.0
    %2618 = vmatpush1.msra.mxu0 %v2606
    %2619 = vmatprep.subr.mxu0 0.0
    %2620 = vmatpush1.msra.mxu0 %v2607
    %2621 = vmatprep.subr.mxu0 0.0
    %2622 = vmatpush1.msra.mxu0 %v2608
    %2623 = vmatprep.subr.mxu0 0.0
    %2624 = vmatpush1.msra.mxu0 %v2609
    %2625 = vmatprep.subr.mxu0 0.0
    %2626 = vmatpush1.msra.mxu0 0.0
    %2627 = vmatprep.subr.mxu0 0.0
    %2628 = vmatpush1.msra.mxu0 0.0
    %2629 = vmatprep.subr.mxu0 0.0
    %2630 = vmatpush1.msra.mxu0 0.0
    %2631 = vmatprep.subr.mxu0 0.0
    %2632 = vmatpush1.msra.mxu0 0.0
    %2633 = vmatprep.subr.mxu0 0.0
    %2634 = vmatpush1.msra.mxu0 0.0
    %2635 = vmatprep.subr.mxu0 0.0
    %2636 = vmatpush1.msra.mxu0 0.0
    %2637 = vmatprep.subr.mxu0 0.0
    %2638 = vmatpush1.msra.mxu0 0.0
    %2639 = vmatprep.subr.mxu0 0.0
    %2640 = vmatpush1.msra.mxu0 0.0
    %2641 = vmatprep.subr.mxu0 0.0
    %2642 = vmatpush1.msra.mxu0 0.0
    %2643 = vmatprep.subr.mxu0 0.0
    %2644 = vmatpush1.msra.mxu0 0.0
    %2645 = vmatprep.subr.mxu0 0.0
    %2646 = vmatpush1.msra.mxu0 0.0
    %2647 = vmatprep.subr.mxu0 0.0
    %2648 = vmatpush1.msra.mxu0 0.0
    %2649 = vmatprep.subr.mxu0 0.0
    %2650 = vmatpush1.msra.mxu0 0.0
    %2651 = vmatprep.subr.mxu0 0.0
    %2652 = vmatpush1.msra.mxu0 0.0
    %2653 = vmatprep.subr.mxu0 0.0
    %2654 = vmatpush1.msra.mxu0 0.0
    %2655 = vmatprep.subr.mxu0 0.0
    %2656 = vmatpush1.msra.mxu0 0.0
    %2657 = vmatprep.subr.mxu0 0.0
    %2658 = vmatpush1.msra.mxu0 0.0
    %2659 = vmatprep.subr.mxu0 0.0
    %2660 = vmatpush1.msra.mxu0 0.0
    %2661 = vmatprep.subr.mxu0 0.0
    %2662 = vmatpush1.msra.mxu0 0.0
    %2663 = vmatprep.subr.mxu0 0.0
    %2664 = vmatpush1.msra.mxu0 0.0
    %2665 = vmatprep.subr.mxu0 0.0
    %2666 = vmatpush1.msra.mxu0 0.0
    %2667 = vmatprep.subr.mxu0 0.0
    %2668 = vmatpush1.msra.mxu0 0.0
    %2669 = vmatprep.subr.mxu0 0.0
    %2670 = vmatpush1.msra.mxu0 0.0
    %2671 = vmatprep.subr.mxu0 0.0
    %2672 = vmatpush1.msra.mxu0 0.0
    %2673 = vmatprep.subr.mxu0 0.0
    %2674 = vmatpush1.msra.mxu0 0.0
    %2675 = vmatprep.subr.mxu0 0.0
    %2676 = vmatpush1.msra.mxu0 0.0
    %2677 = vmatprep.subr.mxu0 0.0
    %2678 = vmatpush1.msra.mxu0 0.0
    %2679 = vmatprep.subr.mxu0 0.0
    %2680 = vmatpush1.msra.mxu0 0.0
    %2681 = vmatprep.mubr.f32.mxu0 0.0
    %2682 = vmatmul.mubr.f32.gmra.mrb[0].mxu0 %v2126
    %v2683 = vpop.f32.mrb[0].mxu0
    %v2684 = vadd.f32 %v2615, %v2683
    %v2685 = vpop.f32.mrb[0].mxu0
    %2686 = vdwg.mxu0
    %v2688 = vsel %vm325, %v2522, 0
    %v2691 = vsel %vm325, %v2603, 0
    %2693 = vmatprep.subr.mxu0 0.0
    %2694 = vmatpush1.xpose.msra.mxu0 %v2691
    %2695 = vmatprep.subr.mxu0 0.0
    %2696 = vmatpush1.xpose.msra.mxu0 0.0
    %2697 = vmatprep.subr.mxu0 0.0
    %2698 = vmatpush1.xpose.msra.mxu0 0.0
    %2699 = vmatprep.subr.mxu0 0.0
    %2700 = vmatpush1.xpose.msra.mxu0 0.0
    %2701 = vmatprep.subr.mxu0 0.0
    %2702 = vmatpush1.xpose.msra.mxu0 0.0
    %2703 = vmatprep.subr.mxu0 0.0
    %2704 = vmatpush1.xpose.msra.mxu0 0.0
    %2705 = vmatprep.subr.mxu0 0.0
    %2706 = vmatpush1.xpose.msra.mxu0 0.0
    %2707 = vmatprep.subr.mxu0 0.0
    %2708 = vmatpush1.xpose.msra.mxu0 0.0
    %2709 = vmatprep.subr.mxu0 0.0
    %2710 = vmatpush1.xpose.msra.mxu0 0.0
    %2711 = vmatprep.subr.mxu0 0.0
    %2712 = vmatpush1.xpose.msra.mxu0 0.0
    %2713 = vmatprep.subr.mxu0 0.0
    %2714 = vmatpush1.xpose.msra.mxu0 0.0
    %2715 = vmatprep.subr.mxu0 0.0
    %2716 = vmatpush1.xpose.msra.mxu0 0.0
    %2717 = vmatprep.subr.mxu0 0.0
    %2718 = vmatpush1.xpose.msra.mxu0 0.0
    %2719 = vmatprep.subr.mxu0 0.0
    %2720 = vmatpush1.xpose.msra.mxu0 0.0
    %2721 = vmatprep.subr.mxu0 0.0
    %2722 = vmatpush1.xpose.msra.mxu0 0.0
    %2723 = vmatprep.subr.mxu0 0.0
    %2724 = vmatpush1.xpose.msra.mxu0 0.0
    %2725 = vmatprep.subr.mxu0 0.0
    %2726 = vmatpush1.xpose.msra.mxu0 0.0
    %2727 = vmatprep.subr.mxu0 0.0
    %2728 = vmatpush1.xpose.msra.mxu0 0.0
    %2729 = vmatprep.subr.mxu0 0.0
    %2730 = vmatpush1.xpose.msra.mxu0 0.0
    %2731 = vmatprep.subr.mxu0 0.0
    %2732 = vmatpush1.xpose.msra.mxu0 0.0
    %2733 = vmatprep.subr.mxu0 0.0
    %2734 = vmatpush1.xpose.msra.mxu0 0.0
    %2735 = vmatprep.subr.mxu0 0.0
    %2736 = vmatpush1.xpose.msra.mxu0 0.0
    %2737 = vmatprep.subr.mxu0 0.0
    %2738 = vmatpush1.xpose.msra.mxu0 0.0
    %2739 = vmatprep.subr.mxu0 0.0
    %2740 = vmatpush1.xpose.msra.mxu0 0.0
    %2741 = vmatprep.subr.mxu0 0.0
    %2742 = vmatpush1.xpose.msra.mxu0 0.0
    %2743 = vmatprep.subr.mxu0 0.0
    %2744 = vmatpush1.xpose.msra.mxu0 0.0
    %2745 = vmatprep.subr.mxu0 0.0
    %2746 = vmatpush1.xpose.msra.mxu0 0.0
    %2747 = vmatprep.subr.mxu0 0.0
    %2748 = vmatpush1.xpose.msra.mxu0 0.0
    %2749 = vmatprep.subr.mxu0 0.0
    %2750 = vmatpush1.xpose.msra.mxu0 0.0
    %2751 = vmatprep.subr.mxu0 0.0
    %2752 = vmatpush1.xpose.msra.mxu0 0.0
    %2753 = vmatprep.subr.mxu0 0.0
    %2754 = vmatpush1.xpose.msra.mxu0 0.0
    %2755 = vmatprep.subr.mxu0 0.0
    %2756 = vmatpush1.xpose.msra.mxu0 0.0
    %2757 = vmatprep.mubr.f32.mxu0 0.0
    %2758 = vmatmul.mubr.f32.gmra.mrb[0].mxu0 %v2688
    %v2759 = vpop.f32.mrb[0].mxu0
    %v2760 = vadd.f32 0.0, %v2759
    %v2761 = vpop.f32.mrb[0].mxu0
    %2762 = vdwg.mxu0
    %v2763 = vmul.f32 %v2760, 0.0625
    %v2764 = vsel %vm403, %v2763, -inf
    %2765 = vmax.xlane.f32.xlu0 %v2764
    %v2766 = vpop.xlane.xlu0 %2765
    %v2767 = vsub.f32 %v2763, %v2766
    %v2768 = vmul.f32 %v2767, 1.442695
    %v2769 = vpow.pop %v2768
    %v2770 = vsel %vm403, %v2769, 0.0
    %2771 = vadd.xlane.f32.xlu0 %v2770
    %v2772 = vpop.xlane.xlu0 %2771
    %v2773 = vrcp.pop %v2772
    %v2774 = vmul.f32 %v2769, %v2773
    %s2775 = scalar_lea.vmem [#allocation4], 40
    %2776 = vst.msk [vmem:[%s2775] sm:$0xff] %vm403, %v2774
    %v2778 = vsel %vm403, %v2774, 0
    %2780 = vmatprep.subr.mxu0 0.0
    %2781 = vmatpush1.msra.mxu0 %v2684
    %2782 = vmatprep.subr.mxu0 0.0
    %2783 = vmatpush1.msra.mxu0 0.0
    %2784 = vmatprep.subr.mxu0 0.0
    %2785 = vmatpush1.msra.mxu0 0.0
    %2786 = vmatprep.subr.mxu0 0.0
    %2787 = vmatpush1.msra.mxu0 0.0
    %2788 = vmatprep.subr.mxu0 0.0
    %2789 = vmatpush1.msra.mxu0 0.0
    %2790 = vmatprep.subr.mxu0 0.0
    %2791 = vmatpush1.msra.mxu0 0.0
    %2792 = vmatprep.subr.mxu0 0.0
    %2793 = vmatpush1.msra.mxu0 0.0
    %2794 = vmatprep.subr.mxu0 0.0
    %2795 = vmatpush1.msra.mxu0 0.0
    %2796 = vmatprep.subr.mxu0 0.0
    %2797 = vmatpush1.msra.mxu0 0.0
    %2798 = vmatprep.subr.mxu0 0.0
    %2799 = vmatpush1.msra.mxu0 0.0
    %2800 = vmatprep.subr.mxu0 0.0
    %2801 = vmatpush1.msra.mxu0 0.0
    %2802 = vmatprep.subr.mxu0 0.0
    %2803 = vmatpush1.msra.mxu0 0.0
    %2804 = vmatprep.subr.mxu0 0.0
    %2805 = vmatpush1.msra.mxu0 0.0
    %2806 = vmatprep.subr.mxu0 0.0
    %2807 = vmatpush1.msra.mxu0 0.0
    %2808 = vmatprep.subr.mxu0 0.0
    %2809 = vmatpush1.msra.mxu0 0.0
    %2810 = vmatprep.subr.mxu0 0.0
    %2811 = vmatpush1.msra.mxu0 0.0
    %2812 = vmatprep.subr.mxu0 0.0
    %2813 = vmatpush1.msra.mxu0 0.0
    %2814 = vmatprep.subr.mxu0 0.0
    %2815 = vmatpush1.msra.mxu0 0.0
    %2816 = vmatprep.subr.mxu0 0.0
    %2817 = vmatpush1.msra.mxu0 0.0
    %2818 = vmatprep.subr.mxu0 0.0
    %2819 = vmatpush1.msra.mxu0 0.0
    %2820 = vmatprep.subr.mxu0 0.0
    %2821 = vmatpush1.msra.mxu0 0.0
    %2822 = vmatprep.subr.mxu0 0.0
    %2823 = vmatpush1.msra.mxu0 0.0
    %2824 = vmatprep.subr.mxu0 0.0
    %2825 = vmatpush1.msra.mxu0 0.0
    %2826 = vmatprep.subr.mxu0 0.0
    %2827 = vmatpush1.msra.mxu0 0.0
    %2828 = vmatprep.subr.mxu0 0.0
    %2829 = vmatpush1.msra.mxu0 0.0
    %2830 = vmatprep.subr.mxu0 0.0
    %2831 = vmatpush1.msra.mxu0 0.0
    %2832 = vmatprep.subr.mxu0 0.0
    %2833 = vmatpush1.msra.mxu0 0.0
    %2834 = vmatprep.subr.mxu0 0.0
    %2835 = vmatpush1.msra.mxu0 0.0
    %2836 = vmatprep.subr.mxu0 0.0
    %2837 = vmatpush1.msra.mxu0 0.0
    %2838 = vmatprep.subr.mxu0 0.0
    %2839 = vmatpush1.msra.mxu0 0.0
    %2840 = vmatprep.subr.mxu0 0.0
    %2841 = vmatpush1.msra.mxu0 0.0
    %2842 = vmatprep.subr.mxu0 0.0
    %2843 = vmatpush1.msra.mxu0 0.0
    %2844 = vmatprep.mubr.f32.mxu0 0.0
    %2845 = vmatmul.mubr.f32.gmra.mrb[0].mxu0 %v2778
    %v2846 = vpop.f32.mrb[0].mxu0
    %v2847 = vadd.f32 0.0, %v2846
    %v2848 = vpop.f32.mrb[0].mxu0
    %2849 = vdwg.mxu0
    %v2850 = vld [vmem:[%s903] sm:$0xff]
    %v2851 = vld [vmem:[%s903 + $0x8] sm:$0xff]
    %v2853 = vsel %vm325, %v2847, 0
    %2855 = vmatprep.subr.mxu0 0.0
    %2856 = vmatpush1.msra.mxu0 %v2850
    %2857 = vmatprep.subr.mxu0 0.0
    %2858 = vmatpush1.msra.mxu0 %v2851
    %2859 = vmatprep.subr.mxu0 0.0
    %2860 = vmatpush1.msra.mxu0 0.0
    %2861 = vmatprep.subr.mxu0 0.0
    %2862 = vmatpush1.msra.mxu0 0.0
    %2863 = vmatprep.subr.mxu0 0.0
    %2864 = vmatpush1.msra.mxu0 0.0
    %2865 = vmatprep.subr.mxu0 0.0
    %2866 = vmatpush1.msra.mxu0 0.0
    %2867 = vmatprep.subr.mxu0 0.0
    %2868 = vmatpush1.msra.mxu0 0.0
    %2869 = vmatprep.subr.mxu0 0.0
    %2870 = vmatpush1.msra.mxu0 0.0
    %2871 = vmatprep.subr.mxu0 0.0
    %2872 = vmatpush1.msra.mxu0 0.0
    %2873 = vmatprep.subr.mxu0 0.0
    %2874 = vmatpush1.msra.mxu0 0.0
    %2875 = vmatprep.subr.mxu0 0.0
    %2876 = vmatpush1.msra.mxu0 0.0
    %2877 = vmatprep.subr.mxu0 0.0
    %2878 = vmatpush1.msra.mxu0 0.0
    %2879 = vmatprep.subr.mxu0 0.0
    %2880 = vmatpush1.msra.mxu0 0.0
    %2881 = vmatprep.subr.mxu0 0.0
    %2882 = vmatpush1.msra.mxu0 0.0
    %2883 = vmatprep.subr.mxu0 0.0
    %2884 = vmatpush1.msra.mxu0 0.0
    %2885 = vmatprep.subr.mxu0 0.0
    %2886 = vmatpush1.msra.mxu0 0.0
    %2887 = vmatprep.subr.mxu0 0.0
    %2888 = vmatpush1.msra.mxu0 0.0
    %2889 = vmatprep.subr.mxu0 0.0
    %2890 = vmatpush1.msra.mxu0 0.0
    %2891 = vmatprep.subr.mxu0 0.0
    %2892 = vmatpush1.msra.mxu0 0.0
    %2893 = vmatprep.subr.mxu0 0.0
    %2894 = vmatpush1.msra.mxu0 0.0
    %2895 = vmatprep.subr.mxu0 0.0
    %2896 = vmatpush1.msra.mxu0 0.0
    %2897 = vmatprep.subr.mxu0 0.0
    %2898 = vmatpush1.msra.mxu0 0.0
    %2899 = vmatprep.subr.mxu0 0.0
    %2900 = vmatpush1.msra.mxu0 0.0
    %2901 = vmatprep.subr.mxu0 0.0
    %2902 = vmatpush1.msra.mxu0 0.0
    %2903 = vmatprep.subr.mxu0 0.0
    %2904 = vmatpush1.msra.mxu0 0.0
    %2905 = vmatprep.subr.mxu0 0.0
    %2906 = vmatpush1.msra.mxu0 0.0
    %2907 = vmatprep.subr.mxu0 0.0
    %2908 = vmatpush1.msra.mxu0 0.0
    %2909 = vmatprep.subr.mxu0 0.0
    %2910 = vmatpush1.msra.mxu0 0.0
    %2911 = vmatprep.subr.mxu0 0.0
    %2912 = vmatpush1.msra.mxu0 0.0
    %2913 = vmatprep.subr.mxu0 0.0
    %2914 = vmatpush1.msra.mxu0 0.0
    %2915 = vmatprep.subr.mxu0 0.0
    %2916 = vmatpush1.msra.mxu0 0.0
    %2917 = vmatprep.subr.mxu0 0.0
    %2918 = vmatpush1.msra.mxu0 0.0
    %2919 = vmatprep.mubr.f32.mxu0 0.0
    %2920 = vmatmul.mubr.f32.gmra.mrb[0].mxu0 %v2853
    %v2921 = vpop.f32.mrb[0].mxu0
    %v2922 = vadd.f32 0.0, %v2921
    %v2923 = vpop.f32.mrb[0].mxu0
    %2924 = vdwg.mxu0
    %v2926 = vsel %vm325, %v2439, 0
    %2928 = vmatprep.subr.mxu0 0.0
    %2929 = vmatpush1.msra.mxu0 %v2442
    %2930 = vmatprep.subr.mxu0 0.0
    %2931 = vmatpush1.msra.mxu0 %v2443
    %2932 = vmatprep.subr.mxu0 0.0
    %2933 = vmatpush1.msra.mxu0 0.0
    %2934 = vmatprep.subr.mxu0 0.0
    %2935 = vmatpush1.msra.mxu0 0.0
    %2936 = vmatprep.subr.mxu0 0.0
    %2937 = vmatpush1.msra.mxu0 0.0
    %2938 = vmatprep.subr.mxu0 0.0
    %2939 = vmatpush1.msra.mxu0 0.0
    %2940 = vmatprep.subr.mxu0 0.0
    %2941 = vmatpush1.msra.mxu0 0.0
    %2942 = vmatprep.subr.mxu0 0.0
    %2943 = vmatpush1.msra.mxu0 0.0
    %2944 = vmatprep.subr.mxu0 0.0
    %2945 = vmatpush1.msra.mxu0 0.0
    %2946 = vmatprep.subr.mxu0 0.0
    %2947 = vmatpush1.msra.mxu0 0.0
    %2948 = vmatprep.subr.mxu0 0.0
    %2949 = vmatpush1.msra.mxu0 0.0
    %2950 = vmatprep.subr.mxu0 0.0
    %2951 = vmatpush1.msra.mxu0 0.0
    %2952 = vmatprep.subr.mxu0 0.0
    %2953 = vmatpush1.msra.mxu0 0.0
    %2954 = vmatprep.subr.mxu0 0.0
    %2955 = vmatpush1.msra.mxu0 0.0
    %2956 = vmatprep.subr.mxu0 0.0
    %2957 = vmatpush1.msra.mxu0 0.0
    %2958 = vmatprep.subr.mxu0 0.0
    %2959 = vmatpush1.msra.mxu0 0.0
    %2960 = vmatprep.subr.mxu0 0.0
    %2961 = vmatpush1.msra.mxu0 0.0
    %2962 = vmatprep.subr.mxu0 0.0
    %2963 = vmatpush1.msra.mxu0 0.0
    %2964 = vmatprep.subr.mxu0 0.0
    %2965 = vmatpush1.msra.mxu0 0.0
    %2966 = vmatprep.subr.mxu0 0.0
    %2967 = vmatpush1.msra.mxu0 0.0
    %2968 = vmatprep.subr.mxu0 0.0
    %2969 = vmatpush1.msra.mxu0 0.0
    %2970 = vmatprep.subr.mxu0 0.0
    %2971 = vmatpush1.msra.mxu0 0.0
    %2972 = vmatprep.subr.mxu0 0.0
    %2973 = vmatpush1.msra.mxu0 0.0
    %2974 = vmatprep.subr.mxu0 0.0
    %2975 = vmatpush1.msra.mxu0 0.0
    %2976 = vmatprep.subr.mxu0 0.0
    %2977 = vmatpush1.msra.mxu0 0.0
    %2978 = vmatprep.subr.mxu0 0.0
    %2979 = vmatpush1.msra.mxu0 0.0
    %2980 = vmatprep.subr.mxu0 0.0
    %2981 = vmatpush1.msra.mxu0 0.0
    %2982 = vmatprep.subr.mxu0 0.0
    %2983 = vmatpush1.msra.mxu0 0.0
    %2984 = vmatprep.subr.mxu0 0.0
    %2985 = vmatpush1.msra.mxu0 0.0
    %2986 = vmatprep.subr.mxu0 0.0
    %2987 = vmatpush1.msra.mxu0 0.0
    %2988 = vmatprep.subr.mxu0 0.0
    %2989 = vmatpush1.msra.mxu0 0.0
    %2990 = vmatprep.subr.mxu0 0.0
    %2991 = vmatpush1.msra.mxu0 0.0
    %2992 = vmatprep.mubr.f32.mxu0 0.0
    %2993 = vmatmul.mubr.f32.gmra.mrb[0].mxu0 %v2926
    %v2994 = vpop.f32.mrb[0].mxu0
    %v2995 = vadd.f32 %v2922, %v2994
    %v2996 = vpop.f32.mrb[0].mxu0
    %2997 = vdwg.mxu0
    %v2998 = vld [vmem:[%s1052] sm:$0xff]
    %v2999 = vld [vmem:[%s1052 + $0x8] sm:$0xff]
    %v3000 = vld [vmem:[%s1052 + $0x10] sm:$0xff]
    %v3001 = vld [vmem:[%s1052 + $0x18] sm:$0xff]
    %v3002 = vld [vmem:[%s1057] sm:$0x1]
    %v3004 = vlaneseq
    %v3005 = vshrl.u32 %v3004, 7
    %v3006 = vsub.s32 0, %v3005
    %v3007 = vrot.slane %v3002, %v3006
    %3009 = vmatprep.subr.mxu0 0.0
    %3010 = vmatpush1.msra.mxu0 %v2998
    %3011 = vmatprep.subr.mxu0 0.0
    %3012 = vmatpush1.msra.mxu0 %v2999
    %3013 = vmatprep.subr.mxu0 0.0
    %3014 = vmatpush1.msra.mxu0 %v3000
    %3015 = vmatprep.subr.mxu0 0.0
    %3016 = vmatpush1.msra.mxu0 %v3001
    %3017 = vmatprep.subr.mxu0 0.0
    %3018 = vmatpush1.msra.mxu0 0.0
    %3019 = vmatprep.subr.mxu0 0.0
    %3020 = vmatpush1.msra.mxu0 0.0
    %3021 = vmatprep.subr.mxu0 0.0
    %3022 = vmatpush1.msra.mxu0 0.0
    %3023 = vmatprep.subr.mxu0 0.0
    %3024 = vmatpush1.msra.mxu0 0.0
    %3025 = vmatprep.subr.mxu0 0.0
    %3026 = vmatpush1.msra.mxu0 0.0
    %3027 = vmatprep.subr.mxu0 0.0
    %3028 = vmatpush1.msra.mxu0 0.0
    %3029 = vmatprep.subr.mxu0 0.0
    %3030 = vmatpush1.msra.mxu0 0.0
    %3031 = vmatprep.subr.mxu0 0.0
    %3032 = vmatpush1.msra.mxu0 0.0
    %3033 = vmatprep.subr.mxu0 0.0
    %3034 = vmatpush1.msra.mxu0 0.0
    %3035 = vmatprep.subr.mxu0 0.0
    %3036 = vmatpush1.msra.mxu0 0.0
    %3037 = vmatprep.subr.mxu0 0.0
    %3038 = vmatpush1.msra.mxu0 0.0
    %3039 = vmatprep.subr.mxu0 0.0
    %3040 = vmatpush1.msra.mxu0 0.0
    %3041 = vmatprep.subr.mxu0 0.0
    %3042 = vmatpush1.msra.mxu0 0.0
    %3043 = vmatprep.subr.mxu0 0.0
    %3044 = vmatpush1.msra.mxu0 0.0
    %3045 = vmatprep.subr.mxu0 0.0
    %3046 = vmatpush1.msra.mxu0 0.0
    %3047 = vmatprep.subr.mxu0 0.0
    %3048 = vmatpush1.msra.mxu0 0.0
    %3049 = vmatprep.subr.mxu0 0.0
    %3050 = vmatpush1.msra.mxu0 0.0
    %3051 = vmatprep.subr.mxu0 0.0
    %3052 = vmatpush1.msra.mxu0 0.0
    %3053 = vmatprep.subr.mxu0 0.0
    %3054 = vmatpush1.msra.mxu0 0.0
    %3055 = vmatprep.subr.mxu0 0.0
    %3056 = vmatpush1.msra.mxu0 0.0
    %3057 = vmatprep.subr.mxu0 0.0
    %3058 = vmatpush1.msra.mxu0 0.0
    %3059 = vmatprep.subr.mxu0 0.0
    %3060 = vmatpush1.msra.mxu0 0.0
    %3061 = vmatprep.subr.mxu0 0.0
    %3062 = vmatpush1.msra.mxu0 0.0
    %3063 = vmatprep.subr.mxu0 0.0
    %3064 = vmatpush1.msra.mxu0 0.0
    %3065 = vmatprep.subr.mxu0 0.0
    %3066 = vmatpush1.msra.mxu0 0.0
    %3067 = vmatprep.subr.mxu0 0.0
    %3068 = vmatpush1.msra.mxu0 0.0
    %3069 = vmatprep.subr.mxu0 0.0
    %3070 = vmatpush1.msra.mxu0 0.0
    %3071 = vmatprep.subr.mxu0 0.0
    %3072 = vmatpush1.msra.mxu0 0.0
    %3073 = vmatprep.mubr.f32.mxu0 0.0
    %3074 = vmatmul.mubr.f32.gmra.mrb[0].mxu0 %v2042
    %v3075 = vpop.f32.mrb[0].mxu0
    %v3076 = vadd.f32 %v3007, %v3075
    %v3077 = vpop.f32.mrb[0].mxu0
    %3078 = vdwg.mxu0
    %v3079 = vld [vmem:[%s1135] sm:$0xff]
    %v3080 = vld [vmem:[%s1135 + $0x8] sm:$0xff]
    %v3081 = vld [vmem:[%s1135 + $0x10] sm:$0xff]
    %v3082 = vld [vmem:[%s1135 + $0x18] sm:$0xff]
    %v3083 = vld [vmem:[%s1140] sm:$0x1]
    %v3085 = vlaneseq
    %v3086 = vshrl.u32 %v3085, 7
    %v3087 = vsub.s32 0, %v3086
    %v3088 = vrot.slane %v3083, %v3087
    %3090 = vmatprep.subr.mxu0 0.0
    %3091 = vmatpush1.msra.mxu0 %v3079
    %3092 = vmatprep.subr.mxu0 0.0
    %3093 = vmatpush1.msra.mxu0 %v3080
    %3094 = vmatprep.subr.mxu0 0.0
    %3095 = vmatpush1.msra.mxu0 %v3081
    %3096 = vmatprep.subr.mxu0 0.0
    %3097 = vmatpush1.msra.mxu0 %v3082
    %3098 = vmatprep.subr.mxu0 0.0
    %3099 = vmatpush1.msra.mxu0 0.0
    %3100 = vmatprep.subr.mxu0 0.0
    %3101 = vmatpush1.msra.mxu0 0.0
    %3102 = vmatprep.subr.mxu0 0.0
    %3103 = vmatpush1.msra.mxu0 0.0
    %3104 = vmatprep.subr.mxu0 0.0
    %3105 = vmatpush1.msra.mxu0 0.0
    %3106 = vmatprep.subr.mxu0 0.0
    %3107 = vmatpush1.msra.mxu0 0.0
    %3108 = vmatprep.subr.mxu0 0.0
    %3109 = vmatpush1.msra.mxu0 0.0
    %3110 = vmatprep.subr.mxu0 0.0
    %3111 = vmatpush1.msra.mxu0 0.0
    %3112 = vmatprep.subr.mxu0 0.0
    %3113 = vmatpush1.msra.mxu0 0.0
    %3114 = vmatprep.subr.mxu0 0.0
    %3115 = vmatpush1.msra.mxu0 0.0
    %3116 = vmatprep.subr.mxu0 0.0
    %3117 = vmatpush1.msra.mxu0 0.0
    %3118 = vmatprep.subr.mxu0 0.0
    %3119 = vmatpush1.msra.mxu0 0.0
    %3120 = vmatprep.subr.mxu0 0.0
    %3121 = vmatpush1.msra.mxu0 0.0
    %3122 = vmatprep.subr.mxu0 0.0
    %3123 = vmatpush1.msra.mxu0 0.0
    %3124 = vmatprep.subr.mxu0 0.0
    %3125 = vmatpush1.msra.mxu0 0.0
    %3126 = vmatprep.subr.mxu0 0.0
    %3127 = vmatpush1.msra.mxu0 0.0
    %3128 = vmatprep.subr.mxu0 0.0
    %3129 = vmatpush1.msra.mxu0 0.0
    %3130 = vmatprep.subr.mxu0 0.0
    %3131 = vmatpush1.msra.mxu0 0.0
    %3132 = vmatprep.subr.mxu0 0.0
    %3133 = vmatpush1.msra.mxu0 0.0
    %3134 = vmatprep.subr.mxu0 0.0
    %3135 = vmatpush1.msra.mxu0 0.0
    %3136 = vmatprep.subr.mxu0 0.0
    %3137 = vmatpush1.msra.mxu0 0.0
    %3138 = vmatprep.subr.mxu0 0.0
    %3139 = vmatpush1.msra.mxu0 0.0
    %3140 = vmatprep.subr.mxu0 0.0
    %3141 = vmatpush1.msra.mxu0 0.0
    %3142 = vmatprep.subr.mxu0 0.0
    %3143 = vmatpush1.msra.mxu0 0.0
    %3144 = vmatprep.subr.mxu0 0.0
    %3145 = vmatpush1.msra.mxu0 0.0
    %3146 = vmatprep.subr.mxu0 0.0
    %3147 = vmatpush1.msra.mxu0 0.0
    %3148 = vmatprep.subr.mxu0 0.0
    %3149 = vmatpush1.msra.mxu0 0.0
    %3150 = vmatprep.subr.mxu0 0.0
    %3151 = vmatpush1.msra.mxu0 0.0
    %3152 = vmatprep.subr.mxu0 0.0
    %3153 = vmatpush1.msra.mxu0 0.0
    %3154 = vmatprep.mubr.f32.mxu0 0.0
    %3155 = vmatmul.mubr.f32.gmra.mrb[0].mxu0 %v2126
    %v3156 = vpop.f32.mrb[0].mxu0
    %v3157 = vadd.f32 %v3088, %v3156
    %v3158 = vpop.f32.mrb[0].mxu0
    %3159 = vdwg.mxu0
    %v3160 = vld [vmem:[%s1218] sm:$0xff]
    %v3161 = vld [vmem:[%s1218 + $0x8] sm:$0xff]
    %v3162 = vld [vmem:[%s1218 + $0x10] sm:$0xff]
    %v3163 = vld [vmem:[%s1218 + $0x18] sm:$0xff]
    %v3164 = vld [vmem:[%s1223] sm:$0x1]
    %v3166 = vlaneseq
    %v3167 = vshrl.u32 %v3166, 7
    %v3168 = vsub.s32 0, %v3167
    %v3169 = vrot.slane %v3164, %v3168
    %3171 = vmatprep.subr.mxu0 0.0
    %3172 = vmatpush1.msra.mxu0 %v3160
    %3173 = vmatprep.subr.mxu0 0.0
    %3174 = vmatpush1.msra.mxu0 %v3161
    %3175 = vmatprep.subr.mxu0 0.0
    %3176 = vmatpush1.msra.mxu0 %v3162
    %3177 = vmatprep.subr.mxu0 0.0
    %3178 = vmatpush1.msra.mxu0 %v3163
    %3179 = vmatprep.subr.mxu0 0.0
    %3180 = vmatpush1.msra.mxu0 0.0
    %3181 = vmatprep.subr.mxu0 0.0
    %3182 = vmatpush1.msra.mxu0 0.0
    %3183 = vmatprep.subr.mxu0 0.0
    %3184 = vmatpush1.msra.mxu0 0.0
    %3185 = vmatprep.subr.mxu0 0.0
    %3186 = vmatpush1.msra.mxu0 0.0
    %3187 = vmatprep.subr.mxu0 0.0
    %3188 = vmatpush1.msra.mxu0 0.0
    %3189 = vmatprep.subr.mxu0 0.0
    %3190 = vmatpush1.msra.mxu0 0.0
    %3191 = vmatprep.subr.mxu0 0.0
    %3192 = vmatpush1.msra.mxu0 0.0
    %3193 = vmatprep.subr.mxu0 0.0
    %3194 = vmatpush1.msra.mxu0 0.0
    %3195 = vmatprep.subr.mxu0 0.0
    %3196 = vmatpush1.msra.mxu0 0.0
    %3197 = vmatprep.subr.mxu0 0.0
    %3198 = vmatpush1.msra.mxu0 0.0
    %3199 = vmatprep.subr.mxu0 0.0
    %3200 = vmatpush1.msra.mxu0 0.0
    %3201 = vmatprep.subr.mxu0 0.0
    %3202 = vmatpush1.msra.mxu0 0.0
    %3203 = vmatprep.subr.mxu0 0.0
    %3204 = vmatpush1.msra.mxu0 0.0
    %3205 = vmatprep.subr.mxu0 0.0
    %3206 = vmatpush1.msra.mxu0 0.0
    %3207 = vmatprep.subr.mxu0 0.0
    %3208 = vmatpush1.msra.mxu0 0.0
    %3209 = vmatprep.subr.mxu0 0.0
    %3210 = vmatpush1.msra.mxu0 0.0
    %3211 = vmatprep.subr.mxu0 0.0
    %3212 = vmatpush1.msra.mxu0 0.0
    %3213 = vmatprep.subr.mxu0 0.0
    %3214 = vmatpush1.msra.mxu0 0.0
    %3215 = vmatprep.subr.mxu0 0.0
    %3216 = vmatpush1.msra.mxu0 0.0
    %3217 = vmatprep.subr.mxu0 0.0
    %3218 = vmatpush1.msra.mxu0 0.0
    %3219 = vmatprep.subr.mxu0 0.0
    %3220 = vmatpush1.msra.mxu0 0.0
    %3221 = vmatprep.subr.mxu0 0.0
    %3222 = vmatpush1.msra.mxu0 0.0
    %3223 = vmatprep.subr.mxu0 0.0
    %3224 = vmatpush1.msra.mxu0 0.0
    %3225 = vmatprep.subr.mxu0 0.0
    %3226 = vmatpush1.msra.mxu0 0.0
    %3227 = vmatprep.subr.mxu0 0.0
    %3228 = vmatpush1.msra.mxu0 0.0
    %3229 = vmatprep.subr.mxu0 0.0
    %3230 = vmatpush1.msra.mxu0 0.0
    %3231 = vmatprep.subr.mxu0 0.0
    %3232 = vmatpush1.msra.mxu0 0.0
    %3233 = vmatprep.subr.mxu0 0.0
    %3234 = vmatpush1.msra.mxu0 0.0
    %3235 = vmatprep.mubr.f32.mxu0 0.0
    %3236 = vmatmul.mubr.f32.gmra.mrb[0].mxu0 %v2126
    %v3237 = vpop.f32.mrb[0].mxu0
    %v3238 = vadd.f32 %v3169, %v3237
    %v3239 = vpop.f32.mrb[0].mxu0
    %3240 = vdwg.mxu0
    %v3242 = vsel %vm325, %v3076, 0
    %v3245 = vsel %vm325, %v3157, 0
    %3247 = vmatprep.subr.mxu0 0.0
    %3248 = vmatpush1.xpose.msra.mxu0 %v3245
    %3249 = vmatprep.subr.mxu0 0.0
    %3250 = vmatpush1.xpose.msra.mxu0 0.0
    %3251 = vmatprep.subr.mxu0 0.0
    %3252 = vmatpush1.xpose.msra.mxu0 0.0
    %3253 = vmatprep.subr.mxu0 0.0
    %3254 = vmatpush1.xpose.msra.mxu0 0.0
    %3255 = vmatprep.subr.mxu0 0.0
    %3256 = vmatpush1.xpose.msra.mxu0 0.0
    %3257 = vmatprep.subr.mxu0 0.0
    %3258 = vmatpush1.xpose.msra.mxu0 0.0
    %3259 = vmatprep.subr.mxu0 0.0
    %3260 = vmatpush1.xpose.msra.mxu0 0.0
    %3261 = vmatprep.subr.mxu0 0.0
    %3262 = vmatpush1.xpose.msra.mxu0 0.0
    %3263 = vmatprep.subr.mxu0 0.0
    %3264 = vmatpush1.xpose.msra.mxu0 0.0
    %3265 = vmatprep.subr.mxu0 0.0
    %3266 = vmatpush1.xpose.msra.mxu0 0.0
    %3267 = vmatprep.subr.mxu0 0.0
    %3268 = vmatpush1.xpose.msra.mxu0 0.0
    %3269 = vmatprep.subr.mxu0 0.0
    %3270 = vmatpush1.xpose.msra.mxu0 0.0
    %3271 = vmatprep.subr.mxu0 0.0
    %3272 = vmatpush1.xpose.msra.mxu0 0.0
    %3273 = vmatprep.subr.mxu0 0.0
    %3274 = vmatpush1.xpose.msra.mxu0 0.0
    %3275 = vmatprep.subr.mxu0 0.0
    %3276 = vmatpush1.xpose.msra.mxu0 0.0
    %3277 = vmatprep.subr.mxu0 0.0
    %3278 = vmatpush1.xpose.msra.mxu0 0.0
    %3279 = vmatprep.subr.mxu0 0.0
    %3280 = vmatpush1.xpose.msra.mxu0 0.0
    %3281 = vmatprep.subr.mxu0 0.0
    %3282 = vmatpush1.xpose.msra.mxu0 0.0
    %3283 = vmatprep.subr.mxu0 0.0
    %3284 = vmatpush1.xpose.msra.mxu0 0.0
    %3285 = vmatprep.subr.mxu0 0.0
    %3286 = vmatpush1.xpose.msra.mxu0 0.0
    %3287 = vmatprep.subr.mxu0 0.0
    %3288 = vmatpush1.xpose.msra.mxu0 0.0
    %3289 = vmatprep.subr.mxu0 0.0
    %3290 = vmatpush1.xpose.msra.mxu0 0.0
    %3291 = vmatprep.subr.mxu0 0.0
    %3292 = vmatpush1.xpose.msra.mxu0 0.0
    %3293 = vmatprep.subr.mxu0 0.0
    %3294 = vmatpush1.xpose.msra.mxu0 0.0
    %3295 = vmatprep.subr.mxu0 0.0
    %3296 = vmatpush1.xpose.msra.mxu0 0.0
    %3297 = vmatprep.subr.mxu0 0.0
    %3298 = vmatpush1.xpose.msra.mxu0 0.0
    %3299 = vmatprep.subr.mxu0 0.0
    %3300 = vmatpush1.xpose.msra.mxu0 0.0
    %3301 = vmatprep.subr.mxu0 0.0
    %3302 = vmatpush1.xpose.msra.mxu0 0.0
    %3303 = vmatprep.subr.mxu0 0.0
    %3304 = vmatpush1.xpose.msra.mxu0 0.0
    %3305 = vmatprep.subr.mxu0 0.0
    %3306 = vmatpush1.xpose.msra.mxu0 0.0
    %3307 = vmatprep.subr.mxu0 0.0
    %3308 = vmatpush1.xpose.msra.mxu0 0.0
    %3309 = vmatprep.subr.mxu0 0.0
    %3310 = vmatpush1.xpose.msra.mxu0 0.0
    %3311 = vmatprep.mubr.f32.mxu0 0.0
    %3312 = vmatmul.mubr.f32.gmra.mrb[0].mxu0 %v3242
    %v3313 = vpop.f32.mrb[0].mxu0
    %v3314 = vadd.f32 0.0, %v3313
    %v3315 = vpop.f32.mrb[0].mxu0
    %3316 = vdwg.mxu0
    %v3317 = vmul.f32 %v3314, 0.0625
    %v3318 = vsel %vm403, %v3317, -inf
    %3319 = vmax.xlane.f32.xlu0 %v3318
    %v3320 = vpop.xlane.xlu0 %3319
    %v3321 = vsub.f32 %v3317, %v3320
    %v3322 = vmul.f32 %v3321, 1.442695
    %v3323 = vpow.pop %v3322
    %v3324 = vsel %vm403, %v3323, 0.0
    %3325 = vadd.xlane.f32.xlu0 %v3324
    %v3326 = vpop.xlane.xlu0 %3325
    %v3327 = vrcp.pop %v3326
    %v3328 = vmul.f32 %v3323, %v3327
    %s3329 = scalar_lea.vmem [#allocation4], 48
    %3330 = vst.msk [vmem:[%s3329] sm:$0xff] %vm403, %v3328
    %v3332 = vsel %vm403, %v3328, 0
    %3334 = vmatprep.subr.mxu0 0.0
    %3335 = vmatpush1.msra.mxu0 %v3238
    %3336 = vmatprep.subr.mxu0 0.0
    %3337 = vmatpush1.msra.mxu0 0.0
    %3338 = vmatprep.subr.mxu0 0.0
    %3339 = vmatpush1.msra.mxu0 0.0
    %3340 = vmatprep.subr.mxu0 0.0
    %3341 = vmatpush1.msra.mxu0 0.0
    %3342 = vmatprep.subr.mxu0 0.0
    %3343 = vmatpush1.msra.mxu0 0.0
    %3344 = vmatprep.subr.mxu0 0.0
    %3345 = vmatpush1.msra.mxu0 0.0
    %3346 = vmatprep.subr.mxu0 0.0
    %3347 = vmatpush1.msra.mxu0 0.0
    %3348 = vmatprep.subr.mxu0 0.0
    %3349 = vmatpush1.msra.mxu0 0.0
    %3350 = vmatprep.subr.mxu0 0.0
    %3351 = vmatpush1.msra.mxu0 0.0
    %3352 = vmatprep.subr.mxu0 0.0
    %3353 = vmatpush1.msra.mxu0 0.0
    %3354 = vmatprep.subr.mxu0 0.0
    %3355 = vmatpush1.msra.mxu0 0.0
    %3356 = vmatprep.subr.mxu0 0.0
    %3357 = vmatpush1.msra.mxu0 0.0
    %3358 = vmatprep.subr.mxu0 0.0
    %3359 = vmatpush1.msra.mxu0 0.0
    %3360 = vmatprep.subr.mxu0 0.0
    %3361 = vmatpush1.msra.mxu0 0.0
    %3362 = vmatprep.subr.mxu0 0.0
    %3363 = vmatpush1.msra.mxu0 0.0
    %3364 = vmatprep.subr.mxu0 0.0
    %3365 = vmatpush1.msra.mxu0 0.0
    %3366 = vmatprep.subr.mxu0 0.0
    %3367 = vmatpush1.msra.mxu0 0.0
    %3368 = vmatprep.subr.mxu0 0.0
    %3369 = vmatpush1.msra.mxu0 0.0
    %3370 = vmatprep.subr.mxu0 0.0
    %3371 = vmatpush1.msra.mxu0 0.0
    %3372 = vmatprep.subr.mxu0 0.0
    %3373 = vmatpush1.msra.mxu0 0.0
    %3374 = vmatprep.subr.mxu0 0.0
    %3375 = vmatpush1.msra.mxu0 0.0
    %3376 = vmatprep.subr.mxu0 0.0
    %3377 = vmatpush1.msra.mxu0 0.0
    %3378 = vmatprep.subr.mxu0 0.0
    %3379 = vmatpush1.msra.mxu0 0.0
    %3380 = vmatprep.subr.mxu0 0.0
    %3381 = vmatpush1.msra.mxu0 0.0
    %3382 = vmatprep.subr.mxu0 0.0
    %3383 = vmatpush1.msra.mxu0 0.0
    %3384 = vmatprep.subr.mxu0 0.0
    %3385 = vmatpush1.msra.mxu0 0.0
    %3386 = vmatprep.subr.mxu0 0.0
    %3387 = vmatpush1.msra.mxu0 0.0
    %3388 = vmatprep.subr.mxu0 0.0
    %3389 = vmatpush1.msra.mxu0 0.0
    %3390 = vmatprep.subr.mxu0 0.0
    %3391 = vmatpush1.msra.mxu0 0.0
    %3392 = vmatprep.subr.mxu0 0.0
    %3393 = vmatpush1.msra.mxu0 0.0
    %3394 = vmatprep.subr.mxu0 0.0
    %3395 = vmatpush1.msra.mxu0 0.0
    %3396 = vmatprep.subr.mxu0 0.0
    %3397 = vmatpush1.msra.mxu0 0.0
    %3398 = vmatprep.mubr.f32.mxu0 0.0
    %3399 = vmatmul.mubr.f32.gmra.mrb[0].mxu0 %v3332
    %v3400 = vpop.f32.mrb[0].mxu0
    %v3401 = vadd.f32 0.0, %v3400
    %v3402 = vpop.f32.mrb[0].mxu0
    %3403 = vdwg.mxu0
    %v3404 = vld [vmem:[%s1464] sm:$0xff]
    %v3405 = vld [vmem:[%s1464 + $0x8] sm:$0xff]
    %v3407 = vsel %vm325, %v3401, 0
    %3409 = vmatprep.subr.mxu0 0.0
    %3410 = vmatpush1.msra.mxu0 %v3404
    %3411 = vmatprep.subr.mxu0 0.0
    %3412 = vmatpush1.msra.mxu0 %v3405
    %3413 = vmatprep.subr.mxu0 0.0
    %3414 = vmatpush1.msra.mxu0 0.0
    %3415 = vmatprep.subr.mxu0 0.0
    %3416 = vmatpush1.msra.mxu0 0.0
    %3417 = vmatprep.subr.mxu0 0.0
    %3418 = vmatpush1.msra.mxu0 0.0
    %3419 = vmatprep.subr.mxu0 0.0
    %3420 = vmatpush1.msra.mxu0 0.0
    %3421 = vmatprep.subr.mxu0 0.0
    %3422 = vmatpush1.msra.mxu0 0.0
    %3423 = vmatprep.subr.mxu0 0.0
    %3424 = vmatpush1.msra.mxu0 0.0
    %3425 = vmatprep.subr.mxu0 0.0
    %3426 = vmatpush1.msra.mxu0 0.0
    %3427 = vmatprep.subr.mxu0 0.0
    %3428 = vmatpush1.msra.mxu0 0.0
    %3429 = vmatprep.subr.mxu0 0.0
    %3430 = vmatpush1.msra.mxu0 0.0
    %3431 = vmatprep.subr.mxu0 0.0
    %3432 = vmatpush1.msra.mxu0 0.0
    %3433 = vmatprep.subr.mxu0 0.0
    %3434 = vmatpush1.msra.mxu0 0.0
    %3435 = vmatprep.subr.mxu0 0.0
    %3436 = vmatpush1.msra.mxu0 0.0
    %3437 = vmatprep.subr.mxu0 0.0
    %3438 = vmatpush1.msra.mxu0 0.0
    %3439 = vmatprep.subr.mxu0 0.0
    %3440 = vmatpush1.msra.mxu0 0.0
    %3441 = vmatprep.subr.mxu0 0.0
    %3442 = vmatpush1.msra.mxu0 0.0
    %3443 = vmatprep.subr.mxu0 0.0
    %3444 = vmatpush1.msra.mxu0 0.0
    %3445 = vmatprep.subr.mxu0 0.0
    %3446 = vmatpush1.msra.mxu0 0.0
    %3447 = vmatprep.subr.mxu0 0.0
    %3448 = vmatpush1.msra.mxu0 0.0
    %3449 = vmatprep.subr.mxu0 0.0
    %3450 = vmatpush1.msra.mxu0 0.0
    %3451 = vmatprep.subr.mxu0 0.0
    %3452 = vmatpush1.msra.mxu0 0.0
    %3453 = vmatprep.subr.mxu0 0.0
    %3454 = vmatpush1.msra.mxu0 0.0
    %3455 = vmatprep.subr.mxu0 0.0
    %3456 = vmatpush1.msra.mxu0 0.0
    %3457 = vmatprep.subr.mxu0 0.0
    %3458 = vmatpush1.msra.mxu0 0.0
    %3459 = vmatprep.subr.mxu0 0.0
    %3460 = vmatpush1.msra.mxu0 0.0
    %3461 = vmatprep.subr.mxu0 0.0
    %3462 = vmatpush1.msra.mxu0 0.0
    %3463 = vmatprep.subr.mxu0 0.0
    %3464 = vmatpush1.msra.mxu0 0.0
    %3465 = vmatprep.subr.mxu0 0.0
    %3466 = vmatpush1.msra.mxu0 0.0
    %3467 = vmatprep.subr.mxu0 0.0
    %3468 = vmatpush1.msra.mxu0 0.0
    %3469 = vmatprep.subr.mxu0 0.0
    %3470 = vmatpush1.msra.mxu0 0.0
    %3471 = vmatprep.subr.mxu0 0.0
    %3472 = vmatpush1.msra.mxu0 0.0
    %3473 = vmatprep.mubr.f32.mxu0 0.0
    %3474 = vmatmul.mubr.f32.gmra.mrb[0].mxu0 %v3407
    %v3475 = vpop.f32.mrb[0].mxu0
    %v3476 = vadd.f32 0.0, %v3475
    %v3477 = vpop.f32.mrb[0].mxu0
    %3478 = vdwg.mxu0
    %v3479 = vadd.f32 %v2995, %v3476
    %v3480 = vld [vmem:[%s1541] sm:$0xff]
    %v3481 = vld [vmem:[%s1541 + $0x8] sm:$0xff]
    %v3482 = vld [vmem:[%s1541 + $0x10] sm:$0xff]
    %v3483 = vld [vmem:[%s1541 + $0x18] sm:$0xff]
    %v3484 = vld [vmem:[%s1546] sm:$0x1]
    %v3486 = vlaneseq
    %v3487 = vshrl.u32 %v3486, 7
    %v3488 = vsub.s32 0, %v3487
    %v3489 = vrot.slane %v3484, %v3488
    %3491 = vmatprep.subr.mxu0 0.0
    %3492 = vmatpush1.msra.mxu0 %v3480
    %3493 = vmatprep.subr.mxu0 0.0
    %3494 = vmatpush1.msra.mxu0 %v3481
    %3495 = vmatprep.subr.mxu0 0.0
    %3496 = vmatpush1.msra.mxu0 %v3482
    %3497 = vmatprep.subr.mxu0 0.0
    %3498 = vmatpush1.msra.mxu0 %v3483
    %3499 = vmatprep.subr.mxu0 0.0
    %3500 = vmatpush1.msra.mxu0 0.0
    %3501 = vmatprep.subr.mxu0 0.0
    %3502 = vmatpush1.msra.mxu0 0.0
    %3503 = vmatprep.subr.mxu0 0.0
    %3504 = vmatpush1.msra.mxu0 0.0
    %3505 = vmatprep.subr.mxu0 0.0
    %3506 = vmatpush1.msra.mxu0 0.0
    %3507 = vmatprep.subr.mxu0 0.0
    %3508 = vmatpush1.msra.mxu0 0.0
    %3509 = vmatprep.subr.mxu0 0.0
    %3510 = vmatpush1.msra.mxu0 0.0
    %3511 = vmatprep.subr.mxu0 0.0
    %3512 = vmatpush1.msra.mxu0 0.0
    %3513 = vmatprep.subr.mxu0 0.0
    %3514 = vmatpush1.msra.mxu0 0.0
    %3515 = vmatprep.subr.mxu0 0.0
    %3516 = vmatpush1.msra.mxu0 0.0
    %3517 = vmatprep.subr.mxu0 0.0
    %3518 = vmatpush1.msra.mxu0 0.0
    %3519 = vmatprep.subr.mxu0 0.0
    %3520 = vmatpush1.msra.mxu0 0.0
    %3521 = vmatprep.subr.mxu0 0.0
    %3522 = vmatpush1.msra.mxu0 0.0
    %3523 = vmatprep.subr.mxu0 0.0
    %3524 = vmatpush1.msra.mxu0 0.0
    %3525 = vmatprep.subr.mxu0 0.0
    %3526 = vmatpush1.msra.mxu0 0.0
    %3527 = vmatprep.subr.mxu0 0.0
    %3528 = vmatpush1.msra.mxu0 0.0
    %3529 = vmatprep.subr.mxu0 0.0
    %3530 = vmatpush1.msra.mxu0 0.0
    %3531 = vmatprep.subr.mxu0 0.0
    %3532 = vmatpush1.msra.mxu0 0.0
    %3533 = vmatprep.subr.mxu0 0.0
    %3534 = vmatpush1.msra.mxu0 0.0
    %3535 = vmatprep.subr.mxu0 0.0
    %3536 = vmatpush1.msra.mxu0 0.0
    %3537 = vmatprep.subr.mxu0 0.0
    %3538 = vmatpush1.msra.mxu0 0.0
    %3539 = vmatprep.subr.mxu0 0.0
    %3540 = vmatpush1.msra.mxu0 0.0
    %3541 = vmatprep.subr.mxu0 0.0
    %3542 = vmatpush1.msra.mxu0 0.0
    %3543 = vmatprep.subr.mxu0 0.0
    %3544 = vmatpush1.msra.mxu0 0.0
    %3545 = vmatprep.subr.mxu0 0.0
    %3546 = vmatpush1.msra.mxu0 0.0
    %3547 = vmatprep.subr.mxu0 0.0
    %3548 = vmatpush1.msra.mxu0 0.0
    %3549 = vmatprep.subr.mxu0 0.0
    %3550 = vmatpush1.msra.mxu0 0.0
    %3551 = vmatprep.subr.mxu0 0.0
    %3552 = vmatpush1.msra.mxu0 0.0
    %3553 = vmatprep.subr.mxu0 0.0
    %3554 = vmatpush1.msra.mxu0 0.0
    %3555 = vmatprep.mubr.f32.mxu0 0.0
    %3556 = vmatmul.mubr.f32.gmra.mrb[0].mxu0 %v2042
    %v3557 = vpop.f32.mrb[0].mxu0
    %v3558 = vadd.f32 %v3489, %v3557
    %v3559 = vpop.f32.mrb[0].mxu0
    %3560 = vdwg.mxu0
    %v3561 = vld [vmem:[%s1624] sm:$0xff]
    %v3562 = vld [vmem:[%s1624 + $0x8] sm:$0xff]
    %v3563 = vld [vmem:[%s1624 + $0x10] sm:$0xff]
    %v3564 = vld [vmem:[%s1624 + $0x18] sm:$0xff]
    %v3565 = vld [vmem:[%s1629] sm:$0x1]
    %v3567 = vlaneseq
    %v3568 = vshrl.u32 %v3567, 7
    %v3569 = vsub.s32 0, %v3568
    %v3570 = vrot.slane %v3565, %v3569
    %3572 = vmatprep.subr.mxu0 0.0
    %3573 = vmatpush1.msra.mxu0 %v3561
    %3574 = vmatprep.subr.mxu0 0.0
    %3575 = vmatpush1.msra.mxu0 %v3562
    %3576 = vmatprep.subr.mxu0 0.0
    %3577 = vmatpush1.msra.mxu0 %v3563
    %3578 = vmatprep.subr.mxu0 0.0
    %3579 = vmatpush1.msra.mxu0 %v3564
    %3580 = vmatprep.subr.mxu0 0.0
    %3581 = vmatpush1.msra.mxu0 0.0
    %3582 = vmatprep.subr.mxu0 0.0
    %3583 = vmatpush1.msra.mxu0 0.0
    %3584 = vmatprep.subr.mxu0 0.0
    %3585 = vmatpush1.msra.mxu0 0.0
    %3586 = vmatprep.subr.mxu0 0.0
    %3587 = vmatpush1.msra.mxu0 0.0
    %3588 = vmatprep.subr.mxu0 0.0
    %3589 = vmatpush1.msra.mxu0 0.0
    %3590 = vmatprep.subr.mxu0 0.0
    %3591 = vmatpush1.msra.mxu0 0.0
    %3592 = vmatprep.subr.mxu0 0.0
    %3593 = vmatpush1.msra.mxu0 0.0
    %3594 = vmatprep.subr.mxu0 0.0
    %3595 = vmatpush1.msra.mxu0 0.0
    %3596 = vmatprep.subr.mxu0 0.0
    %3597 = vmatpush1.msra.mxu0 0.0
    %3598 = vmatprep.subr.mxu0 0.0
    %3599 = vmatpush1.msra.mxu0 0.0
    %3600 = vmatprep.subr.mxu0 0.0
    %3601 = vmatpush1.msra.mxu0 0.0
    %3602 = vmatprep.subr.mxu0 0.0
    %3603 = vmatpush1.msra.mxu0 0.0
    %3604 = vmatprep.subr.mxu0 0.0
    %3605 = vmatpush1.msra.mxu0 0.0
    %3606 = vmatprep.subr.mxu0 0.0
    %3607 = vmatpush1.msra.mxu0 0.0
    %3608 = vmatprep.subr.mxu0 0.0
    %3609 = vmatpush1.msra.mxu0 0.0
    %3610 = vmatprep.subr.mxu0 0.0
    %3611 = vmatpush1.msra.mxu0 0.0
    %3612 = vmatprep.subr.mxu0 0.0
    %3613 = vmatpush1.msra.mxu0 0.0
    %3614 = vmatprep.subr.mxu0 0.0
    %3615 = vmatpush1.msra.mxu0 0.0
    %3616 = vmatprep.subr.mxu0 0.0
    %3617 = vmatpush1.msra.mxu0 0.0
    %3618 = vmatprep.subr.mxu0 0.0
    %3619 = vmatpush1.msra.mxu0 0.0
    %3620 = vmatprep.subr.mxu0 0.0
    %3621 = vmatpush1.msra.mxu0 0.0
    %3622 = vmatprep.subr.mxu0 0.0
    %3623 = vmatpush1.msra.mxu0 0.0
    %3624 = vmatprep.subr.mxu0 0.0
    %3625 = vmatpush1.msra.mxu0 0.0
    %3626 = vmatprep.subr.mxu0 0.0
    %3627 = vmatpush1.msra.mxu0 0.0
    %3628 = vmatprep.subr.mxu0 0.0
    %3629 = vmatpush1.msra.mxu0 0.0
    %3630 = vmatprep.subr.mxu0 0.0
    %3631 = vmatpush1.msra.mxu0 0.0
    %3632 = vmatprep.subr.mxu0 0.0
    %3633 = vmatpush1.msra.mxu0 0.0
    %3634 = vmatprep.subr.mxu0 0.0
    %3635 = vmatpush1.msra.mxu0 0.0
    %3636 = vmatprep.mubr.f32.mxu0 0.0
    %3637 = vmatmul.mubr.f32.gmra.mrb[0].mxu0 %v2126
    %v3638 = vpop.f32.mrb[0].mxu0
    %v3639 = vadd.f32 %v3570, %v3638
    %v3640 = vpop.f32.mrb[0].mxu0
    %3641 = vdwg.mxu0
    %v3642 = vld [vmem:[%s1707] sm:$0xff]
    %v3643 = vld [vmem:[%s1707 + $0x8] sm:$0xff]
    %v3644 = vld [vmem:[%s1707 + $0x10] sm:$0xff]
    %v3645 = vld [vmem:[%s1707 + $0x18] sm:$0xff]
    %v3646 = vld [vmem:[%s1712] sm:$0x1]
    %v3648 = vlaneseq
    %v3649 = vshrl.u32 %v3648, 7
    %v3650 = vsub.s32 0, %v3649
    %v3651 = vrot.slane %v3646, %v3650
    %3653 = vmatprep.subr.mxu0 0.0
    %3654 = vmatpush1.msra.mxu0 %v3642
    %3655 = vmatprep.subr.mxu0 0.0
    %3656 = vmatpush1.msra.mxu0 %v3643
    %3657 = vmatprep.subr.mxu0 0.0
    %3658 = vmatpush1.msra.mxu0 %v3644
    %3659 = vmatprep.subr.mxu0 0.0
    %3660 = vmatpush1.msra.mxu0 %v3645
    %3661 = vmatprep.subr.mxu0 0.0
    %3662 = vmatpush1.msra.mxu0 0.0
    %3663 = vmatprep.subr.mxu0 0.0
    %3664 = vmatpush1.msra.mxu0 0.0
    %3665 = vmatprep.subr.mxu0 0.0
    %3666 = vmatpush1.msra.mxu0 0.0
    %3667 = vmatprep.subr.mxu0 0.0
    %3668 = vmatpush1.msra.mxu0 0.0
    %3669 = vmatprep.subr.mxu0 0.0
    %3670 = vmatpush1.msra.mxu0 0.0
    %3671 = vmatprep.subr.mxu0 0.0
    %3672 = vmatpush1.msra.mxu0 0.0
    %3673 = vmatprep.subr.mxu0 0.0
    %3674 = vmatpush1.msra.mxu0 0.0
    %3675 = vmatprep.subr.mxu0 0.0
    %3676 = vmatpush1.msra.mxu0 0.0
    %3677 = vmatprep.subr.mxu0 0.0
    %3678 = vmatpush1.msra.mxu0 0.0
    %3679 = vmatprep.subr.mxu0 0.0
    %3680 = vmatpush1.msra.mxu0 0.0
    %3681 = vmatprep.subr.mxu0 0.0
    %3682 = vmatpush1.msra.mxu0 0.0
    %3683 = vmatprep.subr.mxu0 0.0
    %3684 = vmatpush1.msra.mxu0 0.0
    %3685 = vmatprep.subr.mxu0 0.0
    %3686 = vmatpush1.msra.mxu0 0.0
    %3687 = vmatprep.subr.mxu0 0.0
    %3688 = vmatpush1.msra.mxu0 0.0
    %3689 = vmatprep.subr.mxu0 0.0
    %3690 = vmatpush1.msra.mxu0 0.0
    %3691 = vmatprep.subr.mxu0 0.0
    %3692 = vmatpush1.msra.mxu0 0.0
    %3693 = vmatprep.subr.mxu0 0.0
    %3694 = vmatpush1.msra.mxu0 0.0
    %3695 = vmatprep.subr.mxu0 0.0
    %3696 = vmatpush1.msra.mxu0 0.0
    %3697 = vmatprep.subr.mxu0 0.0
    %3698 = vmatpush1.msra.mxu0 0.0
    %3699 = vmatprep.subr.mxu0 0.0
    %3700 = vmatpush1.msra.mxu0 0.0
    %3701 = vmatprep.subr.mxu0 0.0
    %3702 = vmatpush1.msra.mxu0 0.0
    %3703 = vmatprep.subr.mxu0 0.0
    %3704 = vmatpush1.msra.mxu0 0.0
    %3705 = vmatprep.subr.mxu0 0.0
    %3706 = vmatpush1.msra.mxu0 0.0
    %3707 = vmatprep.subr.mxu0 0.0
    %3708 = vmatpush1.msra.mxu0 0.0
    %3709 = vmatprep.subr.mxu0 0.0
    %3710 = vmatpush1.msra.mxu0 0.0
    %3711 = vmatprep.subr.mxu0 0.0
    %3712 = vmatpush1.msra.mxu0 0.0
    %3713 = vmatprep.subr.mxu0 0.0
    %3714 = vmatpush1.msra.mxu0 0.0
    %3715 = vmatprep.subr.mxu0 0.0
    %3716 = vmatpush1.msra.mxu0 0.0
    %3717 = vmatprep.mubr.f32.mxu0 0.0
    %3718 = vmatmul.mubr.f32.gmra.mrb[0].mxu0 %v2126
    %v3719 = vpop.f32.mrb[0].mxu0
    %v3720 = vadd.f32 %v3651, %v3719
    %v3721 = vpop.f32.mrb[0].mxu0
    %3722 = vdwg.mxu0
    %v3724 = vsel %vm325, %v3558, 0
    %v3727 = vsel %vm325, %v3639, 0
    %3729 = vmatprep.subr.mxu0 0.0
    %3730 = vmatpush1.xpose.msra.mxu0 %v3727
    %3731 = vmatprep.subr.mxu0 0.0
    %3732 = vmatpush1.xpose.msra.mxu0 0.0
    %3733 = vmatprep.subr.mxu0 0.0
    %3734 = vmatpush1.xpose.msra.mxu0 0.0
    %3735 = vmatprep.subr.mxu0 0.0
    %3736 = vmatpush1.xpose.msra.mxu0 0.0
    %3737 = vmatprep.subr.mxu0 0.0
    %3738 = vmatpush1.xpose.msra.mxu0 0.0
    %3739 = vmatprep.subr.mxu0 0.0
    %3740 = vmatpush1.xpose.msra.mxu0 0.0
    %3741 = vmatprep.subr.mxu0 0.0
    %3742 = vmatpush1.xpose.msra.mxu0 0.0
    %3743 = vmatprep.subr.mxu0 0.0
    %3744 = vmatpush1.xpose.msra.mxu0 0.0
    %3745 = vmatprep.subr.mxu0 0.0
    %3746 = vmatpush1.xpose.msra.mxu0 0.0
    %3747 = vmatprep.subr.mxu0 0.0
    %3748 = vmatpush1.xpose.msra.mxu0 0.0
    %3749 = vmatprep.subr.mxu0 0.0
    %3750 = vmatpush1.xpose.msra.mxu0 0.0
    %3751 = vmatprep.subr.mxu0 0.0
    %3752 = vmatpush1.xpose.msra.mxu0 0.0
    %3753 = vmatprep.subr.mxu0 0.0
    %3754 = vmatpush1.xpose.msra.mxu0 0.0
    %3755 = vmatprep.subr.mxu0 0.0
    %3756 = vmatpush1.xpose.msra.mxu0 0.0
    %3757 = vmatprep.subr.mxu0 0.0
    %3758 = vmatpush1.xpose.msra.mxu0 0.0
    %3759 = vmatprep.subr.mxu0 0.0
    %3760 = vmatpush1.xpose.msra.mxu0 0.0
    %3761 = vmatprep.subr.mxu0 0.0
    %3762 = vmatpush1.xpose.msra.mxu0 0.0
    %3763 = vmatprep.subr.mxu0 0.0
    %3764 = vmatpush1.xpose.msra.mxu0 0.0
    %3765 = vmatprep.subr.mxu0 0.0
    %3766 = vmatpush1.xpose.msra.mxu0 0.0
    %3767 = vmatprep.subr.mxu0 0.0
    %3768 = vmatpush1.xpose.msra.mxu0 0.0
    %3769 = vmatprep.subr.mxu0 0.0
    %3770 = vmatpush1.xpose.msra.mxu0 0.0
    %3771 = vmatprep.subr.mxu0 0.0
    %3772 = vmatpush1.xpose.msra.mxu0 0.0
    %3773 = vmatprep.subr.mxu0 0.0
    %3774 = vmatpush1.xpose.msra.mxu0 0.0
    %3775 = vmatprep.subr.mxu0 0.0
    %3776 = vmatpush1.xpose.msra.mxu0 0.0
    %3777 = vmatprep.subr.mxu0 0.0
    %3778 = vmatpush1.xpose.msra.mxu0 0.0
    %3779 = vmatprep.subr.mxu0 0.0
    %3780 = vmatpush1.xpose.msra.mxu0 0.0
    %3781 = vmatprep.subr.mxu0 0.0
    %3782 = vmatpush1.xpose.msra.mxu0 0.0
    %3783 = vmatprep.subr.mxu0 0.0
    %3784 = vmatpush1.xpose.msra.mxu0 0.0
    %3785 = vmatprep.subr.mxu0 0.0
    %3786 = vmatpush1.xpose.msra.mxu0 0.0
    %3787 = vmatprep.subr.mxu0 0.0
    %3788 = vmatpush1.xpose.msra.mxu0 0.0
    %3789 = vmatprep.subr.mxu0 0.0
    %3790 = vmatpush1.xpose.msra.mxu0 0.0
    %3791 = vmatprep.subr.mxu0 0.0
    %3792 = vmatpush1.xpose.msra.mxu0 0.0
    %3793 = vmatprep.mubr.f32.mxu0 0.0
    %3794 = vmatmul.mubr.f32.gmra.mrb[0].mxu0 %v3724
    %v3795 = vpop.f32.mrb[0].mxu0
    %v3796 = vadd.f32 0.0, %v3795
    %v3797 = vpop.f32.mrb[0].mxu0
    %3798 = vdwg.mxu0
    %v3799 = vmul.f32 %v3796, 0.0625
    %v3800 = vsel %vm403, %v3799, -inf
    %3801 = vmax.xlane.f32.xlu0 %v3800
    %v3802 = vpop.xlane.xlu0 %3801
    %v3803 = vsub.f32 %v3799, %v3802
    %v3804 = vmul.f32 %v3803, 1.442695
    %v3805 = vpow.pop %v3804
    %v3806 = vsel %vm403, %v3805, 0.0
    %3807 = vadd.xlane.f32.xlu0 %v3806
    %v3808 = vpop.xlane.xlu0 %3807
    %v3809 = vrcp.pop %v3808
    %v3810 = vmul.f32 %v3805, %v3809
    %s3811 = scalar_lea.vmem [#allocation4], 56
    %3812 = vst.msk [vmem:[%s3811] sm:$0xff] %vm403, %v3810
    %v3814 = vsel %vm403, %v3810, 0
    %3816 = vmatprep.subr.mxu0 0.0
    %3817 = vmatpush1.msra.mxu0 %v3720
    %3818 = vmatprep.subr.mxu0 0.0
    %3819 = vmatpush1.msra.mxu0 0.0
    %3820 = vmatprep.subr.mxu0 0.0
    %3821 = vmatpush1.msra.mxu0 0.0
    %3822 = vmatprep.subr.mxu0 0.0
    %3823 = vmatpush1.msra.mxu0 0.0
    %3824 = vmatprep.subr.mxu0 0.0
    %3825 = vmatpush1.msra.mxu0 0.0
    %3826 = vmatprep.subr.mxu0 0.0
    %3827 = vmatpush1.msra.mxu0 0.0
    %3828 = vmatprep.subr.mxu0 0.0
    %3829 = vmatpush1.msra.mxu0 0.0
    %3830 = vmatprep.subr.mxu0 0.0
    %3831 = vmatpush1.msra.mxu0 0.0
    %3832 = vmatprep.subr.mxu0 0.0
    %3833 = vmatpush1.msra.mxu0 0.0
    %3834 = vmatprep.subr.mxu0 0.0
    %3835 = vmatpush1.msra.mxu0 0.0
    %3836 = vmatprep.subr.mxu0 0.0
    %3837 = vmatpush1.msra.mxu0 0.0
    %3838 = vmatprep.subr.mxu0 0.0
    %3839 = vmatpush1.msra.mxu0 0.0
    %3840 = vmatprep.subr.mxu0 0.0
    %3841 = vmatpush1.msra.mxu0 0.0
    %3842 = vmatprep.subr.mxu0 0.0
    %3843 = vmatpush1.msra.mxu0 0.0
    %3844 = vmatprep.subr.mxu0 0.0
    %3845 = vmatpush1.msra.mxu0 0.0
    %3846 = vmatprep.subr.mxu0 0.0
    %3847 = vmatpush1.msra.mxu0 0.0
    %3848 = vmatprep.subr.mxu0 0.0
    %3849 = vmatpush1.msra.mxu0 0.0
    %3850 = vmatprep.subr.mxu0 0.0
    %3851 = vmatpush1.msra.mxu0 0.0
    %3852 = vmatprep.subr.mxu0 0.0
    %3853 = vmatpush1.msra.mxu0 0.0
    %3854 = vmatprep.subr.mxu0 0.0
    %3855 = vmatpush1.msra.mxu0 0.0
    %3856 = vmatprep.subr.mxu0 0.0
    %3857 = vmatpush1.msra.mxu0 0.0
    %3858 = vmatprep.subr.mxu0 0.0
    %3859 = vmatpush1.msra.mxu0 0.0
    %3860 = vmatprep.subr.mxu0 0.0
    %3861 = vmatpush1.msra.mxu0 0.0
    %3862 = vmatprep.subr.mxu0 0.0
    %3863 = vmatpush1.msra.mxu0 0.0
    %3864 = vmatprep.subr.mxu0 0.0
    %3865 = vmatpush1.msra.mxu0 0.0
    %3866 = vmatprep.subr.mxu0 0.0
    %3867 = vmatpush1.msra.mxu0 0.0
    %3868 = vmatprep.subr.mxu0 0.0
    %3869 = vmatpush1.msra.mxu0 0.0
    %3870 = vmatprep.subr.mxu0 0.0
    %3871 = vmatpush1.msra.mxu0 0.0
    %3872 = vmatprep.subr.mxu0 0.0
    %3873 = vmatpush1.msra.mxu0 0.0
    %3874 = vmatprep.subr.mxu0 0.0
    %3875 = vmatpush1.msra.mxu0 0.0
    %3876 = vmatprep.subr.mxu0 0.0
    %3877 = vmatpush1.msra.mxu0 0.0
    %3878 = vmatprep.subr.mxu0 0.0
    %3879 = vmatpush1.msra.mxu0 0.0
    %3880 = vmatprep.mubr.f32.mxu0 0.0
    %3881 = vmatmul.mubr.f32.gmra.mrb[0].mxu0 %v3814
    %v3882 = vpop.f32.mrb[0].mxu0
    %v3883 = vadd.f32 0.0, %v3882
    %v3884 = vpop.f32.mrb[0].mxu0
    %3885 = vdwg.mxu0
    %v3886 = vld [vmem:[%s1953] sm:$0xff]
    %v3887 = vld [vmem:[%s1953 + $0x8] sm:$0xff]
    %v3889 = vsel %vm325, %v3883, 0
    %3891 = vmatprep.subr.mxu0 0.0
    %3892 = vmatpush1.msra.mxu0 %v3886
    %3893 = vmatprep.subr.mxu0 0.0
    %3894 = vmatpush1.msra.mxu0 %v3887
    %3895 = vmatprep.subr.mxu0 0.0
    %3896 = vmatpush1.msra.mxu0 0.0
    %3897 = vmatprep.subr.mxu0 0.0
    %3898 = vmatpush1.msra.mxu0 0.0
    %3899 = vmatprep.subr.mxu0 0.0
    %3900 = vmatpush1.msra.mxu0 0.0
    %3901 = vmatprep.subr.mxu0 0.0
    %3902 = vmatpush1.msra.mxu0 0.0
    %3903 = vmatprep.subr.mxu0 0.0
    %3904 = vmatpush1.msra.mxu0 0.0
    %3905 = vmatprep.subr.mxu0 0.0
    %3906 = vmatpush1.msra.mxu0 0.0
    %3907 = vmatprep.subr.mxu0 0.0
    %3908 = vmatpush1.msra.mxu0 0.0
    %3909 = vmatprep.subr.mxu0 0.0
    %3910 = vmatpush1.msra.mxu0 0.0
    %3911 = vmatprep.subr.mxu0 0.0
    %3912 = vmatpush1.msra.mxu0 0.0
    %3913 = vmatprep.subr.mxu0 0.0
    %3914 = vmatpush1.msra.mxu0 0.0
    %3915 = vmatprep.subr.mxu0 0.0
    %3916 = vmatpush1.msra.mxu0 0.0
    %3917 = vmatprep.subr.mxu0 0.0
    %3918 = vmatpush1.msra.mxu0 0.0
    %3919 = vmatprep.subr.mxu0 0.0
    %3920 = vmatpush1.msra.mxu0 0.0
    %3921 = vmatprep.subr.mxu0 0.0
    %3922 = vmatpush1.msra.mxu0 0.0
    %3923 = vmatprep.subr.mxu0 0.0
    %3924 = vmatpush1.msra.mxu0 0.0
    %3925 = vmatprep.subr.mxu0 0.0
    %3926 = vmatpush1.msra.mxu0 0.0
    %3927 = vmatprep.subr.mxu0 0.0
    %3928 = vmatpush1.msra.mxu0 0.0
    %3929 = vmatprep.subr.mxu0 0.0
    %3930 = vmatpush1.msra.mxu0 0.0
    %3931 = vmatprep.subr.mxu0 0.0
    %3932 = vmatpush1.msra.mxu0 0.0
    %3933 = vmatprep.subr.mxu0 0.0
    %3934 = vmatpush1.msra.mxu0 0.0
    %3935 = vmatprep.subr.mxu0 0.0
    %3936 = vmatpush1.msra.mxu0 0.0
    %3937 = vmatprep.subr.mxu0 0.0
    %3938 = vmatpush1.msra.mxu0 0.0
    %3939 = vmatprep.subr.mxu0 0.0
    %3940 = vmatpush1.msra.mxu0 0.0
    %3941 = vmatprep.subr.mxu0 0.0
    %3942 = vmatpush1.msra.mxu0 0.0
    %3943 = vmatprep.subr.mxu0 0.0
    %3944 = vmatpush1.msra.mxu0 0.0
    %3945 = vmatprep.subr.mxu0 0.0
    %3946 = vmatpush1.msra.mxu0 0.0
    %3947 = vmatprep.subr.mxu0 0.0
    %3948 = vmatpush1.msra.mxu0 0.0
    %3949 = vmatprep.subr.mxu0 0.0
    %3950 = vmatpush1.msra.mxu0 0.0
    %3951 = vmatprep.subr.mxu0 0.0
    %3952 = vmatpush1.msra.mxu0 0.0
    %3953 = vmatprep.subr.mxu0 0.0
    %3954 = vmatpush1.msra.mxu0 0.0
    %3955 = vmatprep.mubr.f32.mxu0 0.0
    %3956 = vmatmul.mubr.f32.gmra.mrb[0].mxu0 %v3889
    %v3957 = vpop.f32.mrb[0].mxu0
    %v3958 = vadd.f32 0.0, %v3957
    %v3959 = vpop.f32.mrb[0].mxu0
    %3960 = vdwg.mxu0
    %v3961 = vadd.f32 %v3479, %v3958
    %v3962 = vld [vmem:[%s9] sm:$0x1]
    %v3964 = vlaneseq
    %v3965 = vshrl.u32 %v3964, 7
    %v3966 = vsub.s32 0, %v3965
    %v3967 = vrot.slane %v3962, %v3966
    %v3969 = vadd.f32 %v2029, %v3967
    %v3970 = vadd.f32 %v3961, %v3967
    %v3971 = vadd.f32 %v3969, %v63
    %v3972 = vadd.f32 %v3970, %v64
    %v3973 = vld [vmem:[%s10] sm:$0x1]
    %v3974 = vld [vmem:[%s11] sm:$0x1]
    %v3975 = vsel %vm86, %v3971, 0.0
    %3976 = vadd.xlane.f32.xlu0 %v3975
    %v3977 = vpop.xlane.xlu0 %3976
    %v3978 = vsel %vm86, %v3972, 0.0
    %3979 = vadd.xlane.f32.xlu0 %v3978
    %v3980 = vpop.xlane.xlu0 %3979
    %v3981 = vrcp.pop 32.0
    %v3982 = vmul.f32 %v3977, %v3981
    %v3983 = vmul.f32 %v3980, %v3981
    %v3984 = vsub.f32 %v3971, %v3982
    %v3985 = vsub.f32 %v3972, %v3983
    %v3986 = vmul.f32 %v3984, %v3984
    %v3987 = vmul.f32 %v3985, %v3985
    %v3988 = vsel %vm86, %v3986, 0.0
    %3989 = vadd.xlane.f32.xlu0 %v3988
    %v3990 = vpop.xlane.xlu0 %3989
    %v3991 = vsel %vm86, %v3987, 0.0
    %3992 = vadd.xlane.f32.xlu0 %v3991
    %v3993 = vpop.xlane.xlu0 %3992
    %v3994 = vmul.f32 %v3990, %v3981
    %v3995 = vmul.f32 %v3993, %v3981
    %v3996 = vadd.f32 %v3994, 1e-05
    %v3997 = vadd.f32 %v3995, 1e-05
    %v3998 = vrsqrt.pop %v3996
    %v3999 = vrsqrt.pop %v3997
    %v4000 = vmul.f32 %v3984, %v3998
    %v4001 = vmul.f32 %v3985, %v3999
    %v4003 = vlaneseq
    %v4004 = vshrl.u32 %v4003, 7
    %v4005 = vsub.s32 0, %v4004
    %v4006 = vrot.slane %v3973, %v4005
    %v4008 = vmul.f32 %v4000, %v4006
    %v4009 = vmul.f32 %v4001, %v4006
    %v4011 = vlaneseq
    %v4012 = vshrl.u32 %v4011, 7
    %v4013 = vsub.s32 0, %v4012
    %v4014 = vrot.slane %v3974, %v4013
    %v4016 = vadd.f32 %v4008, %v4014
    %v4017 = vadd.f32 %v4009, %v4014
    %v4018 = vld [vmem:[%s12] sm:$0xff]
    %v4019 = vld [vmem:[%s12 + $0x8] sm:$0xff]
    %v4020 = vld [vmem:[%s12 + $0x10] sm:$0xff]
    %v4021 = vld [vmem:[%s12 + $0x18] sm:$0xff]
    %v4022 = vld [vmem:[%s13] sm:$0x1]
    %v4024 = vlaneseq
    %v4025 = vshrl.u32 %v4024, 7
    %v4026 = vsub.s32 0, %v4025
    %v4027 = vrot.slane %v4022, %v4026
    %v4030 = vsel %vm86, %v4016, 0
    %v4033 = vsel %vm86, %v4017, 0
    %4035 = vmatprep.subr.mxu0 0.0
    %4036 = vmatpush1.msra.mxu0 %v4018
    %4037 = vmatprep.subr.mxu0 0.0
    %4038 = vmatpush1.msra.mxu0 %v4019
    %4039 = vmatprep.subr.mxu0 0.0
    %4040 = vmatpush1.msra.mxu0 %v4020
    %4041 = vmatprep.subr.mxu0 0.0
    %4042 = vmatpush1.msra.mxu0 %v4021
    %4043 = vmatprep.subr.mxu0 0.0
    %4044 = vmatpush1.msra.mxu0 0.0
    %4045 = vmatprep.subr.mxu0 0.0
    %4046 = vmatpush1.msra.mxu0 0.0
    %4047 = vmatprep.subr.mxu0 0.0
    %4048 = vmatpush1.msra.mxu0 0.0
    %4049 = vmatprep.subr.mxu0 0.0
    %4050 = vmatpush1.msra.mxu0 0.0
    %4051 = vmatprep.subr.mxu0 0.0
    %4052 = vmatpush1.msra.mxu0 0.0
    %4053 = vmatprep.subr.mxu0 0.0
    %4054 = vmatpush1.msra.mxu0 0.0
    %4055 = vmatprep.subr.mxu0 0.0
    %4056 = vmatpush1.msra.mxu0 0.0
    %4057 = vmatprep.subr.mxu0 0.0
    %4058 = vmatpush1.msra.mxu0 0.0
    %4059 = vmatprep.subr.mxu0 0.0
    %4060 = vmatpush1.msra.mxu0 0.0
    %4061 = vmatprep.subr.mxu0 0.0
    %4062 = vmatpush1.msra.mxu0 0.0
    %4063 = vmatprep.subr.mxu0 0.0
    %4064 = vmatpush1.msra.mxu0 0.0
    %4065 = vmatprep.subr.mxu0 0.0
    %4066 = vmatpush1.msra.mxu0 0.0
    %4067 = vmatprep.subr.mxu0 0.0
    %4068 = vmatpush1.msra.mxu0 0.0
    %4069 = vmatprep.subr.mxu0 0.0
    %4070 = vmatpush1.msra.mxu0 0.0
    %4071 = vmatprep.subr.mxu0 0.0
    %4072 = vmatpush1.msra.mxu0 0.0
    %4073 = vmatprep.subr.mxu0 0.0
    %4074 = vmatpush1.msra.mxu0 0.0
    %4075 = vmatprep.subr.mxu0 0.0
    %4076 = vmatpush1.msra.mxu0 0.0
    %4077 = vmatprep.subr.mxu0 0.0
    %4078 = vmatpush1.msra.mxu0 0.0
    %4079 = vmatprep.subr.mxu0 0.0
    %4080 = vmatpush1.msra.mxu0 0.0
    %4081 = vmatprep.subr.mxu0 0.0
    %4082 = vmatpush1.msra.mxu0 0.0
    %4083 = vmatprep.subr.mxu0 0.0
    %4084 = vmatpush1.msra.mxu0 0.0
    %4085 = vmatprep.subr.mxu0 0.0
    %4086 = vmatpush1.msra.mxu0 0.0
    %4087 = vmatprep.subr.mxu0 0.0
    %4088 = vmatpush1.msra.mxu0 0.0
    %4089 = vmatprep.subr.mxu0 0.0
    %4090 = vmatpush1.msra.mxu0 0.0
    %4091 = vmatprep.subr.mxu0 0.0
    %4092 = vmatpush1.msra.mxu0 0.0
    %4093 = vmatprep.subr.mxu0 0.0
    %4094 = vmatpush1.msra.mxu0 0.0
    %4095 = vmatprep.subr.mxu0 0.0
    %4096 = vmatpush1.msra.mxu0 0.0
    %4097 = vmatprep.subr.mxu0 0.0
    %4098 = vmatpush1.msra.mxu0 0.0
    %4099 = vmatprep.mubr.f32.mxu0 0.0
    %4100 = vmatmul.mubr.f32.gmra.mrb[0].mxu0 %v4030
    %v4101 = vpop.f32.mrb[0].mxu0
    %v4102 = vadd.f32 %v4027, %v4101
    %v4103 = vpop.f32.mrb[0].mxu0
    %4104 = vmatprep.mubr.f32.mxu0 0.0
    %4105 = vmatmul.mubr.f32.gmra.mrb[0].mxu0 %v4033
    %v4106 = vpop.f32.mrb[0].mxu0
    %v4107 = vadd.f32 %v4027, %v4106
    %v4108 = vpop.f32.mrb[0].mxu0
    %4109 = vdwg.mxu0
    %v4110 = vld [vmem:[%s14] sm:$0xff]
    %v4111 = vld [vmem:[%s14 + $0x8] sm:$0xff]
    %v4112 = vld [vmem:[%s14 + $0x10] sm:$0xff]
    %v4113 = vld [vmem:[%s14 + $0x18] sm:$0xff]
    %v4114 = vld [vmem:[%s14 + $0x20] sm:$0xff]
    %v4115 = vld [vmem:[%s14 + $0x28] sm:$0xff]
    %v4116 = vld [vmem:[%s14 + $0x30] sm:$0xff]
    %v4117 = vld [vmem:[%s14 + $0x38] sm:$0xff]
    %v4118 = vld [vmem:[%s14 + $0x40] sm:$0xff]
    %v4119 = vld [vmem:[%s14 + $0x48] sm:$0xff]
    %v4120 = vld [vmem:[%s14 + $0x50] sm:$0xff]
    %v4121 = vld [vmem:[%s14 + $0x58] sm:$0xff]
    %v4122 = vld [vmem:[%s14 + $0x60] sm:$0xff]
    %v4123 = vld [vmem:[%s14 + $0x68] sm:$0xff]
    %v4124 = vld [vmem:[%s14 + $0x70] sm:$0xff]
    %v4125 = vld [vmem:[%s14 + $0x78] sm:$0xff]
    %v4126 = vld [vmem:[%s15] sm:$0x1]
    %v4128 = vlaneseq
    %v4129 = vshrl.u32 %v4128, 7
    %v4130 = vsub.s32 0, %v4129
    %v4131 = vrot.slane %v4126, %v4130
    %4133 = vmatprep.subr.mxu0 0.0
    %4134 = vmatpush1.msra.mxu0 %v4110
    %4135 = vmatprep.subr.mxu0 0.0
    %4136 = vmatpush1.msra.mxu0 %v4111
    %4137 = vmatprep.subr.mxu0 0.0
    %4138 = vmatpush1.msra.mxu0 %v4112
    %4139 = vmatprep.subr.mxu0 0.0
    %4140 = vmatpush1.msra.mxu0 %v4113
    %4141 = vmatprep.subr.mxu0 0.0
    %4142 = vmatpush1.msra.mxu0 %v4114
    %4143 = vmatprep.subr.mxu0 0.0
    %4144 = vmatpush1.msra.mxu0 %v4115
    %4145 = vmatprep.subr.mxu0 0.0
    %4146 = vmatpush1.msra.mxu0 %v4116
    %4147 = vmatprep.subr.mxu0 0.0
    %4148 = vmatpush1.msra.mxu0 %v4117
    %4149 = vmatprep.subr.mxu0 0.0
    %4150 = vmatpush1.msra.mxu0 %v4118
    %4151 = vmatprep.subr.mxu0 0.0
    %4152 = vmatpush1.msra.mxu0 %v4119
    %4153 = vmatprep.subr.mxu0 0.0
    %4154 = vmatpush1.msra.mxu0 %v4120
    %4155 = vmatprep.subr.mxu0 0.0
    %4156 = vmatpush1.msra.mxu0 %v4121
    %4157 = vmatprep.subr.mxu0 0.0
    %4158 = vmatpush1.msra.mxu0 %v4122
    %4159 = vmatprep.subr.mxu0 0.0
    %4160 = vmatpush1.msra.mxu0 %v4123
    %4161 = vmatprep.subr.mxu0 0.0
    %4162 = vmatpush1.msra.mxu0 %v4124
    %4163 = vmatprep.subr.mxu0 0.0
    %4164 = vmatpush1.msra.mxu0 %v4125
    %4165 = vmatprep.subr.mxu0 0.0
    %4166 = vmatpush1.msra.mxu0 0.0
    %4167 = vmatprep.subr.mxu0 0.0
    %4168 = vmatpush1.msra.mxu0 0.0
    %4169 = vmatprep.subr.mxu0 0.0
    %4170 = vmatpush1.msra.mxu0 0.0
    %4171 = vmatprep.subr.mxu0 0.0
    %4172 = vmatpush1.msra.mxu0 0.0
    %4173 = vmatprep.subr.mxu0 0.0
    %4174 = vmatpush1.msra.mxu0 0.0
    %4175 = vmatprep.subr.mxu0 0.0
    %4176 = vmatpush1.msra.mxu0 0.0
    %4177 = vmatprep.subr.mxu0 0.0
    %4178 = vmatpush1.msra.mxu0 0.0
    %4179 = vmatprep.subr.mxu0 0.0
    %4180 = vmatpush1.msra.mxu0 0.0
    %4181 = vmatprep.subr.mxu0 0.0
    %4182 = vmatpush1.msra.mxu0 0.0
    %4183 = vmatprep.subr.mxu0 0.0
    %4184 = vmatpush1.msra.mxu0 0.0
    %4185 = vmatprep.subr.mxu0 0.0
    %4186 = vmatpush1.msra.mxu0 0.0
    %4187 = vmatprep.subr.mxu0 0.0
    %4188 = vmatpush1.msra.mxu0 0.0
    %4189 = vmatprep.subr.mxu0 0.0
    %4190 = vmatpush1.msra.mxu0 0.0
    %4191 = vmatprep.subr.mxu0 0.0
    %4192 = vmatpush1.msra.mxu0 0.0
    %4193 = vmatprep.subr.mxu0 0.0
    %4194 = vmatpush1.msra.mxu0 0.0
    %4195 = vmatprep.subr.mxu0 0.0
    %4196 = vmatpush1.msra.mxu0 0.0
    %4197 = vmatprep.mubr.f32.mxu0 0.0
    %4198 = vmatmul.mubr.f32.gmra.mrb[0].mxu0 %v4102
    %v4199 = vpop.f32.mrb[0].mxu0
    %v4200 = vadd.f32 %v4131, %v4199
    %v4201 = vpop.f32.mrb[0].mxu0
    %4202 = vmatprep.mubr.f32.mxu0 0.0
    %4203 = vmatmul.mubr.f32.gmra.mrb[0].mxu0 %v4107
    %v4204 = vpop.f32.mrb[0].mxu0
    %v4205 = vadd.f32 %v4131, %v4204
    %v4206 = vpop.f32.mrb[0].mxu0
    %4207 = vdwg.mxu0
    %v4208 = vadd.f32 %v4016, %v4200
    %v4209 = vadd.f32 %v4017, %v4205
    %v4210 = vld [vmem:[%s16] sm:$0x1]
    %v4211 = vld [vmem:[%s17] sm:$0x1]
    %v4212 = vsel %vm86, %v4208, 0.0
    %4213 = vadd.xlane.f32.xlu0 %v4212
    %v4214 = vpop.xlane.xlu0 %4213
    %v4215 = vsel %vm86, %v4209, 0.0
    %4216 = vadd.xlane.f32.xlu0 %v4215
    %v4217 = vpop.xlane.xlu0 %4216
    %v4218 = vmul.f32 %v4214, %v3981
    %v4219 = vmul.f32 %v4217, %v3981
    %v4220 = vsub.f32 %v4208, %v4218
    %v4221 = vsub.f32 %v4209, %v4219
    %v4222 = vmul.f32 %v4220, %v4220
    %v4223 = vmul.f32 %v4221, %v4221
    %v4224 = vsel %vm86, %v4222, 0.0
    %4225 = vadd.xlane.f32.xlu0 %v4224
    %v4226 = vpop.xlane.xlu0 %4225
    %v4227 = vsel %vm86, %v4223, 0.0
    %4228 = vadd.xlane.f32.xlu0 %v4227
    %v4229 = vpop.xlane.xlu0 %4228
    %v4230 = vmul.f32 %v4226, %v3981
    %v4231 = vmul.f32 %v4229, %v3981
    %v4232 = vadd.f32 %v4230, 1e-05
    %v4233 = vadd.f32 %v4231, 1e-05
    %v4234 = vrsqrt.pop %v4232
    %v4235 = vrsqrt.pop %v4233
    %v4236 = vmul.f32 %v4220, %v4234
    %v4237 = vmul.f32 %v4221, %v4235
    %v4239 = vlaneseq
    %v4240 = vshrl.u32 %v4239, 7
    %v4241 = vsub.s32 0, %v4240
    %v4242 = vrot.slane %v4210, %v4241
    %v4244 = vmul.f32 %v4236, %v4242
    %v4245 = vmul.f32 %v4237, %v4242
    %v4247 = vlaneseq
    %v4248 = vshrl.u32 %v4247, 7
    %v4249 = vsub.s32 0, %v4248
    %v4250 = vrot.slane %v4211, %v4249
    %v4252 = vadd.f32 %v4244, %v4250
    %v4253 = vadd.f32 %v4245, %v4250
    %v4254 = vadd.f32 %v4252, %v69
    %v4255 = vadd.f32 %v4253, %v74
    %4256 = vst.msk [vmem:[#allocation2] sm:$0xff] %vm86, %v4254
    %4257 = vst.msk [vmem:[#allocation2 + $0x8] sm:$0xff] %vm86, %v4255
    // Predicated region
    $region74: #{mha_residual.1} parent=1 // pred_check
      _
    $region75: #{mha_residual.1} parent=1 // pred_check_branch
      %4259 = sbr.rel (0) target = $region77
    $region76: #{mha_residual.1} parent=1 // pred_region
      %s4261 = ssub.s32 256, 256
      %4262 = vsyncadd [#allocation3], %s4261
      %s4263 = sshll.u32 [#allocation2], 4
      %s4264 = int_to_ptr.vmem [resolvable:$true] %s4263
      %4269 = dma.vmem_to_hbm [thread:$0]  %s4264, 256, %s18, [#allocation3], 128, 128, 8
    $region77: #{mha_residual.1} parent=1 // pred_fallthru
      _
    // Predicated region
    $region78: #{mha_residual.1} parent=1 // pred_check
      _
    $region79: #{mha_residual.1} parent=1 // pred_check_branch
      %4271 = sbr.rel (0) target = $region81
    $region80: #{mha_residual.1} parent=1 // pred_region
      %s4273 = ssub.s32 1024, 1024
      %4274 = vsyncadd [#allocation5], %s4273
      %s4275 = sshll.u32 [#allocation4], 4
      %s4276 = int_to_ptr.vmem [resolvable:$true] %s4275
      %4281 = dma.vmem_to_hbm [thread:$0]  %s4276, 1024, %s19, [#allocation5], 128, 128, 8
    $region81: #{mha_residual.1} parent=1 // pred_fallthru
      _
    // Predicated region
    $region82: #{mha_residual.1} parent=1 // pred_check
      _
    $region83: #{mha_residual.1} parent=1 // pred_check_branch
      %4283 = sbr.rel (0) target = $region85
    $region84: #{mha_residual.1} parent=1 // pred_region
      %4284 = dma.done [#allocation3], 256
    $region85: #{mha_residual.1} parent=1 // pred_fallthru
      _
    // Predicated region
    $region86: #{mha_residual.1} parent=1 // pred_check
      _
    $region87: #{mha_residual.1} parent=1 // pred_check_branch
      %4286 = sbr.rel (0) target = $region89
    $region88: #{mha_residual.1} parent=1 // pred_region
      %4287 = dma.done [#allocation5], 1024
    $region89: #{mha_residual.1} parent=1 // pred_fallthru
      _
    %4288 = vsyncpa [#allocation3], 1
    %4289 = vsyncpa [#allocation5], 1

</llo_original>
